<compile_context>
chip_gen: v6e
topology: v6e:2x2x1
jax: 0.10.0
libtpu: 0.0.40
codegen_flags: <defaults>
</compile_context>

<pallas_src>
import functools

import jax
import jax.numpy as jnp
from jax.experimental import pallas as pl
from jax.experimental.pallas import tpu as pltpu


# ----------------------------------------------------------------------------
# Kernel
# ----------------------------------------------------------------------------
def gru_fc_kernel(x_ref,                       # [T*BP, IP]  f32  time-major, batch/feature padded
                  wih0_ref,                    # [IP, 3*HP]  bf16 layer-0 input weights, gate-striped
                  bi0_ref,                     # [1, 3*HP]   f32  folded layer-0 bias (r,z: b_ih+b_hh ; n: b_ih)
                  whh0_ref,                    # [HP, 3*HP]  bf16 layer-0 hidden weights
                  bhh0n_ref,                   # [1, HP]     f32  b_hh0 for the n gate (inside r*(...))
                  wih1_ref,                    # [HP, 3*HP]  bf16 layer-1 input weights
                  bi1_ref,                     # [1, 3*HP]   f32
                  whh1_ref,                    # [HP, 3*HP]  bf16 layer-1 hidden weights
                  bhh1n_ref,                   # [1, HP]     f32
                  wfc_ref,                     # [HP, OP]    bf16 fc head
                  bfc_ref,                     # [1, OP]     f32
                  out_ref,                     # [BP, OP]    f32  lane-dense output
                  *, t_steps, bp, hp):
    T, BP, HP = t_steps, bp, hp
    G = 3 * HP
    TB = T * BP
    bf16, f32 = jnp.bfloat16, jnp.float32

    # Batched layer-0 input projection (independent of the carry -> off the
    # recurrent critical path; the scheduler can overlap it with early steps).
    gi0_all = (jnp.dot(x_ref[...].astype(bf16), wih0_ref[...],
                       preferred_element_type=f32)
               + jnp.broadcast_to(bi0_ref[...], (TB, G)))            # [T*BP, 3*HP]

    # Weights resident across both (unrolled) time loops; hoist bias broadcasts
    # (JAX does not CSE broadcast_in_dim).
    whh0 = whh0_ref[...]
    whh1 = whh1_ref[...]
    wih1 = wih1_ref[...]
    bhh0n = jnp.broadcast_to(bhh0n_ref[...], (BP, HP))
    bhh1n = jnp.broadcast_to(bhh1n_ref[...], (BP, HP))
    bi1 = jnp.broadcast_to(bi1_ref[...], (TB, G))

    def cell(gi, h, whh, bhhn):
        # PyTorch gate order r, z, n; each gate owns one 128-lane stripe.
        gh = jnp.dot(h.astype(bf16), whh, preferred_element_type=f32)  # [BP, 3*HP], K=HP=128
        rz = jax.nn.sigmoid(gi[:, :2 * HP] + gh[:, :2 * HP])           # one EUP slab for r|z
        r, z = rz[:, :HP], rz[:, HP:]
        n = jnp.tanh(gi[:, 2 * HP:] + r * (gh[:, 2 * HP:] + bhhn))
        return (1.0 - z) * n + z * h

    # ----- layer 0: full time loop first (layer-serialized recurrence) -----
    h0 = jnp.zeros((BP, HP), f32)
    h0_steps = []
    for t in range(T):                          # static unroll (T small)
        h0 = cell(gi0_all[t * BP:(t + 1) * BP, :], h0, whh0, bhh0n)  # aligned 8-row slices
        h0_steps.append(h0)

    # ----- layer 1: ONE batched input projection over all timesteps -----
    # TODO(synk): nn.GRU inter-layer dropout (p=0.3) is train-only; eval mode => identity.
    h0_all = jnp.concatenate(h0_steps, axis=0)                       # [T*BP, HP], 8-aligned concat
    gi1_all = (jnp.dot(h0_all.astype(bf16), wih1,
                       preferred_element_type=f32) + bi1)            # [T*BP, 3*HP]

    h1 = jnp.zeros((BP, HP), f32)
    for t in range(T):
        h1 = cell(gi1_all[t * BP:(t + 1) * BP, :], h1, whh1, bhh1n)

    # fc on the last timestep of the top layer; lane-dense [BP, OP] output
    # (the wrapper slices back to [B, out_features]).
    out_ref[...] = (jnp.dot(h1.astype(bf16), wfc_ref[...],
                            preferred_element_type=f32)
                    + jnp.broadcast_to(bfc_ref[...], out_ref.shape))


# ----------------------------------------------------------------------------
# Weight packing (done ONCE at parameter-load time)
# ----------------------------------------------------------------------------
def _place_gates(w, H, HP):
    """[K, 3H] -> [K, 3*HP]: each gate's H columns at the start of a 128-lane stripe."""
    K = w.shape[0]
    out = jnp.zeros((K, 3 * HP), jnp.float32)
    for g in range(3):
        out = out.at[:, g * HP:g * HP + H].set(w[:, g * H:(g + 1) * H])
    return out


def _fold_bias(b_ih, b_hh, H, HP):
    """Fold b_ih (+ b_hh for r,z only) into one gate-striped [1, 3*HP] bias."""
    folded = jnp.concatenate([b_ih[:, :2 * H] + b_hh[:, :2 * H], b_ih[:, 2 * H:]], axis=-1)
    return _place_gates(folded, H, HP)


def pack_params(params, input_size, hidden_size, out_features=4, *, hp=128, op=128, ip=128):
    """Build the padded / gate-striped / bf16 kernel weights ONCE. Pad rows and
    pad columns are zero, so padded lanes can never contaminate live lanes."""
    H, I = hidden_size, input_size
    f32, bf16 = jnp.float32, jnp.bfloat16
    p = {k: v.astype(f32) for k, v in params.items()}

    wih0 = jnp.zeros((ip, 3 * hp), f32).at[:I, :].set(_place_gates(p["w_ih0_t"], H, hp))
    whh0 = jnp.zeros((hp, 3 * hp), f32).at[:H, :].set(_place_gates(p["w_hh0_t"], H, hp))
    wih1 = jnp.zeros((hp, 3 * hp), f32).at[:H, :].set(_place_gates(p["w_ih1_t"], H, hp))
    whh1 = jnp.zeros((hp, 3 * hp), f32).at[:H, :].set(_place_gates(p["w_hh1_t"], H, hp))
    wfc = jnp.zeros((hp, op), f32).at[:H, :out_features].set(p["w_fc_t"])

    packed = dict(
        wih0=wih0.astype(bf16),
        bi0=_fold_bias(p["b_ih0"], p["b_hh0"], H, hp),
        whh0=whh0.astype(bf16),
        bhh0n=jnp.zeros((1, hp), f32).at[:, :H].set(p["b_hh0"][:, 2 * H:]),
        wih1=wih1.astype(bf16),
        bi1=_fold_bias(p["b_ih1"], p["b_hh1"], H, hp),
        whh1=whh1.astype(bf16),
        bhh1n=jnp.zeros((1, hp), f32).at[:, :H].set(p["b_hh1"][:, 2 * H:]),
        wfc=wfc.astype(bf16),
        bfc=jnp.zeros((1, op), f32).at[:, :out_features].set(p["b_fc"]),
    )
    return jax.tree.map(jax.device_put, packed)


# ----------------------------------------------------------------------------
# Forward wrapper: minimal per-call x prep + single pallas_call
# ----------------------------------------------------------------------------
def gru_forward(x, packed, *, out_features=4, hp=128, op=128, ip=128):
    """x: [B, T, I] (batch_first, as in the PyTorch module). Returns [B, out_features]."""
    B, T, I = x.shape
    BP = max(8, ((B + 7) // 8) * 8)            # sublane-aligned batch

    # Time-major + pad batch->BP and features->IP (tiny, fused under jit).
    x_tm = jnp.transpose(x, (1, 0, 2)).astype(jnp.float32)            # [T, B, I]
    x_pad = jnp.zeros((T, BP, ip), jnp.float32).at[:, :B, :I].set(x_tm)
    x_flat = x_pad.reshape(T * BP, ip)

    args = (x_flat,
            packed["wih0"], packed["bi0"], packed["whh0"], packed["bhh0n"],
            packed["wih1"], packed["bi1"], packed["whh1"], packed["bhh1n"],
            packed["wfc"], packed["bfc"])

    # Everything is tiny at these sizes -> keep it all resident in VMEM,
    # single grid-less call (one TensorCore).
    # TODO(synk): at production batch sizes add a grid over B with
    # dimension_semantics=("parallel",); tile B to 512-1024 rows per block so
    # double-buffered x blocks stay under v7x's 32 MiB scoped VMEM limit.
    in_specs = [pl.BlockSpec(memory_space=pltpu.MemorySpace.VMEM) for _ in args]
    out_spec = pl.BlockSpec(memory_space=pltpu.MemorySpace.VMEM)

    out = pl.pallas_call(
        functools.partial(gru_fc_kernel, t_steps=T, bp=BP, hp=hp),
        out_shape=jax.ShapeDtypeStruct((BP, op), jnp.float32),
        in_specs=in_specs,
        out_specs=out_spec,
    )(*args)
    return out[:B, :out_features]


# ----------------------------------------------------------------------------
# Params / reference
# ----------------------------------------------------------------------------
def init_params(key, input_size, hidden_size, out_features=4):
    """Deterministic init matching PyTorch shapes (weights stored transposed)."""
    H = hidden_size
    bound = 1.0 / (H ** 0.5)
    ks = jax.random.split(key, 10)
    u = lambda k, shape: jax.random.uniform(k, shape, jnp.float32, -bound, bound)
    return dict(
        w_ih0_t=u(ks[0], (input_size, 3 * H)),   # torch weight_ih_l0^T
        w_hh0_t=u(ks[1], (H, 3 * H)),
        b_ih0=u(ks[2], (1, 3 * H)),
        b_hh0=u(ks[3], (1, 3 * H)),
        w_ih1_t=u(ks[4], (H, 3 * H)),
        w_hh1_t=u(ks[5], (H, 3 * H)),
        b_ih1=u(ks[6], (1, 3 * H)),
        b_hh1=u(ks[7], (1, 3 * H)),
        w_fc_t=u(ks[8], (H, out_features)),
        b_fc=u(ks[9], (1, out_features)),
    )


def reference_forward(x, p, H):
    """Pure-JAX reference of the PyTorch forward pass (eval mode, no dropout),
    in the standard per-gate formulation. Matmul inputs are cast to bf16 with
    f32 accumulation to mirror the kernel's MXU precision."""
    def mm(a, b):
        return jnp.dot(a.astype(jnp.bfloat16), b.astype(jnp.bfloat16),
                       preferred_element_type=jnp.float32)

    def cell(x_t, h, w_ih_t, w_hh_t, b_ih, b_hh):
        gi = mm(x_t, w_ih_t) + b_ih
        gh = mm(h, w_hh_t)
        i_r, i_z, i_n = gi[:, :H], gi[:, H:2 * H], gi[:, 2 * H:]
        h_r, h_z, h_n = gh[:, :H], gh[:, H:2 * H], gh[:, 2 * H:]
        b_r, b_z, b_n = b_hh[:, :H], b_hh[:, H:2 * H], b_hh[:, 2 * H:]
        r = jax.nn.sigmoid(i_r + h_r + b_r)
        z = jax.nn.sigmoid(i_z + h_z + b_z)
        n = jnp.tanh(i_n + r * (h_n + b_n))
        return (1.0 - z) * n + z * h

    B, T, I = x.shape
    h0 = jnp.zeros((B, H), jnp.float32)
    h1 = jnp.zeros((B, H), jnp.float32)
    for t in range(T):
        h0 = cell(x[:, t, :].astype(jnp.float32), h0,
                  p["w_ih0_t"], p["w_hh0_t"], p["b_ih0"], p["b_hh0"])
        h1 = cell(h0, h1,
                  p["w_ih1_t"], p["w_hh1_t"], p["b_ih1"], p["b_hh1"])
    return mm(h1, p["w_fc_t"]) + p["b_fc"]


if __name__ == "__main__":
    # Small shapes consistent with the module's forward: (batch, seq, input_size=3)
    B, T, I, H = 2, 8, 3, 32

    key = jax.random.PRNGKey(0)
    k_x, k_p = jax.random.split(key)
    x = jax.random.normal(k_x, (B, T, I), dtype=jnp.float32)
    params = init_params(k_p, input_size=I, hidden_size=H, out_features=4)

    # Pack / pad / cast the weights ONCE (parameter-load time, not per call).
    packed = pack_params(params, input_size=I, hidden_size=H, out_features=4)

    fwd = jax.jit(functools.partial(gru_forward, out_features=4))
    out = jax.block_until_ready(fwd(x, packed))

    ref = jax.block_until_ready(reference_forward(x, params, H))
    assert out.shape == (B, 4), out.shape
    assert jnp.allclose(out, ref, atol=2e-3, rtol=2e-3), (out, ref)

    print("KERNEL_OK")
</pallas_src>

<mosaic_0001>
module attributes {stable_mosaic.version = 11 : i64} {
  func.func @gru_fc_kernel(%arg0: memref<64x128xf32, #tpu.memory_space<vmem>>, %arg1: memref<128x384xbf16, #tpu.memory_space<vmem>>, %arg2: memref<1x384xf32, #tpu.memory_space<vmem>>, %arg3: memref<128x384xbf16, #tpu.memory_space<vmem>>, %arg4: memref<1x128xf32, #tpu.memory_space<vmem>>, %arg5: memref<128x384xbf16, #tpu.memory_space<vmem>>, %arg6: memref<1x384xf32, #tpu.memory_space<vmem>>, %arg7: memref<128x384xbf16, #tpu.memory_space<vmem>>, %arg8: memref<1x128xf32, #tpu.memory_space<vmem>>, %arg9: memref<128x128xbf16, #tpu.memory_space<vmem>>, %arg10: memref<1x128xf32, #tpu.memory_space<vmem>>, %arg11: memref<8x128xf32, #tpu.memory_space<vmem>>) attributes {dimension_semantics = [], scalar_prefetch = 0 : i64, scratch_operands = 0 : i64, tpu.core_type = #tpu.core_type<tc>} {
    %c0 = arith.constant 0 : index
    %c0_0 = arith.constant 0 : index
    %0 = vector.load %arg0[%c0, %c0_0] : memref<64x128xf32, #tpu.memory_space<vmem>>, vector<64x128xf32>
    %1 = arith.truncf %0 : vector<64x128xf32> to vector<64x128xbf16>
    %c0_1 = arith.constant 0 : index
    %c0_2 = arith.constant 0 : index
    %2 = vector.load %arg1[%c0_1, %c0_2] : memref<128x384xbf16, #tpu.memory_space<vmem>>, vector<128x384xbf16>
    %cst = arith.constant dense<0.000000e+00> : vector<64x384xf32>
    %3 = tpu.matmul %1, %2, %cst {dimension_numbers = #tpu.dot_dimension_numbers<[1], [0], [0], [1], [0, 0, 1, 1], [], []>} : vector<64x128xbf16>, vector<128x384xbf16>, vector<64x384xf32> -> vector<64x384xf32>
    %c0_3 = arith.constant 0 : index
    %c0_4 = arith.constant 0 : index
    %4 = vector.load %arg2[%c0_3, %c0_4] : memref<1x384xf32, #tpu.memory_space<vmem>>, vector<1x384xf32>
    %5 = vector.shape_cast %4 : vector<1x384xf32> to vector<1x384xf32>
    %6 = vector.broadcast %5 : vector<1x384xf32> to vector<64x384xf32>
    %7 = arith.addf %3, %6 : vector<64x384xf32>
    %c0_5 = arith.constant 0 : index
    %c0_6 = arith.constant 0 : index
    %8 = vector.load %arg3[%c0_5, %c0_6] : memref<128x384xbf16, #tpu.memory_space<vmem>>, vector<128x384xbf16>
    %c0_7 = arith.constant 0 : index
    %c0_8 = arith.constant 0 : index
    %9 = vector.load %arg7[%c0_7, %c0_8] : memref<128x384xbf16, #tpu.memory_space<vmem>>, vector<128x384xbf16>
    %c0_9 = arith.constant 0 : index
    %c0_10 = arith.constant 0 : index
    %10 = vector.load %arg5[%c0_9, %c0_10] : memref<128x384xbf16, #tpu.memory_space<vmem>>, vector<128x384xbf16>
    %c0_11 = arith.constant 0 : index
    %c0_12 = arith.constant 0 : index
    %11 = vector.load %arg4[%c0_11, %c0_12] : memref<1x128xf32, #tpu.memory_space<vmem>>, vector<1x128xf32>
    %12 = vector.shape_cast %11 : vector<1x128xf32> to vector<1x128xf32>
    %13 = vector.broadcast %12 : vector<1x128xf32> to vector<8x128xf32>
    %c0_13 = arith.constant 0 : index
    %c0_14 = arith.constant 0 : index
    %14 = vector.load %arg8[%c0_13, %c0_14] : memref<1x128xf32, #tpu.memory_space<vmem>>, vector<1x128xf32>
    %15 = vector.shape_cast %14 : vector<1x128xf32> to vector<1x128xf32>
    %16 = vector.broadcast %15 : vector<1x128xf32> to vector<8x128xf32>
    %c0_15 = arith.constant 0 : index
    %c0_16 = arith.constant 0 : index
    %17 = vector.load %arg6[%c0_15, %c0_16] : memref<1x384xf32, #tpu.memory_space<vmem>>, vector<1x384xf32>
    %18 = vector.shape_cast %17 : vector<1x384xf32> to vector<1x384xf32>
    %19 = vector.broadcast %18 : vector<1x384xf32> to vector<64x384xf32>
    %cst_17 = arith.constant 0.000000e+00 : f32
    %20 = vector.broadcast %cst_17 : f32 to vector<8x128xf32>
    %21 = vector.extract_strided_slice %7 {offsets = [0, 0], sizes = [8, 384], strides = [1, 1]} : vector<64x384xf32> to vector<8x384xf32>
    %22 = arith.truncf %20 : vector<8x128xf32> to vector<8x128xbf16>
    %cst_18 = arith.constant dense<0.000000e+00> : vector<8x384xf32>
    %23 = tpu.matmul %22, %8, %cst_18 {dimension_numbers = #tpu.dot_dimension_numbers<[1], [0], [0], [1], [0, 0, 1, 1], [], []>} : vector<8x128xbf16>, vector<128x384xbf16>, vector<8x384xf32> -> vector<8x384xf32>
    %24 = vector.extract_strided_slice %21 {offsets = [0, 0], sizes = [8, 256], strides = [1, 1]} : vector<8x384xf32> to vector<8x256xf32>
    %25 = vector.extract_strided_slice %23 {offsets = [0, 0], sizes = [8, 256], strides = [1, 1]} : vector<8x384xf32> to vector<8x256xf32>
    %26 = arith.addf %24, %25 : vector<8x256xf32>
    %27 = arith.negf %26 : vector<8x256xf32>
    %28 = math.exp %27 : vector<8x256xf32>
    %cst_19 = arith.constant 1.000000e+00 : f32
    %29 = vector.broadcast %cst_19 : f32 to vector<8x256xf32>
    %30 = arith.addf %29, %28 : vector<8x256xf32>
    %31 = arith.divf %29, %30 : vector<8x256xf32>
    %32 = vector.extract_strided_slice %31 {offsets = [0, 0], sizes = [8, 128], strides = [1, 1]} : vector<8x256xf32> to vector<8x128xf32>
    %33 = vector.extract_strided_slice %31 {offsets = [0, 128], sizes = [8, 128], strides = [1, 1]} : vector<8x256xf32> to vector<8x128xf32>
    %34 = vector.extract_strided_slice %21 {offsets = [0, 256], sizes = [8, 128], strides = [1, 1]} : vector<8x384xf32> to vector<8x128xf32>
    %35 = vector.extract_strided_slice %23 {offsets = [0, 256], sizes = [8, 128], strides = [1, 1]} : vector<8x384xf32> to vector<8x128xf32>
    %36 = arith.addf %35, %13 : vector<8x128xf32>
    %37 = arith.mulf %32, %36 : vector<8x128xf32>
    %38 = arith.addf %34, %37 : vector<8x128xf32>
    %39 = math.tanh %38 : vector<8x128xf32>
    %cst_20 = arith.constant 1.000000e+00 : f32
    %40 = vector.broadcast %cst_20 : f32 to vector<8x128xf32>
    %41 = arith.subf %40, %33 : vector<8x128xf32>
    %42 = arith.mulf %41, %39 : vector<8x128xf32>
    %43 = arith.mulf %33, %20 : vector<8x128xf32>
    %44 = arith.addf %42, %43 : vector<8x128xf32>
    %45 = vector.extract_strided_slice %7 {offsets = [8, 0], sizes = [8, 384], strides = [1, 1]} : vector<64x384xf32> to vector<8x384xf32>
    %46 = arith.truncf %44 : vector<8x128xf32> to vector<8x128xbf16>
    %cst_21 = arith.constant dense<0.000000e+00> : vector<8x384xf32>
    %47 = tpu.matmul %46, %8, %cst_21 {dimension_numbers = #tpu.dot_dimension_numbers<[1], [0], [0], [1], [0, 0, 1, 1], [], []>} : vector<8x128xbf16>, vector<128x384xbf16>, vector<8x384xf32> -> vector<8x384xf32>
    %48 = vector.extract_strided_slice %45 {offsets = [0, 0], sizes = [8, 256], strides = [1, 1]} : vector<8x384xf32> to vector<8x256xf32>
    %49 = vector.extract_strided_slice %47 {offsets = [0, 0], sizes = [8, 256], strides = [1, 1]} : vector<8x384xf32> to vector<8x256xf32>
    %50 = arith.addf %48, %49 : vector<8x256xf32>
    %51 = arith.negf %50 : vector<8x256xf32>
    %52 = math.exp %51 : vector<8x256xf32>
    %cst_22 = arith.constant 1.000000e+00 : f32
    %53 = vector.broadcast %cst_22 : f32 to vector<8x256xf32>
    %54 = arith.addf %53, %52 : vector<8x256xf32>
    %55 = arith.divf %53, %54 : vector<8x256xf32>
    %56 = vector.extract_strided_slice %55 {offsets = [0, 0], sizes = [8, 128], strides = [1, 1]} : vector<8x256xf32> to vector<8x128xf32>
    %57 = vector.extract_strided_slice %55 {offsets = [0, 128], sizes = [8, 128], strides = [1, 1]} : vector<8x256xf32> to vector<8x128xf32>
    %58 = vector.extract_strided_slice %45 {offsets = [0, 256], sizes = [8, 128], strides = [1, 1]} : vector<8x384xf32> to vector<8x128xf32>
    %59 = vector.extract_strided_slice %47 {offsets = [0, 256], sizes = [8, 128], strides = [1, 1]} : vector<8x384xf32> to vector<8x128xf32>
    %60 = arith.addf %59, %13 : vector<8x128xf32>
    %61 = arith.mulf %56, %60 : vector<8x128xf32>
    %62 = arith.addf %58, %61 : vector<8x128xf32>
    %63 = math.tanh %62 : vector<8x128xf32>
    %cst_23 = arith.constant 1.000000e+00 : f32
    %64 = vector.broadcast %cst_23 : f32 to vector<8x128xf32>
    %65 = arith.subf %64, %57 : vector<8x128xf32>
    %66 = arith.mulf %65, %63 : vector<8x128xf32>
    %67 = arith.mulf %57, %44 : vector<8x128xf32>
    %68 = arith.addf %66, %67 : vector<8x128xf32>
    %69 = vector.extract_strided_slice %7 {offsets = [16, 0], sizes = [8, 384], strides = [1, 1]} : vector<64x384xf32> to vector<8x384xf32>
    %70 = arith.truncf %68 : vector<8x128xf32> to vector<8x128xbf16>
    %cst_24 = arith.constant dense<0.000000e+00> : vector<8x384xf32>
    %71 = tpu.matmul %70, %8, %cst_24 {dimension_numbers = #tpu.dot_dimension_numbers<[1], [0], [0], [1], [0, 0, 1, 1], [], []>} : vector<8x128xbf16>, vector<128x384xbf16>, vector<8x384xf32> -> vector<8x384xf32>
    %72 = vector.extract_strided_slice %69 {offsets = [0, 0], sizes = [8, 256], strides = [1, 1]} : vector<8x384xf32> to vector<8x256xf32>
    %73 = vector.extract_strided_slice %71 {offsets = [0, 0], sizes = [8, 256], strides = [1, 1]} : vector<8x384xf32> to vector<8x256xf32>
    %74 = arith.addf %72, %73 : vector<8x256xf32>
    %75 = arith.negf %74 : vector<8x256xf32>
    %76 = math.exp %75 : vector<8x256xf32>
    %cst_25 = arith.constant 1.000000e+00 : f32
    %77 = vector.broadcast %cst_25 : f32 to vector<8x256xf32>
    %78 = arith.addf %77, %76 : vector<8x256xf32>
    %79 = arith.divf %77, %78 : vector<8x256xf32>
    %80 = vector.extract_strided_slice %79 {offsets = [0, 0], sizes = [8, 128], strides = [1, 1]} : vector<8x256xf32> to vector<8x128xf32>
    %81 = vector.extract_strided_slice %79 {offsets = [0, 128], sizes = [8, 128], strides = [1, 1]} : vector<8x256xf32> to vector<8x128xf32>
    %82 = vector.extract_strided_slice %69 {offsets = [0, 256], sizes = [8, 128], strides = [1, 1]} : vector<8x384xf32> to vector<8x128xf32>
    %83 = vector.extract_strided_slice %71 {offsets = [0, 256], sizes = [8, 128], strides = [1, 1]} : vector<8x384xf32> to vector<8x128xf32>
    %84 = arith.addf %83, %13 : vector<8x128xf32>
    %85 = arith.mulf %80, %84 : vector<8x128xf32>
    %86 = arith.addf %82, %85 : vector<8x128xf32>
    %87 = math.tanh %86 : vector<8x128xf32>
    %cst_26 = arith.constant 1.000000e+00 : f32
    %88 = vector.broadcast %cst_26 : f32 to vector<8x128xf32>
    %89 = arith.subf %88, %81 : vector<8x128xf32>
    %90 = arith.mulf %89, %87 : vector<8x128xf32>
    %91 = arith.mulf %81, %68 : vector<8x128xf32>
    %92 = arith.addf %90, %91 : vector<8x128xf32>
    %93 = vector.extract_strided_slice %7 {offsets = [24, 0], sizes = [8, 384], strides = [1, 1]} : vector<64x384xf32> to vector<8x384xf32>
    %94 = arith.truncf %92 : vector<8x128xf32> to vector<8x128xbf16>
    %cst_27 = arith.constant dense<0.000000e+00> : vector<8x384xf32>
    %95 = tpu.matmul %94, %8, %cst_27 {dimension_numbers = #tpu.dot_dimension_numbers<[1], [0], [0], [1], [0, 0, 1, 1], [], []>} : vector<8x128xbf16>, vector<128x384xbf16>, vector<8x384xf32> -> vector<8x384xf32>
    %96 = vector.extract_strided_slice %93 {offsets = [0, 0], sizes = [8, 256], strides = [1, 1]} : vector<8x384xf32> to vector<8x256xf32>
    %97 = vector.extract_strided_slice %95 {offsets = [0, 0], sizes = [8, 256], strides = [1, 1]} : vector<8x384xf32> to vector<8x256xf32>
    %98 = arith.addf %96, %97 : vector<8x256xf32>
    %99 = arith.negf %98 : vector<8x256xf32>
    %100 = math.exp %99 : vector<8x256xf32>
    %cst_28 = arith.constant 1.000000e+00 : f32
    %101 = vector.broadcast %cst_28 : f32 to vector<8x256xf32>
    %102 = arith.addf %101, %100 : vector<8x256xf32>
    %103 = arith.divf %101, %102 : vector<8x256xf32>
    %104 = vector.extract_strided_slice %103 {offsets = [0, 0], sizes = [8, 128], strides = [1, 1]} : vector<8x256xf32> to vector<8x128xf32>
    %105 = vector.extract_strided_slice %103 {offsets = [0, 128], sizes = [8, 128], strides = [1, 1]} : vector<8x256xf32> to vector<8x128xf32>
    %106 = vector.extract_strided_slice %93 {offsets = [0, 256], sizes = [8, 128], strides = [1, 1]} : vector<8x384xf32> to vector<8x128xf32>
    %107 = vector.extract_strided_slice %95 {offsets = [0, 256], sizes = [8, 128], strides = [1, 1]} : vector<8x384xf32> to vector<8x128xf32>
    %108 = arith.addf %107, %13 : vector<8x128xf32>
    %109 = arith.mulf %104, %108 : vector<8x128xf32>
    %110 = arith.addf %106, %109 : vector<8x128xf32>
    %111 = math.tanh %110 : vector<8x128xf32>
    %cst_29 = arith.constant 1.000000e+00 : f32
    %112 = vector.broadcast %cst_29 : f32 to vector<8x128xf32>
    %113 = arith.subf %112, %105 : vector<8x128xf32>
    %114 = arith.mulf %113, %111 : vector<8x128xf32>
    %115 = arith.mulf %105, %92 : vector<8x128xf32>
    %116 = arith.addf %114, %115 : vector<8x128xf32>
    %117 = vector.extract_strided_slice %7 {offsets = [32, 0], sizes = [8, 384], strides = [1, 1]} : vector<64x384xf32> to vector<8x384xf32>
    %118 = arith.truncf %116 : vector<8x128xf32> to vector<8x128xbf16>
    %cst_30 = arith.constant dense<0.000000e+00> : vector<8x384xf32>
    %119 = tpu.matmul %118, %8, %cst_30 {dimension_numbers = #tpu.dot_dimension_numbers<[1], [0], [0], [1], [0, 0, 1, 1], [], []>} : vector<8x128xbf16>, vector<128x384xbf16>, vector<8x384xf32> -> vector<8x384xf32>
    %120 = vector.extract_strided_slice %117 {offsets = [0, 0], sizes = [8, 256], strides = [1, 1]} : vector<8x384xf32> to vector<8x256xf32>
    %121 = vector.extract_strided_slice %119 {offsets = [0, 0], sizes = [8, 256], strides = [1, 1]} : vector<8x384xf32> to vector<8x256xf32>
    %122 = arith.addf %120, %121 : vector<8x256xf32>
    %123 = arith.negf %122 : vector<8x256xf32>
    %124 = math.exp %123 : vector<8x256xf32>
    %cst_31 = arith.constant 1.000000e+00 : f32
    %125 = vector.broadcast %cst_31 : f32 to vector<8x256xf32>
    %126 = arith.addf %125, %124 : vector<8x256xf32>
    %127 = arith.divf %125, %126 : vector<8x256xf32>
    %128 = vector.extract_strided_slice %127 {offsets = [0, 0], sizes = [8, 128], strides = [1, 1]} : vector<8x256xf32> to vector<8x128xf32>
    %129 = vector.extract_strided_slice %127 {offsets = [0, 128], sizes = [8, 128], strides = [1, 1]} : vector<8x256xf32> to vector<8x128xf32>
    %130 = vector.extract_strided_slice %117 {offsets = [0, 256], sizes = [8, 128], strides = [1, 1]} : vector<8x384xf32> to vector<8x128xf32>
    %131 = vector.extract_strided_slice %119 {offsets = [0, 256], sizes = [8, 128], strides = [1, 1]} : vector<8x384xf32> to vector<8x128xf32>
    %132 = arith.addf %131, %13 : vector<8x128xf32>
    %133 = arith.mulf %128, %132 : vector<8x128xf32>
    %134 = arith.addf %130, %133 : vector<8x128xf32>
    %135 = math.tanh %134 : vector<8x128xf32>
    %cst_32 = arith.constant 1.000000e+00 : f32
    %136 = vector.broadcast %cst_32 : f32 to vector<8x128xf32>
    %137 = arith.subf %136, %129 : vector<8x128xf32>
    %138 = arith.mulf %137, %135 : vector<8x128xf32>
    %139 = arith.mulf %129, %116 : vector<8x128xf32>
    %140 = arith.addf %138, %139 : vector<8x128xf32>
    %141 = vector.extract_strided_slice %7 {offsets = [40, 0], sizes = [8, 384], strides = [1, 1]} : vector<64x384xf32> to vector<8x384xf32>
    %142 = arith.truncf %140 : vector<8x128xf32> to vector<8x128xbf16>
    %cst_33 = arith.constant dense<0.000000e+00> : vector<8x384xf32>
    %143 = tpu.matmul %142, %8, %cst_33 {dimension_numbers = #tpu.dot_dimension_numbers<[1], [0], [0], [1], [0, 0, 1, 1], [], []>} : vector<8x128xbf16>, vector<128x384xbf16>, vector<8x384xf32> -> vector<8x384xf32>
    %144 = vector.extract_strided_slice %141 {offsets = [0, 0], sizes = [8, 256], strides = [1, 1]} : vector<8x384xf32> to vector<8x256xf32>
    %145 = vector.extract_strided_slice %143 {offsets = [0, 0], sizes = [8, 256], strides = [1, 1]} : vector<8x384xf32> to vector<8x256xf32>
    %146 = arith.addf %144, %145 : vector<8x256xf32>
    %147 = arith.negf %146 : vector<8x256xf32>
    %148 = math.exp %147 : vector<8x256xf32>
    %cst_34 = arith.constant 1.000000e+00 : f32
    %149 = vector.broadcast %cst_34 : f32 to vector<8x256xf32>
    %150 = arith.addf %149, %148 : vector<8x256xf32>
    %151 = arith.divf %149, %150 : vector<8x256xf32>
    %152 = vector.extract_strided_slice %151 {offsets = [0, 0], sizes = [8, 128], strides = [1, 1]} : vector<8x256xf32> to vector<8x128xf32>
    %153 = vector.extract_strided_slice %151 {offsets = [0, 128], sizes = [8, 128], strides = [1, 1]} : vector<8x256xf32> to vector<8x128xf32>
    %154 = vector.extract_strided_slice %141 {offsets = [0, 256], sizes = [8, 128], strides = [1, 1]} : vector<8x384xf32> to vector<8x128xf32>
    %155 = vector.extract_strided_slice %143 {offsets = [0, 256], sizes = [8, 128], strides = [1, 1]} : vector<8x384xf32> to vector<8x128xf32>
    %156 = arith.addf %155, %13 : vector<8x128xf32>
    %157 = arith.mulf %152, %156 : vector<8x128xf32>
    %158 = arith.addf %154, %157 : vector<8x128xf32>
    %159 = math.tanh %158 : vector<8x128xf32>
    %cst_35 = arith.constant 1.000000e+00 : f32
    %160 = vector.broadcast %cst_35 : f32 to vector<8x128xf32>
    %161 = arith.subf %160, %153 : vector<8x128xf32>
    %162 = arith.mulf %161, %159 : vector<8x128xf32>
    %163 = arith.mulf %153, %140 : vector<8x128xf32>
    %164 = arith.addf %162, %163 : vector<8x128xf32>
    %165 = vector.extract_strided_slice %7 {offsets = [48, 0], sizes = [8, 384], strides = [1, 1]} : vector<64x384xf32> to vector<8x384xf32>
    %166 = arith.truncf %164 : vector<8x128xf32> to vector<8x128xbf16>
    %cst_36 = arith.constant dense<0.000000e+00> : vector<8x384xf32>
    %167 = tpu.matmul %166, %8, %cst_36 {dimension_numbers = #tpu.dot_dimension_numbers<[1], [0], [0], [1], [0, 0, 1, 1], [], []>} : vector<8x128xbf16>, vector<128x384xbf16>, vector<8x384xf32> -> vector<8x384xf32>
    %168 = vector.extract_strided_slice %165 {offsets = [0, 0], sizes = [8, 256], strides = [1, 1]} : vector<8x384xf32> to vector<8x256xf32>
    %169 = vector.extract_strided_slice %167 {offsets = [0, 0], sizes = [8, 256], strides = [1, 1]} : vector<8x384xf32> to vector<8x256xf32>
    %170 = arith.addf %168, %169 : vector<8x256xf32>
    %171 = arith.negf %170 : vector<8x256xf32>
    %172 = math.exp %171 : vector<8x256xf32>
    %cst_37 = arith.constant 1.000000e+00 : f32
    %173 = vector.broadcast %cst_37 : f32 to vector<8x256xf32>
    %174 = arith.addf %173, %172 : vector<8x256xf32>
    %175 = arith.divf %173, %174 : vector<8x256xf32>
    %176 = vector.extract_strided_slice %175 {offsets = [0, 0], sizes = [8, 128], strides = [1, 1]} : vector<8x256xf32> to vector<8x128xf32>
    %177 = vector.extract_strided_slice %175 {offsets = [0, 128], sizes = [8, 128], strides = [1, 1]} : vector<8x256xf32> to vector<8x128xf32>
    %178 = vector.extract_strided_slice %165 {offsets = [0, 256], sizes = [8, 128], strides = [1, 1]} : vector<8x384xf32> to vector<8x128xf32>
    %179 = vector.extract_strided_slice %167 {offsets = [0, 256], sizes = [8, 128], strides = [1, 1]} : vector<8x384xf32> to vector<8x128xf32>
    %180 = arith.addf %179, %13 : vector<8x128xf32>
    %181 = arith.mulf %176, %180 : vector<8x128xf32>
    %182 = arith.addf %178, %181 : vector<8x128xf32>
    %183 = math.tanh %182 : vector<8x128xf32>
    %cst_38 = arith.constant 1.000000e+00 : f32
    %184 = vector.broadcast %cst_38 : f32 to vector<8x128xf32>
    %185 = arith.subf %184, %177 : vector<8x128xf32>
    %186 = arith.mulf %185, %183 : vector<8x128xf32>
    %187 = arith.mulf %177, %164 : vector<8x128xf32>
    %188 = arith.addf %186, %187 : vector<8x128xf32>
    %189 = vector.extract_strided_slice %7 {offsets = [56, 0], sizes = [8, 384], strides = [1, 1]} : vector<64x384xf32> to vector<8x384xf32>
    %190 = arith.truncf %188 : vector<8x128xf32> to vector<8x128xbf16>
    %cst_39 = arith.constant dense<0.000000e+00> : vector<8x384xf32>
    %191 = tpu.matmul %190, %8, %cst_39 {dimension_numbers = #tpu.dot_dimension_numbers<[1], [0], [0], [1], [0, 0, 1, 1], [], []>} : vector<8x128xbf16>, vector<128x384xbf16>, vector<8x384xf32> -> vector<8x384xf32>
    %192 = vector.extract_strided_slice %189 {offsets = [0, 0], sizes = [8, 256], strides = [1, 1]} : vector<8x384xf32> to vector<8x256xf32>
    %193 = vector.extract_strided_slice %191 {offsets = [0, 0], sizes = [8, 256], strides = [1, 1]} : vector<8x384xf32> to vector<8x256xf32>
    %194 = arith.addf %192, %193 : vector<8x256xf32>
    %195 = arith.negf %194 : vector<8x256xf32>
    %196 = math.exp %195 : vector<8x256xf32>
    %cst_40 = arith.constant 1.000000e+00 : f32
    %197 = vector.broadcast %cst_40 : f32 to vector<8x256xf32>
    %198 = arith.addf %197, %196 : vector<8x256xf32>
    %199 = arith.divf %197, %198 : vector<8x256xf32>
    %200 = vector.extract_strided_slice %199 {offsets = [0, 0], sizes = [8, 128], strides = [1, 1]} : vector<8x256xf32> to vector<8x128xf32>
    %201 = vector.extract_strided_slice %199 {offsets = [0, 128], sizes = [8, 128], strides = [1, 1]} : vector<8x256xf32> to vector<8x128xf32>
    %202 = vector.extract_strided_slice %189 {offsets = [0, 256], sizes = [8, 128], strides = [1, 1]} : vector<8x384xf32> to vector<8x128xf32>
    %203 = vector.extract_strided_slice %191 {offsets = [0, 256], sizes = [8, 128], strides = [1, 1]} : vector<8x384xf32> to vector<8x128xf32>
    %204 = arith.addf %203, %13 : vector<8x128xf32>
    %205 = arith.mulf %200, %204 : vector<8x128xf32>
    %206 = arith.addf %202, %205 : vector<8x128xf32>
    %207 = math.tanh %206 : vector<8x128xf32>
    %cst_41 = arith.constant 1.000000e+00 : f32
    %208 = vector.broadcast %cst_41 : f32 to vector<8x128xf32>
    %209 = arith.subf %208, %201 : vector<8x128xf32>
    %210 = arith.mulf %209, %207 : vector<8x128xf32>
    %211 = arith.mulf %201, %188 : vector<8x128xf32>
    %212 = arith.addf %210, %211 : vector<8x128xf32>
    %213 = tpu.concatenate %44, %68, %92, %116, %140, %164, %188, %212 in 0 : vector<8x128xf32>, vector<8x128xf32>, vector<8x128xf32>, vector<8x128xf32>, vector<8x128xf32>, vector<8x128xf32>, vector<8x128xf32>, vector<8x128xf32> -> vector<64x128xf32>
    %214 = arith.truncf %213 : vector<64x128xf32> to vector<64x128xbf16>
    %cst_42 = arith.constant dense<0.000000e+00> : vector<64x384xf32>
    %215 = tpu.matmul %214, %10, %cst_42 {dimension_numbers = #tpu.dot_dimension_numbers<[1], [0], [0], [1], [0, 0, 1, 1], [], []>} : vector<64x128xbf16>, vector<128x384xbf16>, vector<64x384xf32> -> vector<64x384xf32>
    %216 = arith.addf %215, %19 : vector<64x384xf32>
    %cst_43 = arith.constant 0.000000e+00 : f32
    %217 = vector.broadcast %cst_43 : f32 to vector<8x128xf32>
    %218 = vector.extract_strided_slice %216 {offsets = [0, 0], sizes = [8, 384], strides = [1, 1]} : vector<64x384xf32> to vector<8x384xf32>
    %219 = arith.truncf %217 : vector<8x128xf32> to vector<8x128xbf16>
    %cst_44 = arith.constant dense<0.000000e+00> : vector<8x384xf32>
    %220 = tpu.matmul %219, %9, %cst_44 {dimension_numbers = #tpu.dot_dimension_numbers<[1], [0], [0], [1], [0, 0, 1, 1], [], []>} : vector<8x128xbf16>, vector<128x384xbf16>, vector<8x384xf32> -> vector<8x384xf32>
    %221 = vector.extract_strided_slice %218 {offsets = [0, 0], sizes = [8, 256], strides = [1, 1]} : vector<8x384xf32> to vector<8x256xf32>
    %222 = vector.extract_strided_slice %220 {offsets = [0, 0], sizes = [8, 256], strides = [1, 1]} : vector<8x384xf32> to vector<8x256xf32>
    %223 = arith.addf %221, %222 : vector<8x256xf32>
    %224 = arith.negf %223 : vector<8x256xf32>
    %225 = math.exp %224 : vector<8x256xf32>
    %cst_45 = arith.constant 1.000000e+00 : f32
    %226 = vector.broadcast %cst_45 : f32 to vector<8x256xf32>
    %227 = arith.addf %226, %225 : vector<8x256xf32>
    %228 = arith.divf %226, %227 : vector<8x256xf32>
    %229 = vector.extract_strided_slice %228 {offsets = [0, 0], sizes = [8, 128], strides = [1, 1]} : vector<8x256xf32> to vector<8x128xf32>
    %230 = vector.extract_strided_slice %228 {offsets = [0, 128], sizes = [8, 128], strides = [1, 1]} : vector<8x256xf32> to vector<8x128xf32>
    %231 = vector.extract_strided_slice %218 {offsets = [0, 256], sizes = [8, 128], strides = [1, 1]} : vector<8x384xf32> to vector<8x128xf32>
    %232 = vector.extract_strided_slice %220 {offsets = [0, 256], sizes = [8, 128], strides = [1, 1]} : vector<8x384xf32> to vector<8x128xf32>
    %233 = arith.addf %232, %16 : vector<8x128xf32>
    %234 = arith.mulf %229, %233 : vector<8x128xf32>
    %235 = arith.addf %231, %234 : vector<8x128xf32>
    %236 = math.tanh %235 : vector<8x128xf32>
    %cst_46 = arith.constant 1.000000e+00 : f32
    %237 = vector.broadcast %cst_46 : f32 to vector<8x128xf32>
    %238 = arith.subf %237, %230 : vector<8x128xf32>
    %239 = arith.mulf %238, %236 : vector<8x128xf32>
    %240 = arith.mulf %230, %217 : vector<8x128xf32>
    %241 = arith.addf %239, %240 : vector<8x128xf32>
    %242 = vector.extract_strided_slice %216 {offsets = [8, 0], sizes = [8, 384], strides = [1, 1]} : vector<64x384xf32> to vector<8x384xf32>
    %243 = arith.truncf %241 : vector<8x128xf32> to vector<8x128xbf16>
    %cst_47 = arith.constant dense<0.000000e+00> : vector<8x384xf32>
    %244 = tpu.matmul %243, %9, %cst_47 {dimension_numbers = #tpu.dot_dimension_numbers<[1], [0], [0], [1], [0, 0, 1, 1], [], []>} : vector<8x128xbf16>, vector<128x384xbf16>, vector<8x384xf32> -> vector<8x384xf32>
    %245 = vector.extract_strided_slice %242 {offsets = [0, 0], sizes = [8, 256], strides = [1, 1]} : vector<8x384xf32> to vector<8x256xf32>
    %246 = vector.extract_strided_slice %244 {offsets = [0, 0], sizes = [8, 256], strides = [1, 1]} : vector<8x384xf32> to vector<8x256xf32>
    %247 = arith.addf %245, %246 : vector<8x256xf32>
    %248 = arith.negf %247 : vector<8x256xf32>
    %249 = math.exp %248 : vector<8x256xf32>
    %cst_48 = arith.constant 1.000000e+00 : f32
    %250 = vector.broadcast %cst_48 : f32 to vector<8x256xf32>
    %251 = arith.addf %250, %249 : vector<8x256xf32>
    %252 = arith.divf %250, %251 : vector<8x256xf32>
    %253 = vector.extract_strided_slice %252 {offsets = [0, 0], sizes = [8, 128], strides = [1, 1]} : vector<8x256xf32> to vector<8x128xf32>
    %254 = vector.extract_strided_slice %252 {offsets = [0, 128], sizes = [8, 128], strides = [1, 1]} : vector<8x256xf32> to vector<8x128xf32>
    %255 = vector.extract_strided_slice %242 {offsets = [0, 256], sizes = [8, 128], strides = [1, 1]} : vector<8x384xf32> to vector<8x128xf32>
    %256 = vector.extract_strided_slice %244 {offsets = [0, 256], sizes = [8, 128], strides = [1, 1]} : vector<8x384xf32> to vector<8x128xf32>
    %257 = arith.addf %256, %16 : vector<8x128xf32>
    %258 = arith.mulf %253, %257 : vector<8x128xf32>
    %259 = arith.addf %255, %258 : vector<8x128xf32>
    %260 = math.tanh %259 : vector<8x128xf32>
    %cst_49 = arith.constant 1.000000e+00 : f32
    %261 = vector.broadcast %cst_49 : f32 to vector<8x128xf32>
    %262 = arith.subf %261, %254 : vector<8x128xf32>
    %263 = arith.mulf %262, %260 : vector<8x128xf32>
    %264 = arith.mulf %254, %241 : vector<8x128xf32>
    %265 = arith.addf %263, %264 : vector<8x128xf32>
    %266 = vector.extract_strided_slice %216 {offsets = [16, 0], sizes = [8, 384], strides = [1, 1]} : vector<64x384xf32> to vector<8x384xf32>
    %267 = arith.truncf %265 : vector<8x128xf32> to vector<8x128xbf16>
    %cst_50 = arith.constant dense<0.000000e+00> : vector<8x384xf32>
    %268 = tpu.matmul %267, %9, %cst_50 {dimension_numbers = #tpu.dot_dimension_numbers<[1], [0], [0], [1], [0, 0, 1, 1], [], []>} : vector<8x128xbf16>, vector<128x384xbf16>, vector<8x384xf32> -> vector<8x384xf32>
    %269 = vector.extract_strided_slice %266 {offsets = [0, 0], sizes = [8, 256], strides = [1, 1]} : vector<8x384xf32> to vector<8x256xf32>
    %270 = vector.extract_strided_slice %268 {offsets = [0, 0], sizes = [8, 256], strides = [1, 1]} : vector<8x384xf32> to vector<8x256xf32>
    %271 = arith.addf %269, %270 : vector<8x256xf32>
    %272 = arith.negf %271 : vector<8x256xf32>
    %273 = math.exp %272 : vector<8x256xf32>
    %cst_51 = arith.constant 1.000000e+00 : f32
    %274 = vector.broadcast %cst_51 : f32 to vector<8x256xf32>
    %275 = arith.addf %274, %273 : vector<8x256xf32>
    %276 = arith.divf %274, %275 : vector<8x256xf32>
    %277 = vector.extract_strided_slice %276 {offsets = [0, 0], sizes = [8, 128], strides = [1, 1]} : vector<8x256xf32> to vector<8x128xf32>
    %278 = vector.extract_strided_slice %276 {offsets = [0, 128], sizes = [8, 128], strides = [1, 1]} : vector<8x256xf32> to vector<8x128xf32>
    %279 = vector.extract_strided_slice %266 {offsets = [0, 256], sizes = [8, 128], strides = [1, 1]} : vector<8x384xf32> to vector<8x128xf32>
    %280 = vector.extract_strided_slice %268 {offsets = [0, 256], sizes = [8, 128], strides = [1, 1]} : vector<8x384xf32> to vector<8x128xf32>
    %281 = arith.addf %280, %16 : vector<8x128xf32>
    %282 = arith.mulf %277, %281 : vector<8x128xf32>
    %283 = arith.addf %279, %282 : vector<8x128xf32>
    %284 = math.tanh %283 : vector<8x128xf32>
    %cst_52 = arith.constant 1.000000e+00 : f32
    %285 = vector.broadcast %cst_52 : f32 to vector<8x128xf32>
    %286 = arith.subf %285, %278 : vector<8x128xf32>
    %287 = arith.mulf %286, %284 : vector<8x128xf32>
    %288 = arith.mulf %278, %265 : vector<8x128xf32>
    %289 = arith.addf %287, %288 : vector<8x128xf32>
    %290 = vector.extract_strided_slice %216 {offsets = [24, 0], sizes = [8, 384], strides = [1, 1]} : vector<64x384xf32> to vector<8x384xf32>
    %291 = arith.truncf %289 : vector<8x128xf32> to vector<8x128xbf16>
    %cst_53 = arith.constant dense<0.000000e+00> : vector<8x384xf32>
    %292 = tpu.matmul %291, %9, %cst_53 {dimension_numbers = #tpu.dot_dimension_numbers<[1], [0], [0], [1], [0, 0, 1, 1], [], []>} : vector<8x128xbf16>, vector<128x384xbf16>, vector<8x384xf32> -> vector<8x384xf32>
    %293 = vector.extract_strided_slice %290 {offsets = [0, 0], sizes = [8, 256], strides = [1, 1]} : vector<8x384xf32> to vector<8x256xf32>
    %294 = vector.extract_strided_slice %292 {offsets = [0, 0], sizes = [8, 256], strides = [1, 1]} : vector<8x384xf32> to vector<8x256xf32>
    %295 = arith.addf %293, %294 : vector<8x256xf32>
    %296 = arith.negf %295 : vector<8x256xf32>
    %297 = math.exp %296 : vector<8x256xf32>
    %cst_54 = arith.constant 1.000000e+00 : f32
    %298 = vector.broadcast %cst_54 : f32 to vector<8x256xf32>
    %299 = arith.addf %298, %297 : vector<8x256xf32>
    %300 = arith.divf %298, %299 : vector<8x256xf32>
    %301 = vector.extract_strided_slice %300 {offsets = [0, 0], sizes = [8, 128], strides = [1, 1]} : vector<8x256xf32> to vector<8x128xf32>
    %302 = vector.extract_strided_slice %300 {offsets = [0, 128], sizes = [8, 128], strides = [1, 1]} : vector<8x256xf32> to vector<8x128xf32>
    %303 = vector.extract_strided_slice %290 {offsets = [0, 256], sizes = [8, 128], strides = [1, 1]} : vector<8x384xf32> to vector<8x128xf32>
    %304 = vector.extract_strided_slice %292 {offsets = [0, 256], sizes = [8, 128], strides = [1, 1]} : vector<8x384xf32> to vector<8x128xf32>
    %305 = arith.addf %304, %16 : vector<8x128xf32>
    %306 = arith.mulf %301, %305 : vector<8x128xf32>
    %307 = arith.addf %303, %306 : vector<8x128xf32>
    %308 = math.tanh %307 : vector<8x128xf32>
    %cst_55 = arith.constant 1.000000e+00 : f32
    %309 = vector.broadcast %cst_55 : f32 to vector<8x128xf32>
    %310 = arith.subf %309, %302 : vector<8x128xf32>
    %311 = arith.mulf %310, %308 : vector<8x128xf32>
    %312 = arith.mulf %302, %289 : vector<8x128xf32>
    %313 = arith.addf %311, %312 : vector<8x128xf32>
    %314 = vector.extract_strided_slice %216 {offsets = [32, 0], sizes = [8, 384], strides = [1, 1]} : vector<64x384xf32> to vector<8x384xf32>
    %315 = arith.truncf %313 : vector<8x128xf32> to vector<8x128xbf16>
    %cst_56 = arith.constant dense<0.000000e+00> : vector<8x384xf32>
    %316 = tpu.matmul %315, %9, %cst_56 {dimension_numbers = #tpu.dot_dimension_numbers<[1], [0], [0], [1], [0, 0, 1, 1], [], []>} : vector<8x128xbf16>, vector<128x384xbf16>, vector<8x384xf32> -> vector<8x384xf32>
    %317 = vector.extract_strided_slice %314 {offsets = [0, 0], sizes = [8, 256], strides = [1, 1]} : vector<8x384xf32> to vector<8x256xf32>
    %318 = vector.extract_strided_slice %316 {offsets = [0, 0], sizes = [8, 256], strides = [1, 1]} : vector<8x384xf32> to vector<8x256xf32>
    %319 = arith.addf %317, %318 : vector<8x256xf32>
    %320 = arith.negf %319 : vector<8x256xf32>
    %321 = math.exp %320 : vector<8x256xf32>
    %cst_57 = arith.constant 1.000000e+00 : f32
    %322 = vector.broadcast %cst_57 : f32 to vector<8x256xf32>
    %323 = arith.addf %322, %321 : vector<8x256xf32>
    %324 = arith.divf %322, %323 : vector<8x256xf32>
    %325 = vector.extract_strided_slice %324 {offsets = [0, 0], sizes = [8, 128], strides = [1, 1]} : vector<8x256xf32> to vector<8x128xf32>
    %326 = vector.extract_strided_slice %324 {offsets = [0, 128], sizes = [8, 128], strides = [1, 1]} : vector<8x256xf32> to vector<8x128xf32>
    %327 = vector.extract_strided_slice %314 {offsets = [0, 256], sizes = [8, 128], strides = [1, 1]} : vector<8x384xf32> to vector<8x128xf32>
    %328 = vector.extract_strided_slice %316 {offsets = [0, 256], sizes = [8, 128], strides = [1, 1]} : vector<8x384xf32> to vector<8x128xf32>
    %329 = arith.addf %328, %16 : vector<8x128xf32>
    %330 = arith.mulf %325, %329 : vector<8x128xf32>
    %331 = arith.addf %327, %330 : vector<8x128xf32>
    %332 = math.tanh %331 : vector<8x128xf32>
    %cst_58 = arith.constant 1.000000e+00 : f32
    %333 = vector.broadcast %cst_58 : f32 to vector<8x128xf32>
    %334 = arith.subf %333, %326 : vector<8x128xf32>
    %335 = arith.mulf %334, %332 : vector<8x128xf32>
    %336 = arith.mulf %326, %313 : vector<8x128xf32>
    %337 = arith.addf %335, %336 : vector<8x128xf32>
    %338 = vector.extract_strided_slice %216 {offsets = [40, 0], sizes = [8, 384], strides = [1, 1]} : vector<64x384xf32> to vector<8x384xf32>
    %339 = arith.truncf %337 : vector<8x128xf32> to vector<8x128xbf16>
    %cst_59 = arith.constant dense<0.000000e+00> : vector<8x384xf32>
    %340 = tpu.matmul %339, %9, %cst_59 {dimension_numbers = #tpu.dot_dimension_numbers<[1], [0], [0], [1], [0, 0, 1, 1], [], []>} : vector<8x128xbf16>, vector<128x384xbf16>, vector<8x384xf32> -> vector<8x384xf32>
    %341 = vector.extract_strided_slice %338 {offsets = [0, 0], sizes = [8, 256], strides = [1, 1]} : vector<8x384xf32> to vector<8x256xf32>
    %342 = vector.extract_strided_slice %340 {offsets = [0, 0], sizes = [8, 256], strides = [1, 1]} : vector<8x384xf32> to vector<8x256xf32>
    %343 = arith.addf %341, %342 : vector<8x256xf32>
    %344 = arith.negf %343 : vector<8x256xf32>
    %345 = math.exp %344 : vector<8x256xf32>
    %cst_60 = arith.constant 1.000000e+00 : f32
    %346 = vector.broadcast %cst_60 : f32 to vector<8x256xf32>
    %347 = arith.addf %346, %345 : vector<8x256xf32>
    %348 = arith.divf %346, %347 : vector<8x256xf32>
    %349 = vector.extract_strided_slice %348 {offsets = [0, 0], sizes = [8, 128], strides = [1, 1]} : vector<8x256xf32> to vector<8x128xf32>
    %350 = vector.extract_strided_slice %348 {offsets = [0, 128], sizes = [8, 128], strides = [1, 1]} : vector<8x256xf32> to vector<8x128xf32>
    %351 = vector.extract_strided_slice %338 {offsets = [0, 256], sizes = [8, 128], strides = [1, 1]} : vector<8x384xf32> to vector<8x128xf32>
    %352 = vector.extract_strided_slice %340 {offsets = [0, 256], sizes = [8, 128], strides = [1, 1]} : vector<8x384xf32> to vector<8x128xf32>
    %353 = arith.addf %352, %16 : vector<8x128xf32>
    %354 = arith.mulf %349, %353 : vector<8x128xf32>
    %355 = arith.addf %351, %354 : vector<8x128xf32>
    %356 = math.tanh %355 : vector<8x128xf32>
    %cst_61 = arith.constant 1.000000e+00 : f32
    %357 = vector.broadcast %cst_61 : f32 to vector<8x128xf32>
    %358 = arith.subf %357, %350 : vector<8x128xf32>
    %359 = arith.mulf %358, %356 : vector<8x128xf32>
    %360 = arith.mulf %350, %337 : vector<8x128xf32>
    %361 = arith.addf %359, %360 : vector<8x128xf32>
    %362 = vector.extract_strided_slice %216 {offsets = [48, 0], sizes = [8, 384], strides = [1, 1]} : vector<64x384xf32> to vector<8x384xf32>
    %363 = arith.truncf %361 : vector<8x128xf32> to vector<8x128xbf16>
    %cst_62 = arith.constant dense<0.000000e+00> : vector<8x384xf32>
    %364 = tpu.matmul %363, %9, %cst_62 {dimension_numbers = #tpu.dot_dimension_numbers<[1], [0], [0], [1], [0, 0, 1, 1], [], []>} : vector<8x128xbf16>, vector<128x384xbf16>, vector<8x384xf32> -> vector<8x384xf32>
    %365 = vector.extract_strided_slice %362 {offsets = [0, 0], sizes = [8, 256], strides = [1, 1]} : vector<8x384xf32> to vector<8x256xf32>
    %366 = vector.extract_strided_slice %364 {offsets = [0, 0], sizes = [8, 256], strides = [1, 1]} : vector<8x384xf32> to vector<8x256xf32>
    %367 = arith.addf %365, %366 : vector<8x256xf32>
    %368 = arith.negf %367 : vector<8x256xf32>
    %369 = math.exp %368 : vector<8x256xf32>
    %cst_63 = arith.constant 1.000000e+00 : f32
    %370 = vector.broadcast %cst_63 : f32 to vector<8x256xf32>
    %371 = arith.addf %370, %369 : vector<8x256xf32>
    %372 = arith.divf %370, %371 : vector<8x256xf32>
    %373 = vector.extract_strided_slice %372 {offsets = [0, 0], sizes = [8, 128], strides = [1, 1]} : vector<8x256xf32> to vector<8x128xf32>
    %374 = vector.extract_strided_slice %372 {offsets = [0, 128], sizes = [8, 128], strides = [1, 1]} : vector<8x256xf32> to vector<8x128xf32>
    %375 = vector.extract_strided_slice %362 {offsets = [0, 256], sizes = [8, 128], strides = [1, 1]} : vector<8x384xf32> to vector<8x128xf32>
    %376 = vector.extract_strided_slice %364 {offsets = [0, 256], sizes = [8, 128], strides = [1, 1]} : vector<8x384xf32> to vector<8x128xf32>
    %377 = arith.addf %376, %16 : vector<8x128xf32>
    %378 = arith.mulf %373, %377 : vector<8x128xf32>
    %379 = arith.addf %375, %378 : vector<8x128xf32>
    %380 = math.tanh %379 : vector<8x128xf32>
    %cst_64 = arith.constant 1.000000e+00 : f32
    %381 = vector.broadcast %cst_64 : f32 to vector<8x128xf32>
    %382 = arith.subf %381, %374 : vector<8x128xf32>
    %383 = arith.mulf %382, %380 : vector<8x128xf32>
    %384 = arith.mulf %374, %361 : vector<8x128xf32>
    %385 = arith.addf %383, %384 : vector<8x128xf32>
    %386 = vector.extract_strided_slice %216 {offsets = [56, 0], sizes = [8, 384], strides = [1, 1]} : vector<64x384xf32> to vector<8x384xf32>
    %387 = arith.truncf %385 : vector<8x128xf32> to vector<8x128xbf16>
    %cst_65 = arith.constant dense<0.000000e+00> : vector<8x384xf32>
    %388 = tpu.matmul %387, %9, %cst_65 {dimension_numbers = #tpu.dot_dimension_numbers<[1], [0], [0], [1], [0, 0, 1, 1], [], []>} : vector<8x128xbf16>, vector<128x384xbf16>, vector<8x384xf32> -> vector<8x384xf32>
    %389 = vector.extract_strided_slice %386 {offsets = [0, 0], sizes = [8, 256], strides = [1, 1]} : vector<8x384xf32> to vector<8x256xf32>
    %390 = vector.extract_strided_slice %388 {offsets = [0, 0], sizes = [8, 256], strides = [1, 1]} : vector<8x384xf32> to vector<8x256xf32>
    %391 = arith.addf %389, %390 : vector<8x256xf32>
    %392 = arith.negf %391 : vector<8x256xf32>
    %393 = math.exp %392 : vector<8x256xf32>
    %cst_66 = arith.constant 1.000000e+00 : f32
    %394 = vector.broadcast %cst_66 : f32 to vector<8x256xf32>
    %395 = arith.addf %394, %393 : vector<8x256xf32>
    %396 = arith.divf %394, %395 : vector<8x256xf32>
    %397 = vector.extract_strided_slice %396 {offsets = [0, 0], sizes = [8, 128], strides = [1, 1]} : vector<8x256xf32> to vector<8x128xf32>
    %398 = vector.extract_strided_slice %396 {offsets = [0, 128], sizes = [8, 128], strides = [1, 1]} : vector<8x256xf32> to vector<8x128xf32>
    %399 = vector.extract_strided_slice %386 {offsets = [0, 256], sizes = [8, 128], strides = [1, 1]} : vector<8x384xf32> to vector<8x128xf32>
    %400 = vector.extract_strided_slice %388 {offsets = [0, 256], sizes = [8, 128], strides = [1, 1]} : vector<8x384xf32> to vector<8x128xf32>
    %401 = arith.addf %400, %16 : vector<8x128xf32>
    %402 = arith.mulf %397, %401 : vector<8x128xf32>
    %403 = arith.addf %399, %402 : vector<8x128xf32>
    %404 = math.tanh %403 : vector<8x128xf32>
    %cst_67 = arith.constant 1.000000e+00 : f32
    %405 = vector.broadcast %cst_67 : f32 to vector<8x128xf32>
    %406 = arith.subf %405, %398 : vector<8x128xf32>
    %407 = arith.mulf %406, %404 : vector<8x128xf32>
    %408 = arith.mulf %398, %385 : vector<8x128xf32>
    %409 = arith.addf %407, %408 : vector<8x128xf32>
    %410 = arith.truncf %409 : vector<8x128xf32> to vector<8x128xbf16>
    %c0_68 = arith.constant 0 : index
    %c0_69 = arith.constant 0 : index
    %411 = vector.load %arg9[%c0_68, %c0_69] : memref<128x128xbf16, #tpu.memory_space<vmem>>, vector<128x128xbf16>
    %cst_70 = arith.constant dense<0.000000e+00> : vector<8x128xf32>
    %412 = tpu.matmul %410, %411, %cst_70 {dimension_numbers = #tpu.dot_dimension_numbers<[1], [0], [0], [1], [0, 0, 1, 1], [], []>} : vector<8x128xbf16>, vector<128x128xbf16>, vector<8x128xf32> -> vector<8x128xf32>
    %c0_71 = arith.constant 0 : index
    %c0_72 = arith.constant 0 : index
    %413 = vector.load %arg10[%c0_71, %c0_72] : memref<1x128xf32, #tpu.memory_space<vmem>>, vector<1x128xf32>
    %414 = vector.shape_cast %413 : vector<1x128xf32> to vector<1x128xf32>
    %415 = vector.broadcast %414 : vector<1x128xf32> to vector<8x128xf32>
    %416 = arith.addf %412, %415 : vector<8x128xf32>
    %c0_73 = arith.constant 0 : index
    %c0_74 = arith.constant 0 : index
    %417 = vector.load %arg11[%c0_73, %c0_74] : memref<8x128xf32, #tpu.memory_space<vmem>>, vector<8x128xf32>
    tpu.vector_store %arg11[%c0_73, %c0_74], %416 {strides = array<i32>} : memref<8x128xf32, #tpu.memory_space<vmem>>, vector<8x128xf32>,
    return
  }
}

</mosaic_0001>

<llo_original>
// kernel: gru_forward.1
$region0: #{gru_forward.1}
  #allocation0 [shape = 'u32[]', space=smem, size = 0x4, offset = 0x4, fixed_abs, tag = 'smem constant byte address 0x4 - core index']
  #allocation1 [shape = 'u32[144,128]{1,0:T(1,128)}', space=vmem, size = 0x12000, scoped, tag = 'internal scratch']
  %s0 = inlined_call_operand.vmem [shape: f32[64,128], index: 0, kind: input, shape index: {}]
  %s1 = inlined_call_operand.hbm [shape: bf16[128,384], index: 1, kind: input, shape index: {}]
  %s2 = inlined_call_operand.vmem [shape: f32[1,384], index: 2, kind: input, shape index: {}]
  %s3 = inlined_call_operand.hbm [shape: bf16[128,384], index: 3, kind: input, shape index: {}]
  %s4 = inlined_call_operand.vmem [shape: f32[1,128], index: 4, kind: input, shape index: {}]
  %s5 = inlined_call_operand.hbm [shape: bf16[128,384], index: 5, kind: input, shape index: {}]
  %s6 = inlined_call_operand.vmem [shape: f32[1,384], index: 6, kind: input, shape index: {}]
  %s7 = inlined_call_operand.hbm [shape: bf16[128,384], index: 7, kind: input, shape index: {}]
  %s8 = inlined_call_operand.vmem [shape: f32[1,128], index: 8, kind: input, shape index: {}]
  %s9 = inlined_call_operand.vmem [shape: bf16[128,128], index: 9, kind: input, shape index: {}]
  %s10 = inlined_call_operand.vmem [shape: f32[1,128], index: 10, kind: input, shape index: {}]
  %s11 = inlined_call_operand.vmem [shape: f32[8,128], index: 11, kind: output, shape index: {}]
  %s12 = sld [smem:[#allocation0]]
  $region70: #{gru_forward.1} parent=0
    _
  %s14 = ssub.s32 1, %s12
  %s15 = scalar_select 0, %s14, %s12
  $region1: #{gru_forward.1} parent=0
    #allocation2 [shape = 'u8[98304]{0}', space=vmem, size = 0x18000, scoped, tag = 'input window, operand 1, single buffered']
    #allocation3 [shape = 's32[1]{0}', space=sflag, size = 0x4, scoped, tag = 'scoped memory for gru_forward.1']
    #allocation4 [shape = 'u8[98304]{0}', space=vmem, size = 0x18000, scoped, tag = 'input window, operand 3, single buffered']
    #allocation5 [shape = 's32[1]{0}', space=sflag, size = 0x4, scoped, tag = 'scoped memory for gru_forward.1']
    #allocation6 [shape = 'u8[98304]{0}', space=vmem, size = 0x18000, scoped, tag = 'input window, operand 5, single buffered']
    #allocation7 [shape = 'u8[98304]{0}', space=vmem, size = 0x18000, scoped, tag = 'input window, operand 7, single buffered']
    #allocation8 [shape = 's32[1]{0}', space=sflag, size = 0x4, scoped, tag = 'scoped memory for gru_forward.1']
    %16 = vsyncpa [#allocation3], 0
    %17 = vsyncpa [#allocation5], 0
    %18 = vsyncpa [#allocation8], 0
    // Predicated region
    $region2: #{gru_forward.1} parent=1 // pred_check
      _
    $region3: #{gru_forward.1} parent=1 // pred_check_branch
      %20 = sbr.rel (0) target = $region5
    $region4: #{gru_forward.1} parent=1 // pred_region
      _
    $region5: #{gru_forward.1} parent=1 // pred_fallthru
      _
    // Predicated region
    $region6: #{gru_forward.1} parent=1 // pred_check
      _
    $region7: #{gru_forward.1} parent=1 // pred_check_branch
      %22 = sbr.rel (0) target = $region9
    $region8: #{gru_forward.1} parent=1 // pred_region
      %s24 = ssub.s32 3072, 3072
      %25 = vsyncadd [#allocation3], %s24
      %s26 = sshll.u32 [#allocation2], 4
      %s27 = int_to_ptr.vmem [resolvable:$true] %s26
      %32 = dma.hbm_to_vmem [thread:$0]  %s1, 3072, %s27, [#allocation3], 192, 192, 12
    $region9: #{gru_forward.1} parent=1 // pred_fallthru
      _
    // Predicated region
    $region10: #{gru_forward.1} parent=1 // pred_check
      _
    $region11: #{gru_forward.1} parent=1 // pred_check_branch
      %34 = sbr.rel (0) target = $region13
    $region12: #{gru_forward.1} parent=1 // pred_region
      _
    $region13: #{gru_forward.1} parent=1 // pred_fallthru
      _
    // Predicated region
    $region14: #{gru_forward.1} parent=1 // pred_check
      _
    $region15: #{gru_forward.1} parent=1 // pred_check_branch
      %36 = sbr.rel (0) target = $region17
    $region16: #{gru_forward.1} parent=1 // pred_region
      %s38 = ssub.s32 3072, 3072
      %39 = vsyncadd [#allocation5], %s38
      %s40 = sshll.u32 [#allocation4], 4
      %s41 = int_to_ptr.vmem [resolvable:$true] %s40
      %46 = dma.hbm_to_vmem [thread:$0]  %s3, 3072, %s41, [#allocation5], 192, 192, 12
    $region17: #{gru_forward.1} parent=1 // pred_fallthru
      _
    // Predicated region
    $region18: #{gru_forward.1} parent=1 // pred_check
      _
    $region19: #{gru_forward.1} parent=1 // pred_check_branch
      %48 = sbr.rel (0) target = $region21
    $region20: #{gru_forward.1} parent=1 // pred_region
      _
    $region21: #{gru_forward.1} parent=1 // pred_fallthru
      _
    // Predicated region
    $region22: #{gru_forward.1} parent=1 // pred_check
      _
    $region23: #{gru_forward.1} parent=1 // pred_check_branch
      %50 = sbr.rel (0) target = $region25
    $region24: #{gru_forward.1} parent=1 // pred_region
      %s52 = ssub.s32 3072, 3072
      %53 = vsyncadd [#allocation5], %s52
      %s54 = sshll.u32 [#allocation6], 4
      %s55 = int_to_ptr.vmem [resolvable:$true] %s54
      %60 = dma.hbm_to_vmem [thread:$0]  %s5, 3072, %s55, [#allocation5], 192, 192, 12
    $region25: #{gru_forward.1} parent=1 // pred_fallthru
      _
    // Predicated region
    $region26: #{gru_forward.1} parent=1 // pred_check
      _
    $region27: #{gru_forward.1} parent=1 // pred_check_branch
      %62 = sbr.rel (0) target = $region29
    $region28: #{gru_forward.1} parent=1 // pred_region
      _
    $region29: #{gru_forward.1} parent=1 // pred_fallthru
      _
    // Predicated region
    $region30: #{gru_forward.1} parent=1 // pred_check
      _
    $region31: #{gru_forward.1} parent=1 // pred_check_branch
      %64 = sbr.rel (0) target = $region33
    $region32: #{gru_forward.1} parent=1 // pred_region
      %s66 = ssub.s32 3072, 3072
      %67 = vsyncadd [#allocation8], %s66
      %s68 = sshll.u32 [#allocation7], 4
      %s69 = int_to_ptr.vmem [resolvable:$true] %s68
      %74 = dma.hbm_to_vmem [thread:$0]  %s7, 3072, %s69, [#allocation8], 192, 192, 12
    $region33: #{gru_forward.1} parent=1 // pred_fallthru
      _
    // Predicated region
    $region34: #{gru_forward.1} parent=1 // pred_check
      _
    $region35: #{gru_forward.1} parent=1 // pred_check_branch
      %76 = sbr.rel (0) target = $region37
    $region36: #{gru_forward.1} parent=1 // pred_region
      _
    $region37: #{gru_forward.1} parent=1 // pred_fallthru
      _
    // Predicated region
    $region38: #{gru_forward.1} parent=1 // pred_check
      _
    $region39: #{gru_forward.1} parent=1 // pred_check_branch
      %78 = sbr.rel (0) target = $region41
    $region40: #{gru_forward.1} parent=1 // pred_region
      _
    $region41: #{gru_forward.1} parent=1 // pred_fallthru
      _
    // Predicated region
    $region42: #{gru_forward.1} parent=1 // pred_check
      _
    $region43: #{gru_forward.1} parent=1 // pred_check_branch
      %80 = sbr.rel (0) target = $region45
    $region44: #{gru_forward.1} parent=1 // pred_region
      _
    $region45: #{gru_forward.1} parent=1 // pred_fallthru
      _
    // Predicated region
    $region46: #{gru_forward.1} parent=1 // pred_check
      _
    $region47: #{gru_forward.1} parent=1 // pred_check_branch
      %82 = sbr.rel (0) target = $region49
    $region48: #{gru_forward.1} parent=1 // pred_region
      %83 = dma.done [#allocation3], 3072
    $region49: #{gru_forward.1} parent=1 // pred_fallthru
      _
    // Predicated region
    $region50: #{gru_forward.1} parent=1 // pred_check
      _
    $region51: #{gru_forward.1} parent=1 // pred_check_branch
      %85 = sbr.rel (0) target = $region53
    $region52: #{gru_forward.1} parent=1 // pred_region
      %86 = dma.done [#allocation5], 3072
    $region53: #{gru_forward.1} parent=1 // pred_fallthru
      _
    // Predicated region
    $region54: #{gru_forward.1} parent=1 // pred_check
      _
    $region55: #{gru_forward.1} parent=1 // pred_check_branch
      %88 = sbr.rel (0) target = $region57
    $region56: #{gru_forward.1} parent=1 // pred_region
      %89 = dma.done [#allocation5], 3072
    $region57: #{gru_forward.1} parent=1 // pred_fallthru
      _
    // Predicated region
    $region58: #{gru_forward.1} parent=1 // pred_check
      _
    $region59: #{gru_forward.1} parent=1 // pred_check_branch
      %91 = sbr.rel (0) target = $region61
    $region60: #{gru_forward.1} parent=1 // pred_region
      %92 = dma.done [#allocation8], 3072
    $region61: #{gru_forward.1} parent=1 // pred_fallthru
      _
    %v94 = vld [vmem:[%s0] sm:$0xff]
    %v95 = vld [vmem:[%s0 + $0x8] sm:$0xff]
    %v96 = vld [vmem:[%s0 + $0x10] sm:$0xff]
    %v97 = vld [vmem:[%s0 + $0x18] sm:$0xff]
    %v98 = vld [vmem:[%s0 + $0x20] sm:$0xff]
    %v99 = vld [vmem:[%s0 + $0x28] sm:$0xff]
    %v100 = vld [vmem:[%s0 + $0x30] sm:$0xff]
    %v101 = vld [vmem:[%s0 + $0x38] sm:$0xff]
    %v102 = vpack.c.bf16 %v95, %v94
    %v103 = vpack.c.bf16 %v97, %v96
    %v104 = vpack.c.bf16 %v99, %v98
    %v105 = vpack.c.bf16 %v101, %v100
    %v106 = vld [vmem:[#allocation2] sm:$0xff]
    %v107 = vld [vmem:[#allocation2 + $0x8] sm:$0xf]
    %v108 = vld [vmem:[#allocation2 + $0xc] sm:$0xff]
    %v109 = vld [vmem:[#allocation2 + $0x14] sm:$0xf]
    %v110 = vld [vmem:[#allocation2 + $0x18] sm:$0xff]
    %v111 = vld [vmem:[#allocation2 + $0x20] sm:$0xf]
    %v112 = vld [vmem:[#allocation2 + $0x24] sm:$0xff]
    %v113 = vld [vmem:[#allocation2 + $0x2c] sm:$0xf]
    %v114 = vld [vmem:[#allocation2 + $0x30] sm:$0xff]
    %v115 = vld [vmem:[#allocation2 + $0x38] sm:$0xf]
    %v116 = vld [vmem:[#allocation2 + $0x3c] sm:$0xff]
    %v117 = vld [vmem:[#allocation2 + $0x44] sm:$0xf]
    %v118 = vld [vmem:[#allocation2 + $0x48] sm:$0xff]
    %v119 = vld [vmem:[#allocation2 + $0x50] sm:$0xf]
    %v120 = vld [vmem:[#allocation2 + $0x54] sm:$0xff]
    %v121 = vld [vmem:[#allocation2 + $0x5c] sm:$0xf]
    %v122 = vld [vmem:[#allocation2 + $0x60] sm:$0xff]
    %v123 = vld [vmem:[#allocation2 + $0x68] sm:$0xf]
    %v124 = vld [vmem:[#allocation2 + $0x6c] sm:$0xff]
    %v125 = vld [vmem:[#allocation2 + $0x74] sm:$0xf]
    %v126 = vld [vmem:[#allocation2 + $0x78] sm:$0xff]
    %v127 = vld [vmem:[#allocation2 + $0x80] sm:$0xf]
    %v128 = vld [vmem:[#allocation2 + $0x84] sm:$0xff]
    %v129 = vld [vmem:[#allocation2 + $0x8c] sm:$0xf]
    %v130 = vld [vmem:[#allocation2 + $0x90] sm:$0xff]
    %v131 = vld [vmem:[#allocation2 + $0x98] sm:$0xf]
    %v132 = vld [vmem:[#allocation2 + $0x9c] sm:$0xff]
    %v133 = vld [vmem:[#allocation2 + $0xa4] sm:$0xf]
    %v134 = vld [vmem:[#allocation2 + $0xa8] sm:$0xff]
    %v135 = vld [vmem:[#allocation2 + $0xb0] sm:$0xf]
    %v136 = vld [vmem:[#allocation2 + $0xb4] sm:$0xff]
    %v137 = vld [vmem:[#allocation2 + $0xbc] sm:$0xf]
    %v138 = vld [vmem:[%s2] sm:$0x7]
    %v140 = vlaneseq
    %v141 = vshrl.u32 %v140, 7
    %v142 = vsub.s32 0, %v141
    %v143 = vrot.slane %v138, %v142
    %v144 = vlaneseq
    %v145 = vshrl.u32 %v144, 7
    %v146 = vsub.s32 1, %v145
    %v147 = vrot.slane %v138, %v146
    %v148 = vlaneseq
    %v149 = vshrl.u32 %v148, 7
    %v150 = vsub.s32 2, %v149
    %v151 = vrot.slane %v138, %v150
    %v187 = vunpack.c.l.b16 %v106
    %v188 = vunpack.c.h.b16 %v106
    %v189 = vunpack.c.l.b16 %v107
    %v190 = vunpack.c.l.b16 %v108
    %v191 = vunpack.c.h.b16 %v108
    %v192 = vunpack.c.l.b16 %v109
    %v193 = vunpack.c.l.b16 %v110
    %v194 = vunpack.c.h.b16 %v110
    %v195 = vunpack.c.l.b16 %v111
    %v196 = vunpack.c.l.b16 %v112
    %v197 = vunpack.c.h.b16 %v112
    %v198 = vunpack.c.l.b16 %v113
    %v199 = vunpack.c.l.b16 %v114
    %v200 = vunpack.c.h.b16 %v114
    %v201 = vunpack.c.l.b16 %v115
    %v202 = vunpack.c.l.b16 %v116
    %v203 = vunpack.c.h.b16 %v116
    %v204 = vunpack.c.l.b16 %v117
    %v205 = vunpack.c.l.b16 %v118
    %v206 = vunpack.c.h.b16 %v118
    %v207 = vunpack.c.l.b16 %v119
    %v208 = vunpack.c.l.b16 %v120
    %v209 = vunpack.c.h.b16 %v120
    %v210 = vunpack.c.l.b16 %v121
    %v211 = vunpack.c.l.b16 %v122
    %v212 = vunpack.c.h.b16 %v122
    %v213 = vunpack.c.l.b16 %v123
    %v214 = vunpack.c.l.b16 %v124
    %v215 = vunpack.c.h.b16 %v124
    %v216 = vunpack.c.l.b16 %v125
    %v217 = vunpack.c.l.b16 %v126
    %v218 = vunpack.c.h.b16 %v126
    %v219 = vunpack.c.l.b16 %v127
    %v220 = vunpack.c.l.b16 %v128
    %v221 = vunpack.c.h.b16 %v128
    %v222 = vunpack.c.l.b16 %v129
    %v223 = vunpack.c.l.b16 %v130
    %v224 = vunpack.c.h.b16 %v130
    %v225 = vunpack.c.l.b16 %v131
    %v226 = vunpack.c.l.b16 %v132
    %v227 = vunpack.c.h.b16 %v132
    %v228 = vunpack.c.l.b16 %v133
    %v229 = vunpack.c.l.b16 %v134
    %v230 = vunpack.c.h.b16 %v134
    %v231 = vunpack.c.l.b16 %v135
    %v232 = vunpack.c.l.b16 %v136
    %v233 = vunpack.c.h.b16 %v136
    %v234 = vunpack.c.l.b16 %v137
    %v235 = vpack.c.b16 %v190, %v187
    %v236 = vpack.c.b16 %v191, %v188
    %v237 = vpack.c.b16 %v192, %v189
    %v238 = vpack.c.b16 %v196, %v193
    %v239 = vpack.c.b16 %v197, %v194
    %v240 = vpack.c.b16 %v198, %v195
    %v241 = vpack.c.b16 %v202, %v199
    %v242 = vpack.c.b16 %v203, %v200
    %v243 = vpack.c.b16 %v204, %v201
    %v244 = vpack.c.b16 %v208, %v205
    %v245 = vpack.c.b16 %v209, %v206
    %v246 = vpack.c.b16 %v210, %v207
    %v247 = vpack.c.b16 %v214, %v211
    %v248 = vpack.c.b16 %v215, %v212
    %v249 = vpack.c.b16 %v216, %v213
    %v250 = vpack.c.b16 %v220, %v217
    %v251 = vpack.c.b16 %v221, %v218
    %v252 = vpack.c.b16 %v222, %v219
    %v253 = vpack.c.b16 %v226, %v223
    %v254 = vpack.c.b16 %v227, %v224
    %v255 = vpack.c.b16 %v228, %v225
    %v256 = vpack.c.b16 %v232, %v229
    %v257 = vpack.c.b16 %v233, %v230
    %v258 = vpack.c.b16 %v234, %v231
    %283 = vmatprep.subr.bf16.mxu0 %v257
    %284 = vmatpush1.bf16.msra.mxu0 %v256
    %285 = vmatprep.subr.bf16.mxu0 %v254
    %286 = vmatpush1.bf16.msra.mxu0 %v253
    %287 = vmatprep.subr.bf16.mxu0 %v251
    %288 = vmatpush1.bf16.msra.mxu0 %v250
    %289 = vmatprep.subr.bf16.mxu0 %v248
    %290 = vmatpush1.bf16.msra.mxu0 %v247
    %291 = vmatprep.subr.bf16.mxu0 %v245
    %292 = vmatpush1.bf16.msra.mxu0 %v244
    %293 = vmatprep.subr.bf16.mxu0 %v242
    %294 = vmatpush1.bf16.msra.mxu0 %v241
    %295 = vmatprep.subr.bf16.mxu0 %v239
    %296 = vmatpush1.bf16.msra.mxu0 %v238
    %297 = vmatprep.subr.bf16.mxu0 %v236
    %298 = vmatpush1.bf16.msra.mxu0 %v235
    %299 = vmatprep.subr.bf16.mxu0 0
    %300 = vmatpush2.bf16.msra.mxu0 0
    %301 = vmatprep.subr.bf16.mxu0 0
    %302 = vmatpush2.bf16.msra.mxu0 0
    %303 = vmatprep.subr.bf16.mxu0 0
    %304 = vmatpush2.bf16.msra.mxu0 0
    %305 = vmatprep.subr.bf16.mxu0 0
    %306 = vmatpush2.bf16.msra.mxu0 0
    %307 = vmatprep.subr.bf16.mxu0 0
    %308 = vmatpush2.bf16.msra.mxu0 0
    %309 = vmatprep.subr.bf16.mxu0 0
    %310 = vmatpush2.bf16.msra.mxu0 0
    %311 = vmatprep.subr.bf16.mxu0 0
    %312 = vmatpush2.bf16.msra.mxu0 0
    %313 = vmatprep.subr.bf16.mxu0 0
    %314 = vmatpush2.bf16.msra.mxu0 0
    %315 = vmatprep.mubr.bf16.mxu0 0
    %316 = vmatmul.mubr.bf16.gmra.mxu0 %v102
    %v317 = vpop.f32.mrf.mxu0
    %v318 = vadd.f32 %v143, %v317
    %v319 = vpop.f32.mrf.mxu0
    %v320 = vadd.f32 %v147, %v319
    %v321 = vpop.f32.mrf.mxu0
    %v322 = vadd.f32 %v143, %v321
    %v323 = vpop.f32.mrf.mxu0
    %v324 = vadd.f32 %v147, %v323
    %325 = vmatprep.mubr.bf16.mxu0 0
    %326 = vmatmul.mubr.bf16.gmra.mxu0 %v103
    %v327 = vpop.f32.mrf.mxu0
    %v328 = vadd.f32 %v143, %v327
    %v329 = vpop.f32.mrf.mxu0
    %v330 = vadd.f32 %v147, %v329
    %v331 = vpop.f32.mrf.mxu0
    %v332 = vadd.f32 %v143, %v331
    %v333 = vpop.f32.mrf.mxu0
    %v334 = vadd.f32 %v147, %v333
    %335 = vmatprep.mubr.bf16.mxu0 0
    %336 = vmatmul.mubr.bf16.gmra.mxu0 %v104
    %v337 = vpop.f32.mrf.mxu0
    %v338 = vadd.f32 %v143, %v337
    %v339 = vpop.f32.mrf.mxu0
    %v340 = vadd.f32 %v147, %v339
    %v341 = vpop.f32.mrf.mxu0
    %v342 = vadd.f32 %v143, %v341
    %v343 = vpop.f32.mrf.mxu0
    %v344 = vadd.f32 %v147, %v343
    %345 = vmatprep.mubr.bf16.mxu0 0
    %346 = vmatmul.mubr.bf16.gmra.mxu0 %v105
    %v347 = vpop.f32.mrf.mxu0
    %v348 = vadd.f32 %v143, %v347
    %v349 = vpop.f32.mrf.mxu0
    %v350 = vadd.f32 %v147, %v349
    %v351 = vpop.f32.mrf.mxu0
    %v352 = vadd.f32 %v143, %v351
    %v353 = vpop.f32.mrf.mxu0
    %v354 = vadd.f32 %v147, %v353
    %355 = vdwg.mxu0
    %356 = vmatprep.subr.bf16.mxu0 0
    %357 = vmatpush1.bf16.msra.mxu0 %v258
    %358 = vmatprep.subr.bf16.mxu0 0
    %359 = vmatpush1.bf16.msra.mxu0 %v255
    %360 = vmatprep.subr.bf16.mxu0 0
    %361 = vmatpush1.bf16.msra.mxu0 %v252
    %362 = vmatprep.subr.bf16.mxu0 0
    %363 = vmatpush1.bf16.msra.mxu0 %v249
    %364 = vmatprep.subr.bf16.mxu0 0
    %365 = vmatpush1.bf16.msra.mxu0 %v246
    %366 = vmatprep.subr.bf16.mxu0 0
    %367 = vmatpush1.bf16.msra.mxu0 %v243
    %368 = vmatprep.subr.bf16.mxu0 0
    %369 = vmatpush1.bf16.msra.mxu0 %v240
    %370 = vmatprep.subr.bf16.mxu0 0
    %371 = vmatpush1.bf16.msra.mxu0 %v237
    %372 = vmatprep.subr.bf16.mxu0 0
    %373 = vmatpush2.bf16.msra.mxu0 0
    %374 = vmatprep.subr.bf16.mxu0 0
    %375 = vmatpush2.bf16.msra.mxu0 0
    %376 = vmatprep.subr.bf16.mxu0 0
    %377 = vmatpush2.bf16.msra.mxu0 0
    %378 = vmatprep.subr.bf16.mxu0 0
    %379 = vmatpush2.bf16.msra.mxu0 0
    %380 = vmatprep.subr.bf16.mxu0 0
    %381 = vmatpush2.bf16.msra.mxu0 0
    %382 = vmatprep.subr.bf16.mxu0 0
    %383 = vmatpush2.bf16.msra.mxu0 0
    %384 = vmatprep.subr.bf16.mxu0 0
    %385 = vmatpush2.bf16.msra.mxu0 0
    %386 = vmatprep.subr.bf16.mxu0 0
    %387 = vmatpush2.bf16.msra.mxu0 0
    %388 = vmatprep.mubr.bf16.mxu0 0
    %389 = vmatmul.mubr.bf16.gmra.mxu0 %v102
    %v390 = vpop.f32.mrf.mxu0
    %v391 = vadd.f32 %v151, %v390
    %v392 = vpop.f32.mrf.mxu0
    %v393 = vpop.f32.mrf.mxu0
    %v394 = vadd.f32 %v151, %v393
    %v395 = vpop.f32.mrf.mxu0
    %396 = vmatprep.mubr.bf16.mxu0 0
    %397 = vmatmul.mubr.bf16.gmra.mxu0 %v103
    %v398 = vpop.f32.mrf.mxu0
    %v399 = vadd.f32 %v151, %v398
    %v400 = vpop.f32.mrf.mxu0
    %v401 = vpop.f32.mrf.mxu0
    %v402 = vadd.f32 %v151, %v401
    %v403 = vpop.f32.mrf.mxu0
    %404 = vmatprep.mubr.bf16.mxu0 0
    %405 = vmatmul.mubr.bf16.gmra.mxu0 %v104
    %v406 = vpop.f32.mrf.mxu0
    %v407 = vadd.f32 %v151, %v406
    %v408 = vpop.f32.mrf.mxu0
    %v409 = vpop.f32.mrf.mxu0
    %v410 = vadd.f32 %v151, %v409
    %v411 = vpop.f32.mrf.mxu0
    %412 = vmatprep.mubr.bf16.mxu0 0
    %413 = vmatmul.mubr.bf16.gmra.mxu0 %v105
    %v414 = vpop.f32.mrf.mxu0
    %v415 = vadd.f32 %v151, %v414
    %v416 = vpop.f32.mrf.mxu0
    %v417 = vpop.f32.mrf.mxu0
    %v418 = vadd.f32 %v151, %v417
    %v419 = vpop.f32.mrf.mxu0
    %420 = vdwg.mxu0
    %v421 = vld [vmem:[#allocation4] sm:$0xff]
    %v422 = vld [vmem:[#allocation4 + $0x8] sm:$0xf]
    %v423 = vld [vmem:[#allocation4 + $0xc] sm:$0xff]
    %v424 = vld [vmem:[#allocation4 + $0x14] sm:$0xf]
    %v425 = vld [vmem:[#allocation4 + $0x18] sm:$0xff]
    %v426 = vld [vmem:[#allocation4 + $0x20] sm:$0xf]
    %v427 = vld [vmem:[#allocation4 + $0x24] sm:$0xff]
    %v428 = vld [vmem:[#allocation4 + $0x2c] sm:$0xf]
    %v429 = vld [vmem:[#allocation4 + $0x30] sm:$0xff]
    %v430 = vld [vmem:[#allocation4 + $0x38] sm:$0xf]
    %v431 = vld [vmem:[#allocation4 + $0x3c] sm:$0xff]
    %v432 = vld [vmem:[#allocation4 + $0x44] sm:$0xf]
    %v433 = vld [vmem:[#allocation4 + $0x48] sm:$0xff]
    %v434 = vld [vmem:[#allocation4 + $0x50] sm:$0xf]
    %v435 = vld [vmem:[#allocation4 + $0x54] sm:$0xff]
    %v436 = vld [vmem:[#allocation4 + $0x5c] sm:$0xf]
    %v437 = vld [vmem:[#allocation4 + $0x60] sm:$0xff]
    %v438 = vld [vmem:[#allocation4 + $0x68] sm:$0xf]
    %v439 = vld [vmem:[#allocation4 + $0x6c] sm:$0xff]
    %v440 = vld [vmem:[#allocation4 + $0x74] sm:$0xf]
    %v441 = vld [vmem:[#allocation4 + $0x78] sm:$0xff]
    %v442 = vld [vmem:[#allocation4 + $0x80] sm:$0xf]
    %v443 = vld [vmem:[#allocation4 + $0x84] sm:$0xff]
    %v444 = vld [vmem:[#allocation4 + $0x8c] sm:$0xf]
    %v445 = vld [vmem:[#allocation4 + $0x90] sm:$0xff]
    %v446 = vld [vmem:[#allocation4 + $0x98] sm:$0xf]
    %v447 = vld [vmem:[#allocation4 + $0x9c] sm:$0xff]
    %v448 = vld [vmem:[#allocation4 + $0xa4] sm:$0xf]
    %v449 = vld [vmem:[#allocation4 + $0xa8] sm:$0xff]
    %v450 = vld [vmem:[#allocation4 + $0xb0] sm:$0xf]
    %v451 = vld [vmem:[#allocation4 + $0xb4] sm:$0xff]
    %v452 = vld [vmem:[#allocation4 + $0xbc] sm:$0xf]
    %v453 = vld [vmem:[#allocation7] sm:$0xff]
    %v454 = vld [vmem:[#allocation7 + $0x8] sm:$0xf]
    %v455 = vld [vmem:[#allocation7 + $0xc] sm:$0xff]
    %v456 = vld [vmem:[#allocation7 + $0x14] sm:$0xf]
    %v457 = vld [vmem:[#allocation7 + $0x18] sm:$0xff]
    %v458 = vld [vmem:[#allocation7 + $0x20] sm:$0xf]
    %v459 = vld [vmem:[#allocation7 + $0x24] sm:$0xff]
    %v460 = vld [vmem:[#allocation7 + $0x2c] sm:$0xf]
    %v461 = vld [vmem:[#allocation7 + $0x30] sm:$0xff]
    %v462 = vld [vmem:[#allocation7 + $0x38] sm:$0xf]
    %v463 = vld [vmem:[#allocation7 + $0x3c] sm:$0xff]
    %v464 = vld [vmem:[#allocation7 + $0x44] sm:$0xf]
    %v465 = vld [vmem:[#allocation7 + $0x48] sm:$0xff]
    %v466 = vld [vmem:[#allocation7 + $0x50] sm:$0xf]
    %v467 = vld [vmem:[#allocation7 + $0x54] sm:$0xff]
    %v468 = vld [vmem:[#allocation7 + $0x5c] sm:$0xf]
    %v469 = vld [vmem:[#allocation7 + $0x60] sm:$0xff]
    %v470 = vld [vmem:[#allocation7 + $0x68] sm:$0xf]
    %v471 = vld [vmem:[#allocation7 + $0x6c] sm:$0xff]
    %v472 = vld [vmem:[#allocation7 + $0x74] sm:$0xf]
    %v473 = vld [vmem:[#allocation7 + $0x78] sm:$0xff]
    %v474 = vld [vmem:[#allocation7 + $0x80] sm:$0xf]
    %v475 = vld [vmem:[#allocation7 + $0x84] sm:$0xff]
    %v476 = vld [vmem:[#allocation7 + $0x8c] sm:$0xf]
    %v477 = vld [vmem:[#allocation7 + $0x90] sm:$0xff]
    %v478 = vld [vmem:[#allocation7 + $0x98] sm:$0xf]
    %v479 = vld [vmem:[#allocation7 + $0x9c] sm:$0xff]
    %v480 = vld [vmem:[#allocation7 + $0xa4] sm:$0xf]
    %v481 = vld [vmem:[#allocation7 + $0xa8] sm:$0xff]
    %v482 = vld [vmem:[#allocation7 + $0xb0] sm:$0xf]
    %v483 = vld [vmem:[#allocation7 + $0xb4] sm:$0xff]
    %v484 = vld [vmem:[#allocation7 + $0xbc] sm:$0xf]
    %v485 = vld [vmem:[#allocation6] sm:$0xff]
    %v486 = vld [vmem:[#allocation6 + $0x8] sm:$0xf]
    %v487 = vld [vmem:[#allocation6 + $0xc] sm:$0xff]
    %v488 = vld [vmem:[#allocation6 + $0x14] sm:$0xf]
    %v489 = vld [vmem:[#allocation6 + $0x18] sm:$0xff]
    %v490 = vld [vmem:[#allocation6 + $0x20] sm:$0xf]
    %v491 = vld [vmem:[#allocation6 + $0x24] sm:$0xff]
    %v492 = vld [vmem:[#allocation6 + $0x2c] sm:$0xf]
    %v493 = vld [vmem:[#allocation6 + $0x30] sm:$0xff]
    %v494 = vld [vmem:[#allocation6 + $0x38] sm:$0xf]
    %v495 = vld [vmem:[#allocation6 + $0x3c] sm:$0xff]
    %v496 = vld [vmem:[#allocation6 + $0x44] sm:$0xf]
    %v497 = vld [vmem:[#allocation6 + $0x48] sm:$0xff]
    %v498 = vld [vmem:[#allocation6 + $0x50] sm:$0xf]
    %v499 = vld [vmem:[#allocation6 + $0x54] sm:$0xff]
    %v500 = vld [vmem:[#allocation6 + $0x5c] sm:$0xf]
    %v501 = vld [vmem:[#allocation6 + $0x60] sm:$0xff]
    %v502 = vld [vmem:[#allocation6 + $0x68] sm:$0xf]
    %v503 = vld [vmem:[#allocation6 + $0x6c] sm:$0xff]
    %v504 = vld [vmem:[#allocation6 + $0x74] sm:$0xf]
    %v505 = vld [vmem:[#allocation6 + $0x78] sm:$0xff]
    %v506 = vld [vmem:[#allocation6 + $0x80] sm:$0xf]
    %v507 = vld [vmem:[#allocation6 + $0x84] sm:$0xff]
    %v508 = vld [vmem:[#allocation6 + $0x8c] sm:$0xf]
    %v509 = vld [vmem:[#allocation6 + $0x90] sm:$0xff]
    %v510 = vld [vmem:[#allocation6 + $0x98] sm:$0xf]
    %v511 = vld [vmem:[#allocation6 + $0x9c] sm:$0xff]
    %v512 = vld [vmem:[#allocation6 + $0xa4] sm:$0xf]
    %v513 = vld [vmem:[#allocation6 + $0xa8] sm:$0xff]
    %v514 = vld [vmem:[#allocation6 + $0xb0] sm:$0xf]
    %v515 = vld [vmem:[#allocation6 + $0xb4] sm:$0xff]
    %v516 = vld [vmem:[#allocation6 + $0xbc] sm:$0xf]
    %v517 = vld [vmem:[%s4] sm:$0x1]
    %v519 = vlaneseq
    %v520 = vshrl.u32 %v519, 7
    %v521 = vsub.s32 0, %v520
    %v522 = vrot.slane %v517, %v521
    %v524 = vld [vmem:[%s8] sm:$0x1]
    %v526 = vlaneseq
    %v527 = vshrl.u32 %v526, 7
    %v528 = vsub.s32 0, %v527
    %v529 = vrot.slane %v524, %v528
    %v531 = vld [vmem:[%s6] sm:$0x7]
    %v533 = vlaneseq
    %v534 = vshrl.u32 %v533, 7
    %v535 = vsub.s32 0, %v534
    %v536 = vrot.slane %v531, %v535
    %v537 = vlaneseq
    %v538 = vshrl.u32 %v537, 7
    %v539 = vsub.s32 1, %v538
    %v540 = vrot.slane %v531, %v539
    %v541 = vlaneseq
    %v542 = vshrl.u32 %v541, 7
    %v543 = vsub.s32 2, %v542
    %v544 = vrot.slane %v531, %v543
    %v580 = vunpack.c.l.b16 %v421
    %v581 = vunpack.c.h.b16 %v421
    %v582 = vunpack.c.l.b16 %v422
    %v583 = vunpack.c.l.b16 %v423
    %v584 = vunpack.c.h.b16 %v423
    %v585 = vunpack.c.l.b16 %v424
    %v586 = vunpack.c.l.b16 %v425
    %v587 = vunpack.c.h.b16 %v425
    %v588 = vunpack.c.l.b16 %v426
    %v589 = vunpack.c.l.b16 %v427
    %v590 = vunpack.c.h.b16 %v427
    %v591 = vunpack.c.l.b16 %v428
    %v592 = vunpack.c.l.b16 %v429
    %v593 = vunpack.c.h.b16 %v429
    %v594 = vunpack.c.l.b16 %v430
    %v595 = vunpack.c.l.b16 %v431
    %v596 = vunpack.c.h.b16 %v431
    %v597 = vunpack.c.l.b16 %v432
    %v598 = vunpack.c.l.b16 %v433
    %v599 = vunpack.c.h.b16 %v433
    %v600 = vunpack.c.l.b16 %v434
    %v601 = vunpack.c.l.b16 %v435
    %v602 = vunpack.c.h.b16 %v435
    %v603 = vunpack.c.l.b16 %v436
    %v604 = vunpack.c.l.b16 %v437
    %v605 = vunpack.c.h.b16 %v437
    %v606 = vunpack.c.l.b16 %v438
    %v607 = vunpack.c.l.b16 %v439
    %v608 = vunpack.c.h.b16 %v439
    %v609 = vunpack.c.l.b16 %v440
    %v610 = vunpack.c.l.b16 %v441
    %v611 = vunpack.c.h.b16 %v441
    %v612 = vunpack.c.l.b16 %v442
    %v613 = vunpack.c.l.b16 %v443
    %v614 = vunpack.c.h.b16 %v443
    %v615 = vunpack.c.l.b16 %v444
    %v616 = vunpack.c.l.b16 %v445
    %v617 = vunpack.c.h.b16 %v445
    %v618 = vunpack.c.l.b16 %v446
    %v619 = vunpack.c.l.b16 %v447
    %v620 = vunpack.c.h.b16 %v447
    %v621 = vunpack.c.l.b16 %v448
    %v622 = vunpack.c.l.b16 %v449
    %v623 = vunpack.c.h.b16 %v449
    %v624 = vunpack.c.l.b16 %v450
    %v625 = vunpack.c.l.b16 %v451
    %v626 = vunpack.c.h.b16 %v451
    %v627 = vunpack.c.l.b16 %v452
    %v628 = vpack.c.b16 %v583, %v580
    %v629 = vpack.c.b16 %v584, %v581
    %v630 = vpack.c.b16 %v585, %v582
    %v631 = vpack.c.b16 %v589, %v586
    %v632 = vpack.c.b16 %v590, %v587
    %v633 = vpack.c.b16 %v591, %v588
    %v634 = vpack.c.b16 %v595, %v592
    %v635 = vpack.c.b16 %v596, %v593
    %v636 = vpack.c.b16 %v597, %v594
    %v637 = vpack.c.b16 %v601, %v598
    %v638 = vpack.c.b16 %v602, %v599
    %v639 = vpack.c.b16 %v603, %v600
    %v640 = vpack.c.b16 %v607, %v604
    %v641 = vpack.c.b16 %v608, %v605
    %v642 = vpack.c.b16 %v609, %v606
    %v643 = vpack.c.b16 %v613, %v610
    %v644 = vpack.c.b16 %v614, %v611
    %v645 = vpack.c.b16 %v615, %v612
    %v646 = vpack.c.b16 %v619, %v616
    %v647 = vpack.c.b16 %v620, %v617
    %v648 = vpack.c.b16 %v621, %v618
    %v649 = vpack.c.b16 %v625, %v622
    %v650 = vpack.c.b16 %v626, %v623
    %v651 = vpack.c.b16 %v627, %v624
    %676 = vmatprep.subr.bf16.mxu0 %v650
    %677 = vmatpush1.bf16.msra.mxu0 %v649
    %678 = vmatprep.subr.bf16.mxu0 %v647
    %679 = vmatpush1.bf16.msra.mxu0 %v646
    %680 = vmatprep.subr.bf16.mxu0 %v644
    %681 = vmatpush1.bf16.msra.mxu0 %v643
    %682 = vmatprep.subr.bf16.mxu0 %v641
    %683 = vmatpush1.bf16.msra.mxu0 %v640
    %684 = vmatprep.subr.bf16.mxu0 %v638
    %685 = vmatpush1.bf16.msra.mxu0 %v637
    %686 = vmatprep.subr.bf16.mxu0 %v635
    %687 = vmatpush1.bf16.msra.mxu0 %v634
    %688 = vmatprep.subr.bf16.mxu0 %v632
    %689 = vmatpush1.bf16.msra.mxu0 %v631
    %690 = vmatprep.subr.bf16.mxu0 %v629
    %691 = vmatpush1.bf16.msra.mxu0 %v628
    %692 = vmatprep.subr.bf16.mxu0 0
    %693 = vmatpush2.bf16.msra.mxu0 0
    %694 = vmatprep.subr.bf16.mxu0 0
    %695 = vmatpush2.bf16.msra.mxu0 0
    %696 = vmatprep.subr.bf16.mxu0 0
    %697 = vmatpush2.bf16.msra.mxu0 0
    %698 = vmatprep.subr.bf16.mxu0 0
    %699 = vmatpush2.bf16.msra.mxu0 0
    %700 = vmatprep.subr.bf16.mxu0 0
    %701 = vmatpush2.bf16.msra.mxu0 0
    %702 = vmatprep.subr.bf16.mxu0 0
    %703 = vmatpush2.bf16.msra.mxu0 0
    %704 = vmatprep.subr.bf16.mxu0 0
    %705 = vmatpush2.bf16.msra.mxu0 0
    %706 = vmatprep.subr.bf16.mxu0 0
    %707 = vmatpush2.bf16.msra.mxu0 0
    %708 = vmatprep.mubr.bf16.mxu0 0
    %709 = vmatmul.mubr.bf16.gmra.mxu0 0
    %v710 = vpop.f32.mrf.mxu0
    %v711 = vadd.f32 0.0, %v710
    %v712 = vpop.f32.mrf.mxu0
    %v713 = vadd.f32 0.0, %v712
    %v714 = vpop.f32.mrf.mxu0
    %v715 = vpop.f32.mrf.mxu0
    %716 = vdwg.mxu0
    %717 = vmatprep.subr.bf16.mxu0 0
    %718 = vmatpush1.bf16.msra.mxu0 %v651
    %719 = vmatprep.subr.bf16.mxu0 0
    %720 = vmatpush1.bf16.msra.mxu0 %v648
    %721 = vmatprep.subr.bf16.mxu0 0
    %722 = vmatpush1.bf16.msra.mxu0 %v645
    %723 = vmatprep.subr.bf16.mxu0 0
    %724 = vmatpush1.bf16.msra.mxu0 %v642
    %725 = vmatprep.subr.bf16.mxu0 0
    %726 = vmatpush1.bf16.msra.mxu0 %v639
    %727 = vmatprep.subr.bf16.mxu0 0
    %728 = vmatpush1.bf16.msra.mxu0 %v636
    %729 = vmatprep.subr.bf16.mxu0 0
    %730 = vmatpush1.bf16.msra.mxu0 %v633
    %731 = vmatprep.subr.bf16.mxu0 0
    %732 = vmatpush1.bf16.msra.mxu0 %v630
    %733 = vmatprep.subr.bf16.mxu0 0
    %734 = vmatpush2.bf16.msra.mxu0 0
    %735 = vmatprep.subr.bf16.mxu0 0
    %736 = vmatpush2.bf16.msra.mxu0 0
    %737 = vmatprep.subr.bf16.mxu0 0
    %738 = vmatpush2.bf16.msra.mxu0 0
    %739 = vmatprep.subr.bf16.mxu0 0
    %740 = vmatpush2.bf16.msra.mxu0 0
    %741 = vmatprep.subr.bf16.mxu0 0
    %742 = vmatpush2.bf16.msra.mxu0 0
    %743 = vmatprep.subr.bf16.mxu0 0
    %744 = vmatpush2.bf16.msra.mxu0 0
    %745 = vmatprep.subr.bf16.mxu0 0
    %746 = vmatpush2.bf16.msra.mxu0 0
    %747 = vmatprep.subr.bf16.mxu0 0
    %748 = vmatpush2.bf16.msra.mxu0 0
    %749 = vmatprep.mubr.bf16.mxu0 0
    %750 = vmatmul.mubr.bf16.gmra.mxu0 0
    %v751 = vpop.f32.mrf.mxu0
    %v752 = vadd.f32 0.0, %v751
    %v753 = vpop.f32.mrf.mxu0
    %v754 = vpop.f32.mrf.mxu0
    %v755 = vpop.f32.mrf.mxu0
    %756 = vdwg.mxu0
    %v757 = vadd.f32 %v318, %v711
    %v758 = vadd.f32 %v320, %v713
    %v759 = vxor.u32 %v757, 2147483648
    %v760 = vxor.u32 %v758, 2147483648
    %v761 = vmul.f32 %v759, 1.442695
    %v762 = vpow.pop %v761
    %v763 = vmul.f32 %v760, 1.442695
    %v764 = vpow.pop %v763
    %v765 = vadd.f32 %v762, 1.0
    %v766 = vadd.f32 %v764, 1.0
    %v767 = vrcp.pop %v765
    %v768 = vmul.f32 1.0, %v767
    %v769 = vrcp.pop %v766
    %v770 = vmul.f32 1.0, %v769
    %v771 = vadd.f32 %v752, %v522
    %v772 = vmul.f32 %v768, %v771
    %v773 = vadd.f32 %v391, %v772
    %v774 = vtanh.pop %v773
    %v775 = vsub.f32 1.0, %v770
    %v776 = vmul.f32 %v775, %v774
    %v777 = vmul.f32 %v770, 0.0
    %v778 = vadd.f32 %v776, %v777
    %v779 = vpack.c.bf16 %v778, %v778
    %780 = vmatprep.subr.bf16.mxu0 %v650
    %781 = vmatpush1.bf16.msra.mxu0 %v649
    %782 = vmatprep.subr.bf16.mxu0 %v647
    %783 = vmatpush1.bf16.msra.mxu0 %v646
    %784 = vmatprep.subr.bf16.mxu0 %v644
    %785 = vmatpush1.bf16.msra.mxu0 %v643
    %786 = vmatprep.subr.bf16.mxu0 %v641
    %787 = vmatpush1.bf16.msra.mxu0 %v640
    %788 = vmatprep.subr.bf16.mxu0 %v638
    %789 = vmatpush1.bf16.msra.mxu0 %v637
    %790 = vmatprep.subr.bf16.mxu0 %v635
    %791 = vmatpush1.bf16.msra.mxu0 %v634
    %792 = vmatprep.subr.bf16.mxu0 %v632
    %793 = vmatpush1.bf16.msra.mxu0 %v631
    %794 = vmatprep.subr.bf16.mxu0 %v629
    %795 = vmatpush1.bf16.msra.mxu0 %v628
    %796 = vmatprep.subr.bf16.mxu0 0
    %797 = vmatpush2.bf16.msra.mxu0 0
    %798 = vmatprep.subr.bf16.mxu0 0
    %799 = vmatpush2.bf16.msra.mxu0 0
    %800 = vmatprep.subr.bf16.mxu0 0
    %801 = vmatpush2.bf16.msra.mxu0 0
    %802 = vmatprep.subr.bf16.mxu0 0
    %803 = vmatpush2.bf16.msra.mxu0 0
    %804 = vmatprep.subr.bf16.mxu0 0
    %805 = vmatpush2.bf16.msra.mxu0 0
    %806 = vmatprep.subr.bf16.mxu0 0
    %807 = vmatpush2.bf16.msra.mxu0 0
    %808 = vmatprep.subr.bf16.mxu0 0
    %809 = vmatpush2.bf16.msra.mxu0 0
    %810 = vmatprep.subr.bf16.mxu0 0
    %811 = vmatpush2.bf16.msra.mxu0 0
    %812 = vmatprep.mubr.bf16.mxu0 0
    %813 = vmatmul.mubr.bf16.gmra.mxu0 %v779
    %v814 = vpop.f32.mrf.mxu0
    %v815 = vadd.f32 0.0, %v814
    %v816 = vpop.f32.mrf.mxu0
    %v817 = vadd.f32 0.0, %v816
    %v818 = vpop.f32.mrf.mxu0
    %v819 = vpop.f32.mrf.mxu0
    %820 = vdwg.mxu0
    %821 = vmatprep.subr.bf16.mxu0 0
    %822 = vmatpush1.bf16.msra.mxu0 %v651
    %823 = vmatprep.subr.bf16.mxu0 0
    %824 = vmatpush1.bf16.msra.mxu0 %v648
    %825 = vmatprep.subr.bf16.mxu0 0
    %826 = vmatpush1.bf16.msra.mxu0 %v645
    %827 = vmatprep.subr.bf16.mxu0 0
    %828 = vmatpush1.bf16.msra.mxu0 %v642
    %829 = vmatprep.subr.bf16.mxu0 0
    %830 = vmatpush1.bf16.msra.mxu0 %v639
    %831 = vmatprep.subr.bf16.mxu0 0
    %832 = vmatpush1.bf16.msra.mxu0 %v636
    %833 = vmatprep.subr.bf16.mxu0 0
    %834 = vmatpush1.bf16.msra.mxu0 %v633
    %835 = vmatprep.subr.bf16.mxu0 0
    %836 = vmatpush1.bf16.msra.mxu0 %v630
    %837 = vmatprep.subr.bf16.mxu0 0
    %838 = vmatpush2.bf16.msra.mxu0 0
    %839 = vmatprep.subr.bf16.mxu0 0
    %840 = vmatpush2.bf16.msra.mxu0 0
    %841 = vmatprep.subr.bf16.mxu0 0
    %842 = vmatpush2.bf16.msra.mxu0 0
    %843 = vmatprep.subr.bf16.mxu0 0
    %844 = vmatpush2.bf16.msra.mxu0 0
    %845 = vmatprep.subr.bf16.mxu0 0
    %846 = vmatpush2.bf16.msra.mxu0 0
    %847 = vmatprep.subr.bf16.mxu0 0
    %848 = vmatpush2.bf16.msra.mxu0 0
    %849 = vmatprep.subr.bf16.mxu0 0
    %850 = vmatpush2.bf16.msra.mxu0 0
    %851 = vmatprep.subr.bf16.mxu0 0
    %852 = vmatpush2.bf16.msra.mxu0 0
    %853 = vmatprep.mubr.bf16.mxu0 0
    %854 = vmatmul.mubr.bf16.gmra.mxu0 %v779
    %v855 = vpop.f32.mrf.mxu0
    %v856 = vadd.f32 0.0, %v855
    %v857 = vpop.f32.mrf.mxu0
    %v858 = vpop.f32.mrf.mxu0
    %v859 = vpop.f32.mrf.mxu0
    %860 = vdwg.mxu0
    %v861 = vadd.f32 %v322, %v815
    %v862 = vadd.f32 %v324, %v817
    %v863 = vxor.u32 %v861, 2147483648
    %v864 = vxor.u32 %v862, 2147483648
    %v865 = vmul.f32 %v863, 1.442695
    %v866 = vpow.pop %v865
    %v867 = vmul.f32 %v864, 1.442695
    %v868 = vpow.pop %v867
    %v869 = vadd.f32 %v866, 1.0
    %v870 = vadd.f32 %v868, 1.0
    %v871 = vrcp.pop %v869
    %v872 = vmul.f32 1.0, %v871
    %v873 = vrcp.pop %v870
    %v874 = vmul.f32 1.0, %v873
    %v875 = vadd.f32 %v856, %v522
    %v876 = vmul.f32 %v872, %v875
    %v877 = vadd.f32 %v394, %v876
    %v878 = vtanh.pop %v877
    %v879 = vsub.f32 1.0, %v874
    %v880 = vmul.f32 %v879, %v878
    %v881 = vmul.f32 %v874, %v778
    %v882 = vadd.f32 %v880, %v881
    %v883 = vpack.c.bf16 %v882, %v882
    %884 = vmatprep.subr.bf16.mxu0 %v650
    %885 = vmatpush1.bf16.msra.mxu0 %v649
    %886 = vmatprep.subr.bf16.mxu0 %v647
    %887 = vmatpush1.bf16.msra.mxu0 %v646
    %888 = vmatprep.subr.bf16.mxu0 %v644
    %889 = vmatpush1.bf16.msra.mxu0 %v643
    %890 = vmatprep.subr.bf16.mxu0 %v641
    %891 = vmatpush1.bf16.msra.mxu0 %v640
    %892 = vmatprep.subr.bf16.mxu0 %v638
    %893 = vmatpush1.bf16.msra.mxu0 %v637
    %894 = vmatprep.subr.bf16.mxu0 %v635
    %895 = vmatpush1.bf16.msra.mxu0 %v634
    %896 = vmatprep.subr.bf16.mxu0 %v632
    %897 = vmatpush1.bf16.msra.mxu0 %v631
    %898 = vmatprep.subr.bf16.mxu0 %v629
    %899 = vmatpush1.bf16.msra.mxu0 %v628
    %900 = vmatprep.subr.bf16.mxu0 0
    %901 = vmatpush2.bf16.msra.mxu0 0
    %902 = vmatprep.subr.bf16.mxu0 0
    %903 = vmatpush2.bf16.msra.mxu0 0
    %904 = vmatprep.subr.bf16.mxu0 0
    %905 = vmatpush2.bf16.msra.mxu0 0
    %906 = vmatprep.subr.bf16.mxu0 0
    %907 = vmatpush2.bf16.msra.mxu0 0
    %908 = vmatprep.subr.bf16.mxu0 0
    %909 = vmatpush2.bf16.msra.mxu0 0
    %910 = vmatprep.subr.bf16.mxu0 0
    %911 = vmatpush2.bf16.msra.mxu0 0
    %912 = vmatprep.subr.bf16.mxu0 0
    %913 = vmatpush2.bf16.msra.mxu0 0
    %914 = vmatprep.subr.bf16.mxu0 0
    %915 = vmatpush2.bf16.msra.mxu0 0
    %916 = vmatprep.mubr.bf16.mxu0 0
    %917 = vmatmul.mubr.bf16.gmra.mxu0 %v883
    %v918 = vpop.f32.mrf.mxu0
    %v919 = vadd.f32 0.0, %v918
    %v920 = vpop.f32.mrf.mxu0
    %v921 = vadd.f32 0.0, %v920
    %v922 = vpop.f32.mrf.mxu0
    %v923 = vpop.f32.mrf.mxu0
    %924 = vdwg.mxu0
    %925 = vmatprep.subr.bf16.mxu0 0
    %926 = vmatpush1.bf16.msra.mxu0 %v651
    %927 = vmatprep.subr.bf16.mxu0 0
    %928 = vmatpush1.bf16.msra.mxu0 %v648
    %929 = vmatprep.subr.bf16.mxu0 0
    %930 = vmatpush1.bf16.msra.mxu0 %v645
    %931 = vmatprep.subr.bf16.mxu0 0
    %932 = vmatpush1.bf16.msra.mxu0 %v642
    %933 = vmatprep.subr.bf16.mxu0 0
    %934 = vmatpush1.bf16.msra.mxu0 %v639
    %935 = vmatprep.subr.bf16.mxu0 0
    %936 = vmatpush1.bf16.msra.mxu0 %v636
    %937 = vmatprep.subr.bf16.mxu0 0
    %938 = vmatpush1.bf16.msra.mxu0 %v633
    %939 = vmatprep.subr.bf16.mxu0 0
    %940 = vmatpush1.bf16.msra.mxu0 %v630
    %941 = vmatprep.subr.bf16.mxu0 0
    %942 = vmatpush2.bf16.msra.mxu0 0
    %943 = vmatprep.subr.bf16.mxu0 0
    %944 = vmatpush2.bf16.msra.mxu0 0
    %945 = vmatprep.subr.bf16.mxu0 0
    %946 = vmatpush2.bf16.msra.mxu0 0
    %947 = vmatprep.subr.bf16.mxu0 0
    %948 = vmatpush2.bf16.msra.mxu0 0
    %949 = vmatprep.subr.bf16.mxu0 0
    %950 = vmatpush2.bf16.msra.mxu0 0
    %951 = vmatprep.subr.bf16.mxu0 0
    %952 = vmatpush2.bf16.msra.mxu0 0
    %953 = vmatprep.subr.bf16.mxu0 0
    %954 = vmatpush2.bf16.msra.mxu0 0
    %955 = vmatprep.subr.bf16.mxu0 0
    %956 = vmatpush2.bf16.msra.mxu0 0
    %957 = vmatprep.mubr.bf16.mxu0 0
    %958 = vmatmul.mubr.bf16.gmra.mxu0 %v883
    %v959 = vpop.f32.mrf.mxu0
    %v960 = vadd.f32 0.0, %v959
    %v961 = vpop.f32.mrf.mxu0
    %v962 = vpop.f32.mrf.mxu0
    %v963 = vpop.f32.mrf.mxu0
    %964 = vdwg.mxu0
    %v965 = vadd.f32 %v328, %v919
    %v966 = vadd.f32 %v330, %v921
    %v967 = vxor.u32 %v965, 2147483648
    %v968 = vxor.u32 %v966, 2147483648
    %v969 = vmul.f32 %v967, 1.442695
    %v970 = vpow.pop %v969
    %v971 = vmul.f32 %v968, 1.442695
    %v972 = vpow.pop %v971
    %v973 = vadd.f32 %v970, 1.0
    %v974 = vadd.f32 %v972, 1.0
    %v975 = vrcp.pop %v973
    %v976 = vmul.f32 1.0, %v975
    %v977 = vrcp.pop %v974
    %v978 = vmul.f32 1.0, %v977
    %v979 = vadd.f32 %v960, %v522
    %v980 = vmul.f32 %v976, %v979
    %v981 = vadd.f32 %v399, %v980
    %v982 = vtanh.pop %v981
    %v983 = vsub.f32 1.0, %v978
    %v984 = vmul.f32 %v983, %v982
    %v985 = vmul.f32 %v978, %v882
    %v986 = vadd.f32 %v984, %v985
    %v987 = vpack.c.bf16 %v986, %v986
    %988 = vmatprep.subr.bf16.mxu0 %v650
    %989 = vmatpush1.bf16.msra.mxu0 %v649
    %990 = vmatprep.subr.bf16.mxu0 %v647
    %991 = vmatpush1.bf16.msra.mxu0 %v646
    %992 = vmatprep.subr.bf16.mxu0 %v644
    %993 = vmatpush1.bf16.msra.mxu0 %v643
    %994 = vmatprep.subr.bf16.mxu0 %v641
    %995 = vmatpush1.bf16.msra.mxu0 %v640
    %996 = vmatprep.subr.bf16.mxu0 %v638
    %997 = vmatpush1.bf16.msra.mxu0 %v637
    %998 = vmatprep.subr.bf16.mxu0 %v635
    %999 = vmatpush1.bf16.msra.mxu0 %v634
    %1000 = vmatprep.subr.bf16.mxu0 %v632
    %1001 = vmatpush1.bf16.msra.mxu0 %v631
    %1002 = vmatprep.subr.bf16.mxu0 %v629
    %1003 = vmatpush1.bf16.msra.mxu0 %v628
    %1004 = vmatprep.subr.bf16.mxu0 0
    %1005 = vmatpush2.bf16.msra.mxu0 0
    %1006 = vmatprep.subr.bf16.mxu0 0
    %1007 = vmatpush2.bf16.msra.mxu0 0
    %1008 = vmatprep.subr.bf16.mxu0 0
    %1009 = vmatpush2.bf16.msra.mxu0 0
    %1010 = vmatprep.subr.bf16.mxu0 0
    %1011 = vmatpush2.bf16.msra.mxu0 0
    %1012 = vmatprep.subr.bf16.mxu0 0
    %1013 = vmatpush2.bf16.msra.mxu0 0
    %1014 = vmatprep.subr.bf16.mxu0 0
    %1015 = vmatpush2.bf16.msra.mxu0 0
    %1016 = vmatprep.subr.bf16.mxu0 0
    %1017 = vmatpush2.bf16.msra.mxu0 0
    %1018 = vmatprep.subr.bf16.mxu0 0
    %1019 = vmatpush2.bf16.msra.mxu0 0
    %1020 = vmatprep.mubr.bf16.mxu0 0
    %1021 = vmatmul.mubr.bf16.gmra.mxu0 %v987
    %v1022 = vpop.f32.mrf.mxu0
    %v1023 = vadd.f32 0.0, %v1022
    %v1024 = vpop.f32.mrf.mxu0
    %v1025 = vadd.f32 0.0, %v1024
    %v1026 = vpop.f32.mrf.mxu0
    %v1027 = vpop.f32.mrf.mxu0
    %1028 = vdwg.mxu0
    %1029 = vmatprep.subr.bf16.mxu0 0
    %1030 = vmatpush1.bf16.msra.mxu0 %v651
    %1031 = vmatprep.subr.bf16.mxu0 0
    %1032 = vmatpush1.bf16.msra.mxu0 %v648
    %1033 = vmatprep.subr.bf16.mxu0 0
    %1034 = vmatpush1.bf16.msra.mxu0 %v645
    %1035 = vmatprep.subr.bf16.mxu0 0
    %1036 = vmatpush1.bf16.msra.mxu0 %v642
    %1037 = vmatprep.subr.bf16.mxu0 0
    %1038 = vmatpush1.bf16.msra.mxu0 %v639
    %1039 = vmatprep.subr.bf16.mxu0 0
    %1040 = vmatpush1.bf16.msra.mxu0 %v636
    %1041 = vmatprep.subr.bf16.mxu0 0
    %1042 = vmatpush1.bf16.msra.mxu0 %v633
    %1043 = vmatprep.subr.bf16.mxu0 0
    %1044 = vmatpush1.bf16.msra.mxu0 %v630
    %1045 = vmatprep.subr.bf16.mxu0 0
    %1046 = vmatpush2.bf16.msra.mxu0 0
    %1047 = vmatprep.subr.bf16.mxu0 0
    %1048 = vmatpush2.bf16.msra.mxu0 0
    %1049 = vmatprep.subr.bf16.mxu0 0
    %1050 = vmatpush2.bf16.msra.mxu0 0
    %1051 = vmatprep.subr.bf16.mxu0 0
    %1052 = vmatpush2.bf16.msra.mxu0 0
    %1053 = vmatprep.subr.bf16.mxu0 0
    %1054 = vmatpush2.bf16.msra.mxu0 0
    %1055 = vmatprep.subr.bf16.mxu0 0
    %1056 = vmatpush2.bf16.msra.mxu0 0
    %1057 = vmatprep.subr.bf16.mxu0 0
    %1058 = vmatpush2.bf16.msra.mxu0 0
    %1059 = vmatprep.subr.bf16.mxu0 0
    %1060 = vmatpush2.bf16.msra.mxu0 0
    %1061 = vmatprep.mubr.bf16.mxu0 0
    %1062 = vmatmul.mubr.bf16.gmra.mxu0 %v987
    %v1063 = vpop.f32.mrf.mxu0
    %v1064 = vadd.f32 0.0, %v1063
    %v1065 = vpop.f32.mrf.mxu0
    %v1066 = vpop.f32.mrf.mxu0
    %v1067 = vpop.f32.mrf.mxu0
    %1068 = vdwg.mxu0
    %v1069 = vadd.f32 %v332, %v1023
    %v1070 = vadd.f32 %v334, %v1025
    %v1071 = vxor.u32 %v1069, 2147483648
    %v1072 = vxor.u32 %v1070, 2147483648
    %v1073 = vmul.f32 %v1071, 1.442695
    %v1074 = vpow.pop %v1073
    %v1075 = vmul.f32 %v1072, 1.442695
    %v1076 = vpow.pop %v1075
    %v1077 = vadd.f32 %v1074, 1.0
    %v1078 = vadd.f32 %v1076, 1.0
    %v1079 = vrcp.pop %v1077
    %v1080 = vmul.f32 1.0, %v1079
    %v1081 = vrcp.pop %v1078
    %v1082 = vmul.f32 1.0, %v1081
    %v1083 = vadd.f32 %v1064, %v522
    %v1084 = vmul.f32 %v1080, %v1083
    %v1085 = vadd.f32 %v402, %v1084
    %v1086 = vtanh.pop %v1085
    %v1087 = vsub.f32 1.0, %v1082
    %v1088 = vmul.f32 %v1087, %v1086
    %v1089 = vmul.f32 %v1082, %v986
    %v1090 = vadd.f32 %v1088, %v1089
    %v1091 = vpack.c.bf16 %v1090, %v1090
    %1092 = vmatprep.subr.bf16.mxu0 %v650
    %1093 = vmatpush1.bf16.msra.mxu0 %v649
    %1094 = vmatprep.subr.bf16.mxu0 %v647
    %1095 = vmatpush1.bf16.msra.mxu0 %v646
    %1096 = vmatprep.subr.bf16.mxu0 %v644
    %1097 = vmatpush1.bf16.msra.mxu0 %v643
    %1098 = vmatprep.subr.bf16.mxu0 %v641
    %1099 = vmatpush1.bf16.msra.mxu0 %v640
    %1100 = vmatprep.subr.bf16.mxu0 %v638
    %1101 = vmatpush1.bf16.msra.mxu0 %v637
    %1102 = vmatprep.subr.bf16.mxu0 %v635
    %1103 = vmatpush1.bf16.msra.mxu0 %v634
    %1104 = vmatprep.subr.bf16.mxu0 %v632
    %1105 = vmatpush1.bf16.msra.mxu0 %v631
    %1106 = vmatprep.subr.bf16.mxu0 %v629
    %1107 = vmatpush1.bf16.msra.mxu0 %v628
    %1108 = vmatprep.subr.bf16.mxu0 0
    %1109 = vmatpush2.bf16.msra.mxu0 0
    %1110 = vmatprep.subr.bf16.mxu0 0
    %1111 = vmatpush2.bf16.msra.mxu0 0
    %1112 = vmatprep.subr.bf16.mxu0 0
    %1113 = vmatpush2.bf16.msra.mxu0 0
    %1114 = vmatprep.subr.bf16.mxu0 0
    %1115 = vmatpush2.bf16.msra.mxu0 0
    %1116 = vmatprep.subr.bf16.mxu0 0
    %1117 = vmatpush2.bf16.msra.mxu0 0
    %1118 = vmatprep.subr.bf16.mxu0 0
    %1119 = vmatpush2.bf16.msra.mxu0 0
    %1120 = vmatprep.subr.bf16.mxu0 0
    %1121 = vmatpush2.bf16.msra.mxu0 0
    %1122 = vmatprep.subr.bf16.mxu0 0
    %1123 = vmatpush2.bf16.msra.mxu0 0
    %1124 = vmatprep.mubr.bf16.mxu0 0
    %1125 = vmatmul.mubr.bf16.gmra.mxu0 %v1091
    %v1126 = vpop.f32.mrf.mxu0
    %v1127 = vadd.f32 0.0, %v1126
    %v1128 = vpop.f32.mrf.mxu0
    %v1129 = vadd.f32 0.0, %v1128
    %v1130 = vpop.f32.mrf.mxu0
    %v1131 = vpop.f32.mrf.mxu0
    %1132 = vdwg.mxu0
    %1133 = vmatprep.subr.bf16.mxu0 0
    %1134 = vmatpush1.bf16.msra.mxu0 %v651
    %1135 = vmatprep.subr.bf16.mxu0 0
    %1136 = vmatpush1.bf16.msra.mxu0 %v648
    %1137 = vmatprep.subr.bf16.mxu0 0
    %1138 = vmatpush1.bf16.msra.mxu0 %v645
    %1139 = vmatprep.subr.bf16.mxu0 0
    %1140 = vmatpush1.bf16.msra.mxu0 %v642
    %1141 = vmatprep.subr.bf16.mxu0 0
    %1142 = vmatpush1.bf16.msra.mxu0 %v639
    %1143 = vmatprep.subr.bf16.mxu0 0
    %1144 = vmatpush1.bf16.msra.mxu0 %v636
    %1145 = vmatprep.subr.bf16.mxu0 0
    %1146 = vmatpush1.bf16.msra.mxu0 %v633
    %1147 = vmatprep.subr.bf16.mxu0 0
    %1148 = vmatpush1.bf16.msra.mxu0 %v630
    %1149 = vmatprep.subr.bf16.mxu0 0
    %1150 = vmatpush2.bf16.msra.mxu0 0
    %1151 = vmatprep.subr.bf16.mxu0 0
    %1152 = vmatpush2.bf16.msra.mxu0 0
    %1153 = vmatprep.subr.bf16.mxu0 0
    %1154 = vmatpush2.bf16.msra.mxu0 0
    %1155 = vmatprep.subr.bf16.mxu0 0
    %1156 = vmatpush2.bf16.msra.mxu0 0
    %1157 = vmatprep.subr.bf16.mxu0 0
    %1158 = vmatpush2.bf16.msra.mxu0 0
    %1159 = vmatprep.subr.bf16.mxu0 0
    %1160 = vmatpush2.bf16.msra.mxu0 0
    %1161 = vmatprep.subr.bf16.mxu0 0
    %1162 = vmatpush2.bf16.msra.mxu0 0
    %1163 = vmatprep.subr.bf16.mxu0 0
    %1164 = vmatpush2.bf16.msra.mxu0 0
    %1165 = vmatprep.mubr.bf16.mxu0 0
    %1166 = vmatmul.mubr.bf16.gmra.mxu0 %v1091
    %v1167 = vpop.f32.mrf.mxu0
    %v1168 = vadd.f32 0.0, %v1167
    %v1169 = vpop.f32.mrf.mxu0
    %v1170 = vpop.f32.mrf.mxu0
    %v1171 = vpop.f32.mrf.mxu0
    %1172 = vdwg.mxu0
    %v1173 = vadd.f32 %v338, %v1127
    %v1174 = vadd.f32 %v340, %v1129
    %v1175 = vxor.u32 %v1173, 2147483648
    %v1176 = vxor.u32 %v1174, 2147483648
    %v1177 = vmul.f32 %v1175, 1.442695
    %v1178 = vpow.pop %v1177
    %v1179 = vmul.f32 %v1176, 1.442695
    %v1180 = vpow.pop %v1179
    %v1181 = vadd.f32 %v1178, 1.0
    %v1182 = vadd.f32 %v1180, 1.0
    %v1183 = vrcp.pop %v1181
    %v1184 = vmul.f32 1.0, %v1183
    %v1185 = vrcp.pop %v1182
    %v1186 = vmul.f32 1.0, %v1185
    %v1187 = vadd.f32 %v1168, %v522
    %v1188 = vmul.f32 %v1184, %v1187
    %v1189 = vadd.f32 %v407, %v1188
    %v1190 = vtanh.pop %v1189
    %v1191 = vsub.f32 1.0, %v1186
    %v1192 = vmul.f32 %v1191, %v1190
    %v1193 = vmul.f32 %v1186, %v1090
    %v1194 = vadd.f32 %v1192, %v1193
    %v1195 = vpack.c.bf16 %v1194, %v1194
    %1196 = vmatprep.subr.bf16.mxu0 %v650
    %1197 = vmatpush1.bf16.msra.mxu0 %v649
    %1198 = vmatprep.subr.bf16.mxu0 %v647
    %1199 = vmatpush1.bf16.msra.mxu0 %v646
    %1200 = vmatprep.subr.bf16.mxu0 %v644
    %1201 = vmatpush1.bf16.msra.mxu0 %v643
    %1202 = vmatprep.subr.bf16.mxu0 %v641
    %1203 = vmatpush1.bf16.msra.mxu0 %v640
    %1204 = vmatprep.subr.bf16.mxu0 %v638
    %1205 = vmatpush1.bf16.msra.mxu0 %v637
    %1206 = vmatprep.subr.bf16.mxu0 %v635
    %1207 = vmatpush1.bf16.msra.mxu0 %v634
    %1208 = vmatprep.subr.bf16.mxu0 %v632
    %1209 = vmatpush1.bf16.msra.mxu0 %v631
    %1210 = vmatprep.subr.bf16.mxu0 %v629
    %1211 = vmatpush1.bf16.msra.mxu0 %v628
    %1212 = vmatprep.subr.bf16.mxu0 0
    %1213 = vmatpush2.bf16.msra.mxu0 0
    %1214 = vmatprep.subr.bf16.mxu0 0
    %1215 = vmatpush2.bf16.msra.mxu0 0
    %1216 = vmatprep.subr.bf16.mxu0 0
    %1217 = vmatpush2.bf16.msra.mxu0 0
    %1218 = vmatprep.subr.bf16.mxu0 0
    %1219 = vmatpush2.bf16.msra.mxu0 0
    %1220 = vmatprep.subr.bf16.mxu0 0
    %1221 = vmatpush2.bf16.msra.mxu0 0
    %1222 = vmatprep.subr.bf16.mxu0 0
    %1223 = vmatpush2.bf16.msra.mxu0 0
    %1224 = vmatprep.subr.bf16.mxu0 0
    %1225 = vmatpush2.bf16.msra.mxu0 0
    %1226 = vmatprep.subr.bf16.mxu0 0
    %1227 = vmatpush2.bf16.msra.mxu0 0
    %1228 = vmatprep.mubr.bf16.mxu0 0
    %1229 = vmatmul.mubr.bf16.gmra.mxu0 %v1195
    %v1230 = vpop.f32.mrf.mxu0
    %v1231 = vadd.f32 0.0, %v1230
    %v1232 = vpop.f32.mrf.mxu0
    %v1233 = vadd.f32 0.0, %v1232
    %v1234 = vpop.f32.mrf.mxu0
    %v1235 = vpop.f32.mrf.mxu0
    %1236 = vdwg.mxu0
    %1237 = vmatprep.subr.bf16.mxu0 0
    %1238 = vmatpush1.bf16.msra.mxu0 %v651
    %1239 = vmatprep.subr.bf16.mxu0 0
    %1240 = vmatpush1.bf16.msra.mxu0 %v648
    %1241 = vmatprep.subr.bf16.mxu0 0
    %1242 = vmatpush1.bf16.msra.mxu0 %v645
    %1243 = vmatprep.subr.bf16.mxu0 0
    %1244 = vmatpush1.bf16.msra.mxu0 %v642
    %1245 = vmatprep.subr.bf16.mxu0 0
    %1246 = vmatpush1.bf16.msra.mxu0 %v639
    %1247 = vmatprep.subr.bf16.mxu0 0
    %1248 = vmatpush1.bf16.msra.mxu0 %v636
    %1249 = vmatprep.subr.bf16.mxu0 0
    %1250 = vmatpush1.bf16.msra.mxu0 %v633
    %1251 = vmatprep.subr.bf16.mxu0 0
    %1252 = vmatpush1.bf16.msra.mxu0 %v630
    %1253 = vmatprep.subr.bf16.mxu0 0
    %1254 = vmatpush2.bf16.msra.mxu0 0
    %1255 = vmatprep.subr.bf16.mxu0 0
    %1256 = vmatpush2.bf16.msra.mxu0 0
    %1257 = vmatprep.subr.bf16.mxu0 0
    %1258 = vmatpush2.bf16.msra.mxu0 0
    %1259 = vmatprep.subr.bf16.mxu0 0
    %1260 = vmatpush2.bf16.msra.mxu0 0
    %1261 = vmatprep.subr.bf16.mxu0 0
    %1262 = vmatpush2.bf16.msra.mxu0 0
    %1263 = vmatprep.subr.bf16.mxu0 0
    %1264 = vmatpush2.bf16.msra.mxu0 0
    %1265 = vmatprep.subr.bf16.mxu0 0
    %1266 = vmatpush2.bf16.msra.mxu0 0
    %1267 = vmatprep.subr.bf16.mxu0 0
    %1268 = vmatpush2.bf16.msra.mxu0 0
    %1269 = vmatprep.mubr.bf16.mxu0 0
    %1270 = vmatmul.mubr.bf16.gmra.mxu0 %v1195
    %v1271 = vpop.f32.mrf.mxu0
    %v1272 = vadd.f32 0.0, %v1271
    %v1273 = vpop.f32.mrf.mxu0
    %v1274 = vpop.f32.mrf.mxu0
    %v1275 = vpop.f32.mrf.mxu0
    %1276 = vdwg.mxu0
    %v1277 = vadd.f32 %v342, %v1231
    %v1278 = vadd.f32 %v344, %v1233
    %v1279 = vxor.u32 %v1277, 2147483648
    %v1280 = vxor.u32 %v1278, 2147483648
    %v1281 = vmul.f32 %v1279, 1.442695
    %v1282 = vpow.pop %v1281
    %v1283 = vmul.f32 %v1280, 1.442695
    %v1284 = vpow.pop %v1283
    %v1285 = vadd.f32 %v1282, 1.0
    %v1286 = vadd.f32 %v1284, 1.0
    %v1287 = vrcp.pop %v1285
    %v1288 = vmul.f32 1.0, %v1287
    %v1289 = vrcp.pop %v1286
    %v1290 = vmul.f32 1.0, %v1289
    %v1291 = vadd.f32 %v1272, %v522
    %v1292 = vmul.f32 %v1288, %v1291
    %v1293 = vadd.f32 %v410, %v1292
    %v1294 = vtanh.pop %v1293
    %v1295 = vsub.f32 1.0, %v1290
    %v1296 = vmul.f32 %v1295, %v1294
    %v1297 = vmul.f32 %v1290, %v1194
    %v1298 = vadd.f32 %v1296, %v1297
    %v1299 = vpack.c.bf16 %v1298, %v1298
    %1300 = vmatprep.subr.bf16.mxu0 %v650
    %1301 = vmatpush1.bf16.msra.mxu0 %v649
    %1302 = vmatprep.subr.bf16.mxu0 %v647
    %1303 = vmatpush1.bf16.msra.mxu0 %v646
    %1304 = vmatprep.subr.bf16.mxu0 %v644
    %1305 = vmatpush1.bf16.msra.mxu0 %v643
    %1306 = vmatprep.subr.bf16.mxu0 %v641
    %1307 = vmatpush1.bf16.msra.mxu0 %v640
    %1308 = vmatprep.subr.bf16.mxu0 %v638
    %1309 = vmatpush1.bf16.msra.mxu0 %v637
    %1310 = vmatprep.subr.bf16.mxu0 %v635
    %1311 = vmatpush1.bf16.msra.mxu0 %v634
    %1312 = vmatprep.subr.bf16.mxu0 %v632
    %1313 = vmatpush1.bf16.msra.mxu0 %v631
    %1314 = vmatprep.subr.bf16.mxu0 %v629
    %1315 = vmatpush1.bf16.msra.mxu0 %v628
    %1316 = vmatprep.subr.bf16.mxu0 0
    %1317 = vmatpush2.bf16.msra.mxu0 0
    %1318 = vmatprep.subr.bf16.mxu0 0
    %1319 = vmatpush2.bf16.msra.mxu0 0
    %1320 = vmatprep.subr.bf16.mxu0 0
    %1321 = vmatpush2.bf16.msra.mxu0 0
    %1322 = vmatprep.subr.bf16.mxu0 0
    %1323 = vmatpush2.bf16.msra.mxu0 0
    %1324 = vmatprep.subr.bf16.mxu0 0
    %1325 = vmatpush2.bf16.msra.mxu0 0
    %1326 = vmatprep.subr.bf16.mxu0 0
    %1327 = vmatpush2.bf16.msra.mxu0 0
    %1328 = vmatprep.subr.bf16.mxu0 0
    %1329 = vmatpush2.bf16.msra.mxu0 0
    %1330 = vmatprep.subr.bf16.mxu0 0
    %1331 = vmatpush2.bf16.msra.mxu0 0
    %1332 = vmatprep.mubr.bf16.mxu0 0
    %1333 = vmatmul.mubr.bf16.gmra.mxu0 %v1299
    %v1334 = vpop.f32.mrf.mxu0
    %v1335 = vadd.f32 0.0, %v1334
    %v1336 = vpop.f32.mrf.mxu0
    %v1337 = vadd.f32 0.0, %v1336
    %v1338 = vpop.f32.mrf.mxu0
    %v1339 = vpop.f32.mrf.mxu0
    %1340 = vdwg.mxu0
    %1341 = vmatprep.subr.bf16.mxu0 0
    %1342 = vmatpush1.bf16.msra.mxu0 %v651
    %1343 = vmatprep.subr.bf16.mxu0 0
    %1344 = vmatpush1.bf16.msra.mxu0 %v648
    %1345 = vmatprep.subr.bf16.mxu0 0
    %1346 = vmatpush1.bf16.msra.mxu0 %v645
    %1347 = vmatprep.subr.bf16.mxu0 0
    %1348 = vmatpush1.bf16.msra.mxu0 %v642
    %1349 = vmatprep.subr.bf16.mxu0 0
    %1350 = vmatpush1.bf16.msra.mxu0 %v639
    %1351 = vmatprep.subr.bf16.mxu0 0
    %1352 = vmatpush1.bf16.msra.mxu0 %v636
    %1353 = vmatprep.subr.bf16.mxu0 0
    %1354 = vmatpush1.bf16.msra.mxu0 %v633
    %1355 = vmatprep.subr.bf16.mxu0 0
    %1356 = vmatpush1.bf16.msra.mxu0 %v630
    %1357 = vmatprep.subr.bf16.mxu0 0
    %1358 = vmatpush2.bf16.msra.mxu0 0
    %1359 = vmatprep.subr.bf16.mxu0 0
    %1360 = vmatpush2.bf16.msra.mxu0 0
    %1361 = vmatprep.subr.bf16.mxu0 0
    %1362 = vmatpush2.bf16.msra.mxu0 0
    %1363 = vmatprep.subr.bf16.mxu0 0
    %1364 = vmatpush2.bf16.msra.mxu0 0
    %1365 = vmatprep.subr.bf16.mxu0 0
    %1366 = vmatpush2.bf16.msra.mxu0 0
    %1367 = vmatprep.subr.bf16.mxu0 0
    %1368 = vmatpush2.bf16.msra.mxu0 0
    %1369 = vmatprep.subr.bf16.mxu0 0
    %1370 = vmatpush2.bf16.msra.mxu0 0
    %1371 = vmatprep.subr.bf16.mxu0 0
    %1372 = vmatpush2.bf16.msra.mxu0 0
    %1373 = vmatprep.mubr.bf16.mxu0 0
    %1374 = vmatmul.mubr.bf16.gmra.mxu0 %v1299
    %v1375 = vpop.f32.mrf.mxu0
    %v1376 = vadd.f32 0.0, %v1375
    %v1377 = vpop.f32.mrf.mxu0
    %v1378 = vpop.f32.mrf.mxu0
    %v1379 = vpop.f32.mrf.mxu0
    %1380 = vdwg.mxu0
    %v1381 = vadd.f32 %v348, %v1335
    %v1382 = vadd.f32 %v350, %v1337
    %v1383 = vxor.u32 %v1381, 2147483648
    %v1384 = vxor.u32 %v1382, 2147483648
    %v1385 = vmul.f32 %v1383, 1.442695
    %v1386 = vpow.pop %v1385
    %v1387 = vmul.f32 %v1384, 1.442695
    %v1388 = vpow.pop %v1387
    %v1389 = vadd.f32 %v1386, 1.0
    %v1390 = vadd.f32 %v1388, 1.0
    %v1391 = vrcp.pop %v1389
    %v1392 = vmul.f32 1.0, %v1391
    %v1393 = vrcp.pop %v1390
    %v1394 = vmul.f32 1.0, %v1393
    %v1395 = vadd.f32 %v1376, %v522
    %v1396 = vmul.f32 %v1392, %v1395
    %v1397 = vadd.f32 %v415, %v1396
    %v1398 = vtanh.pop %v1397
    %v1399 = vsub.f32 1.0, %v1394
    %v1400 = vmul.f32 %v1399, %v1398
    %v1401 = vmul.f32 %v1394, %v1298
    %v1402 = vadd.f32 %v1400, %v1401
    %v1403 = vpack.c.bf16 %v1402, %v1402
    %1404 = vmatprep.subr.bf16.mxu0 %v650
    %1405 = vmatpush1.bf16.msra.mxu0 %v649
    %1406 = vmatprep.subr.bf16.mxu0 %v647
    %1407 = vmatpush1.bf16.msra.mxu0 %v646
    %1408 = vmatprep.subr.bf16.mxu0 %v644
    %1409 = vmatpush1.bf16.msra.mxu0 %v643
    %1410 = vmatprep.subr.bf16.mxu0 %v641
    %1411 = vmatpush1.bf16.msra.mxu0 %v640
    %1412 = vmatprep.subr.bf16.mxu0 %v638
    %1413 = vmatpush1.bf16.msra.mxu0 %v637
    %1414 = vmatprep.subr.bf16.mxu0 %v635
    %1415 = vmatpush1.bf16.msra.mxu0 %v634
    %1416 = vmatprep.subr.bf16.mxu0 %v632
    %1417 = vmatpush1.bf16.msra.mxu0 %v631
    %1418 = vmatprep.subr.bf16.mxu0 %v629
    %1419 = vmatpush1.bf16.msra.mxu0 %v628
    %1420 = vmatprep.subr.bf16.mxu0 0
    %1421 = vmatpush2.bf16.msra.mxu0 0
    %1422 = vmatprep.subr.bf16.mxu0 0
    %1423 = vmatpush2.bf16.msra.mxu0 0
    %1424 = vmatprep.subr.bf16.mxu0 0
    %1425 = vmatpush2.bf16.msra.mxu0 0
    %1426 = vmatprep.subr.bf16.mxu0 0
    %1427 = vmatpush2.bf16.msra.mxu0 0
    %1428 = vmatprep.subr.bf16.mxu0 0
    %1429 = vmatpush2.bf16.msra.mxu0 0
    %1430 = vmatprep.subr.bf16.mxu0 0
    %1431 = vmatpush2.bf16.msra.mxu0 0
    %1432 = vmatprep.subr.bf16.mxu0 0
    %1433 = vmatpush2.bf16.msra.mxu0 0
    %1434 = vmatprep.subr.bf16.mxu0 0
    %1435 = vmatpush2.bf16.msra.mxu0 0
    %1436 = vmatprep.mubr.bf16.mxu0 0
    %1437 = vmatmul.mubr.bf16.gmra.mxu0 %v1403
    %v1438 = vpop.f32.mrf.mxu0
    %v1439 = vadd.f32 0.0, %v1438
    %v1440 = vpop.f32.mrf.mxu0
    %v1441 = vadd.f32 0.0, %v1440
    %v1442 = vpop.f32.mrf.mxu0
    %v1443 = vpop.f32.mrf.mxu0
    %1444 = vdwg.mxu0
    %1445 = vmatprep.subr.bf16.mxu0 0
    %1446 = vmatpush1.bf16.msra.mxu0 %v651
    %1447 = vmatprep.subr.bf16.mxu0 0
    %1448 = vmatpush1.bf16.msra.mxu0 %v648
    %1449 = vmatprep.subr.bf16.mxu0 0
    %1450 = vmatpush1.bf16.msra.mxu0 %v645
    %1451 = vmatprep.subr.bf16.mxu0 0
    %1452 = vmatpush1.bf16.msra.mxu0 %v642
    %1453 = vmatprep.subr.bf16.mxu0 0
    %1454 = vmatpush1.bf16.msra.mxu0 %v639
    %1455 = vmatprep.subr.bf16.mxu0 0
    %1456 = vmatpush1.bf16.msra.mxu0 %v636
    %1457 = vmatprep.subr.bf16.mxu0 0
    %1458 = vmatpush1.bf16.msra.mxu0 %v633
    %1459 = vmatprep.subr.bf16.mxu0 0
    %1460 = vmatpush1.bf16.msra.mxu0 %v630
    %1461 = vmatprep.subr.bf16.mxu0 0
    %1462 = vmatpush2.bf16.msra.mxu0 0
    %1463 = vmatprep.subr.bf16.mxu0 0
    %1464 = vmatpush2.bf16.msra.mxu0 0
    %1465 = vmatprep.subr.bf16.mxu0 0
    %1466 = vmatpush2.bf16.msra.mxu0 0
    %1467 = vmatprep.subr.bf16.mxu0 0
    %1468 = vmatpush2.bf16.msra.mxu0 0
    %1469 = vmatprep.subr.bf16.mxu0 0
    %1470 = vmatpush2.bf16.msra.mxu0 0
    %1471 = vmatprep.subr.bf16.mxu0 0
    %1472 = vmatpush2.bf16.msra.mxu0 0
    %1473 = vmatprep.subr.bf16.mxu0 0
    %1474 = vmatpush2.bf16.msra.mxu0 0
    %1475 = vmatprep.subr.bf16.mxu0 0
    %1476 = vmatpush2.bf16.msra.mxu0 0
    %1477 = vmatprep.mubr.bf16.mxu0 0
    %1478 = vmatmul.mubr.bf16.gmra.mxu0 %v1403
    %v1479 = vpop.f32.mrf.mxu0
    %v1480 = vadd.f32 0.0, %v1479
    %v1481 = vpop.f32.mrf.mxu0
    %v1482 = vpop.f32.mrf.mxu0
    %v1483 = vpop.f32.mrf.mxu0
    %1484 = vdwg.mxu0
    %v1485 = vadd.f32 %v352, %v1439
    %v1486 = vadd.f32 %v354, %v1441
    %v1487 = vxor.u32 %v1485, 2147483648
    %v1488 = vxor.u32 %v1486, 2147483648
    %v1489 = vmul.f32 %v1487, 1.442695
    %v1490 = vpow.pop %v1489
    %v1491 = vmul.f32 %v1488, 1.442695
    %v1492 = vpow.pop %v1491
    %v1493 = vadd.f32 %v1490, 1.0
    %v1494 = vadd.f32 %v1492, 1.0
    %v1495 = vrcp.pop %v1493
    %v1496 = vmul.f32 1.0, %v1495
    %v1497 = vrcp.pop %v1494
    %v1498 = vmul.f32 1.0, %v1497
    %v1499 = vadd.f32 %v1480, %v522
    %v1500 = vmul.f32 %v1496, %v1499
    %v1501 = vadd.f32 %v418, %v1500
    %v1502 = vtanh.pop %v1501
    %v1503 = vsub.f32 1.0, %v1498
    %v1504 = vmul.f32 %v1503, %v1502
    %v1505 = vmul.f32 %v1498, %v1402
    %v1506 = vadd.f32 %v1504, %v1505
    %v1507 = vpack.c.bf16 %v882, %v778
    %v1508 = vpack.c.bf16 %v1090, %v986
    %v1509 = vpack.c.bf16 %v1298, %v1194
    %v1510 = vpack.c.bf16 %v1506, %v1402
    %v1543 = vunpack.c.l.b16 %v485
    %v1544 = vunpack.c.h.b16 %v485
    %v1545 = vunpack.c.l.b16 %v486
    %v1546 = vunpack.c.l.b16 %v487
    %v1547 = vunpack.c.h.b16 %v487
    %v1548 = vunpack.c.l.b16 %v488
    %v1549 = vunpack.c.l.b16 %v489
    %v1550 = vunpack.c.h.b16 %v489
    %v1551 = vunpack.c.l.b16 %v490
    %v1552 = vunpack.c.l.b16 %v491
    %v1553 = vunpack.c.h.b16 %v491
    %v1554 = vunpack.c.l.b16 %v492
    %v1555 = vunpack.c.l.b16 %v493
    %v1556 = vunpack.c.h.b16 %v493
    %v1557 = vunpack.c.l.b16 %v494
    %v1558 = vunpack.c.l.b16 %v495
    %v1559 = vunpack.c.h.b16 %v495
    %v1560 = vunpack.c.l.b16 %v496
    %v1561 = vunpack.c.l.b16 %v497
    %v1562 = vunpack.c.h.b16 %v497
    %v1563 = vunpack.c.l.b16 %v498
    %v1564 = vunpack.c.l.b16 %v499
    %v1565 = vunpack.c.h.b16 %v499
    %v1566 = vunpack.c.l.b16 %v500
    %v1567 = vunpack.c.l.b16 %v501
    %v1568 = vunpack.c.h.b16 %v501
    %v1569 = vunpack.c.l.b16 %v502
    %v1570 = vunpack.c.l.b16 %v503
    %v1571 = vunpack.c.h.b16 %v503
    %v1572 = vunpack.c.l.b16 %v504
    %v1573 = vunpack.c.l.b16 %v505
    %v1574 = vunpack.c.h.b16 %v505
    %v1575 = vunpack.c.l.b16 %v506
    %v1576 = vunpack.c.l.b16 %v507
    %v1577 = vunpack.c.h.b16 %v507
    %v1578 = vunpack.c.l.b16 %v508
    %v1579 = vunpack.c.l.b16 %v509
    %v1580 = vunpack.c.h.b16 %v509
    %v1581 = vunpack.c.l.b16 %v510
    %v1582 = vunpack.c.l.b16 %v511
    %v1583 = vunpack.c.h.b16 %v511
    %v1584 = vunpack.c.l.b16 %v512
    %v1585 = vunpack.c.l.b16 %v513
    %v1586 = vunpack.c.h.b16 %v513
    %v1587 = vunpack.c.l.b16 %v514
    %v1588 = vunpack.c.l.b16 %v515
    %v1589 = vunpack.c.h.b16 %v515
    %v1590 = vunpack.c.l.b16 %v516
    %v1591 = vpack.c.b16 %v1546, %v1543
    %v1592 = vpack.c.b16 %v1547, %v1544
    %v1593 = vpack.c.b16 %v1548, %v1545
    %v1594 = vpack.c.b16 %v1552, %v1549
    %v1595 = vpack.c.b16 %v1553, %v1550
    %v1596 = vpack.c.b16 %v1554, %v1551
    %v1597 = vpack.c.b16 %v1558, %v1555
    %v1598 = vpack.c.b16 %v1559, %v1556
    %v1599 = vpack.c.b16 %v1560, %v1557
    %v1600 = vpack.c.b16 %v1564, %v1561
    %v1601 = vpack.c.b16 %v1565, %v1562
    %v1602 = vpack.c.b16 %v1566, %v1563
    %v1603 = vpack.c.b16 %v1570, %v1567
    %v1604 = vpack.c.b16 %v1571, %v1568
    %v1605 = vpack.c.b16 %v1572, %v1569
    %v1606 = vpack.c.b16 %v1576, %v1573
    %v1607 = vpack.c.b16 %v1577, %v1574
    %v1608 = vpack.c.b16 %v1578, %v1575
    %v1609 = vpack.c.b16 %v1582, %v1579
    %v1610 = vpack.c.b16 %v1583, %v1580
    %v1611 = vpack.c.b16 %v1584, %v1581
    %v1612 = vpack.c.b16 %v1588, %v1585
    %v1613 = vpack.c.b16 %v1589, %v1586
    %v1614 = vpack.c.b16 %v1590, %v1587
    %1639 = vmatprep.subr.bf16.mxu0 %v1613
    %1640 = vmatpush1.bf16.msra.mxu0 %v1612
    %1641 = vmatprep.subr.bf16.mxu0 %v1610
    %1642 = vmatpush1.bf16.msra.mxu0 %v1609
    %1643 = vmatprep.subr.bf16.mxu0 %v1607
    %1644 = vmatpush1.bf16.msra.mxu0 %v1606
    %1645 = vmatprep.subr.bf16.mxu0 %v1604
    %1646 = vmatpush1.bf16.msra.mxu0 %v1603
    %1647 = vmatprep.subr.bf16.mxu0 %v1601
    %1648 = vmatpush1.bf16.msra.mxu0 %v1600
    %1649 = vmatprep.subr.bf16.mxu0 %v1598
    %1650 = vmatpush1.bf16.msra.mxu0 %v1597
    %1651 = vmatprep.subr.bf16.mxu0 %v1595
    %1652 = vmatpush1.bf16.msra.mxu0 %v1594
    %1653 = vmatprep.subr.bf16.mxu0 %v1592
    %1654 = vmatpush1.bf16.msra.mxu0 %v1591
    %1655 = vmatprep.subr.bf16.mxu0 0
    %1656 = vmatpush2.bf16.msra.mxu0 0
    %1657 = vmatprep.subr.bf16.mxu0 0
    %1658 = vmatpush2.bf16.msra.mxu0 0
    %1659 = vmatprep.subr.bf16.mxu0 0
    %1660 = vmatpush2.bf16.msra.mxu0 0
    %1661 = vmatprep.subr.bf16.mxu0 0
    %1662 = vmatpush2.bf16.msra.mxu0 0
    %1663 = vmatprep.subr.bf16.mxu0 0
    %1664 = vmatpush2.bf16.msra.mxu0 0
    %1665 = vmatprep.subr.bf16.mxu0 0
    %1666 = vmatpush2.bf16.msra.mxu0 0
    %1667 = vmatprep.subr.bf16.mxu0 0
    %1668 = vmatpush2.bf16.msra.mxu0 0
    %1669 = vmatprep.subr.bf16.mxu0 0
    %1670 = vmatpush2.bf16.msra.mxu0 0
    %1671 = vmatprep.mubr.bf16.mxu0 0
    %1672 = vmatmul.mubr.bf16.gmra.mxu0 %v1507
    %v1673 = vpop.f32.mrf.mxu0
    %v1674 = vadd.f32 %v536, %v1673
    %v1675 = vpop.f32.mrf.mxu0
    %v1676 = vadd.f32 %v540, %v1675
    %v1677 = vpop.f32.mrf.mxu0
    %v1678 = vadd.f32 %v536, %v1677
    %v1679 = vpop.f32.mrf.mxu0
    %v1680 = vadd.f32 %v540, %v1679
    %1681 = vmatprep.mubr.bf16.mxu0 0
    %1682 = vmatmul.mubr.bf16.gmra.mxu0 %v1508
    %v1683 = vpop.f32.mrf.mxu0
    %v1684 = vadd.f32 %v536, %v1683
    %v1685 = vpop.f32.mrf.mxu0
    %v1686 = vadd.f32 %v540, %v1685
    %v1687 = vpop.f32.mrf.mxu0
    %v1688 = vadd.f32 %v536, %v1687
    %v1689 = vpop.f32.mrf.mxu0
    %v1690 = vadd.f32 %v540, %v1689
    %1691 = vmatprep.mubr.bf16.mxu0 0
    %1692 = vmatmul.mubr.bf16.gmra.mxu0 %v1509
    %v1693 = vpop.f32.mrf.mxu0
    %v1694 = vadd.f32 %v536, %v1693
    %v1695 = vpop.f32.mrf.mxu0
    %v1696 = vadd.f32 %v540, %v1695
    %v1697 = vpop.f32.mrf.mxu0
    %v1698 = vadd.f32 %v536, %v1697
    %v1699 = vpop.f32.mrf.mxu0
    %v1700 = vadd.f32 %v540, %v1699
    %1701 = vmatprep.mubr.bf16.mxu0 0
    %1702 = vmatmul.mubr.bf16.gmra.mxu0 %v1510
    %v1703 = vpop.f32.mrf.mxu0
    %v1704 = vadd.f32 %v536, %v1703
    %v1705 = vpop.f32.mrf.mxu0
    %v1706 = vadd.f32 %v540, %v1705
    %v1707 = vpop.f32.mrf.mxu0
    %v1708 = vadd.f32 %v536, %v1707
    %v1709 = vpop.f32.mrf.mxu0
    %v1710 = vadd.f32 %v540, %v1709
    %1711 = vdwg.mxu0
    %1712 = vmatprep.subr.bf16.mxu0 0
    %1713 = vmatpush1.bf16.msra.mxu0 %v1614
    %1714 = vmatprep.subr.bf16.mxu0 0
    %1715 = vmatpush1.bf16.msra.mxu0 %v1611
    %1716 = vmatprep.subr.bf16.mxu0 0
    %1717 = vmatpush1.bf16.msra.mxu0 %v1608
    %1718 = vmatprep.subr.bf16.mxu0 0
    %1719 = vmatpush1.bf16.msra.mxu0 %v1605
    %1720 = vmatprep.subr.bf16.mxu0 0
    %1721 = vmatpush1.bf16.msra.mxu0 %v1602
    %1722 = vmatprep.subr.bf16.mxu0 0
    %1723 = vmatpush1.bf16.msra.mxu0 %v1599
    %1724 = vmatprep.subr.bf16.mxu0 0
    %1725 = vmatpush1.bf16.msra.mxu0 %v1596
    %1726 = vmatprep.subr.bf16.mxu0 0
    %1727 = vmatpush1.bf16.msra.mxu0 %v1593
    %1728 = vmatprep.subr.bf16.mxu0 0
    %1729 = vmatpush2.bf16.msra.mxu0 0
    %1730 = vmatprep.subr.bf16.mxu0 0
    %1731 = vmatpush2.bf16.msra.mxu0 0
    %1732 = vmatprep.subr.bf16.mxu0 0
    %1733 = vmatpush2.bf16.msra.mxu0 0
    %1734 = vmatprep.subr.bf16.mxu0 0
    %1735 = vmatpush2.bf16.msra.mxu0 0
    %1736 = vmatprep.subr.bf16.mxu0 0
    %1737 = vmatpush2.bf16.msra.mxu0 0
    %1738 = vmatprep.subr.bf16.mxu0 0
    %1739 = vmatpush2.bf16.msra.mxu0 0
    %1740 = vmatprep.subr.bf16.mxu0 0
    %1741 = vmatpush2.bf16.msra.mxu0 0
    %1742 = vmatprep.subr.bf16.mxu0 0
    %1743 = vmatpush2.bf16.msra.mxu0 0
    %1744 = vmatprep.mubr.bf16.mxu0 0
    %1745 = vmatmul.mubr.bf16.gmra.mxu0 %v1507
    %v1746 = vpop.f32.mrf.mxu0
    %v1747 = vadd.f32 %v544, %v1746
    %v1748 = vpop.f32.mrf.mxu0
    %v1749 = vpop.f32.mrf.mxu0
    %v1750 = vadd.f32 %v544, %v1749
    %v1751 = vpop.f32.mrf.mxu0
    %1752 = vmatprep.mubr.bf16.mxu0 0
    %1753 = vmatmul.mubr.bf16.gmra.mxu0 %v1508
    %v1754 = vpop.f32.mrf.mxu0
    %v1755 = vadd.f32 %v544, %v1754
    %v1756 = vpop.f32.mrf.mxu0
    %v1757 = vpop.f32.mrf.mxu0
    %v1758 = vadd.f32 %v544, %v1757
    %v1759 = vpop.f32.mrf.mxu0
    %1760 = vmatprep.mubr.bf16.mxu0 0
    %1761 = vmatmul.mubr.bf16.gmra.mxu0 %v1509
    %v1762 = vpop.f32.mrf.mxu0
    %v1763 = vadd.f32 %v544, %v1762
    %v1764 = vpop.f32.mrf.mxu0
    %v1765 = vpop.f32.mrf.mxu0
    %v1766 = vadd.f32 %v544, %v1765
    %v1767 = vpop.f32.mrf.mxu0
    %1768 = vmatprep.mubr.bf16.mxu0 0
    %1769 = vmatmul.mubr.bf16.gmra.mxu0 %v1510
    %v1770 = vpop.f32.mrf.mxu0
    %v1771 = vadd.f32 %v544, %v1770
    %v1772 = vpop.f32.mrf.mxu0
    %v1773 = vpop.f32.mrf.mxu0
    %v1774 = vadd.f32 %v544, %v1773
    %v1775 = vpop.f32.mrf.mxu0
    %1776 = vdwg.mxu0
    %v1809 = vunpack.c.l.b16 %v453
    %v1810 = vunpack.c.h.b16 %v453
    %v1811 = vunpack.c.l.b16 %v454
    %v1812 = vunpack.c.l.b16 %v455
    %v1813 = vunpack.c.h.b16 %v455
    %v1814 = vunpack.c.l.b16 %v456
    %v1815 = vunpack.c.l.b16 %v457
    %v1816 = vunpack.c.h.b16 %v457
    %v1817 = vunpack.c.l.b16 %v458
    %v1818 = vunpack.c.l.b16 %v459
    %v1819 = vunpack.c.h.b16 %v459
    %v1820 = vunpack.c.l.b16 %v460
    %v1821 = vunpack.c.l.b16 %v461
    %v1822 = vunpack.c.h.b16 %v461
    %v1823 = vunpack.c.l.b16 %v462
    %v1824 = vunpack.c.l.b16 %v463
    %v1825 = vunpack.c.h.b16 %v463
    %v1826 = vunpack.c.l.b16 %v464
    %v1827 = vunpack.c.l.b16 %v465
    %v1828 = vunpack.c.h.b16 %v465
    %v1829 = vunpack.c.l.b16 %v466
    %v1830 = vunpack.c.l.b16 %v467
    %v1831 = vunpack.c.h.b16 %v467
    %v1832 = vunpack.c.l.b16 %v468
    %v1833 = vunpack.c.l.b16 %v469
    %v1834 = vunpack.c.h.b16 %v469
    %v1835 = vunpack.c.l.b16 %v470
    %v1836 = vunpack.c.l.b16 %v471
    %v1837 = vunpack.c.h.b16 %v471
    %v1838 = vunpack.c.l.b16 %v472
    %v1839 = vunpack.c.l.b16 %v473
    %v1840 = vunpack.c.h.b16 %v473
    %v1841 = vunpack.c.l.b16 %v474
    %v1842 = vunpack.c.l.b16 %v475
    %v1843 = vunpack.c.h.b16 %v475
    %v1844 = vunpack.c.l.b16 %v476
    %v1845 = vunpack.c.l.b16 %v477
    %v1846 = vunpack.c.h.b16 %v477
    %v1847 = vunpack.c.l.b16 %v478
    %v1848 = vunpack.c.l.b16 %v479
    %v1849 = vunpack.c.h.b16 %v479
    %v1850 = vunpack.c.l.b16 %v480
    %v1851 = vunpack.c.l.b16 %v481
    %v1852 = vunpack.c.h.b16 %v481
    %v1853 = vunpack.c.l.b16 %v482
    %v1854 = vunpack.c.l.b16 %v483
    %v1855 = vunpack.c.h.b16 %v483
    %v1856 = vunpack.c.l.b16 %v484
    %v1857 = vpack.c.b16 %v1812, %v1809
    %v1858 = vpack.c.b16 %v1813, %v1810
    %v1859 = vpack.c.b16 %v1814, %v1811
    %v1860 = vpack.c.b16 %v1818, %v1815
    %v1861 = vpack.c.b16 %v1819, %v1816
    %v1862 = vpack.c.b16 %v1820, %v1817
    %v1863 = vpack.c.b16 %v1824, %v1821
    %v1864 = vpack.c.b16 %v1825, %v1822
    %v1865 = vpack.c.b16 %v1826, %v1823
    %v1866 = vpack.c.b16 %v1830, %v1827
    %v1867 = vpack.c.b16 %v1831, %v1828
    %v1868 = vpack.c.b16 %v1832, %v1829
    %v1869 = vpack.c.b16 %v1836, %v1833
    %v1870 = vpack.c.b16 %v1837, %v1834
    %v1871 = vpack.c.b16 %v1838, %v1835
    %v1872 = vpack.c.b16 %v1842, %v1839
    %v1873 = vpack.c.b16 %v1843, %v1840
    %v1874 = vpack.c.b16 %v1844, %v1841
    %v1875 = vpack.c.b16 %v1848, %v1845
    %v1876 = vpack.c.b16 %v1849, %v1846
    %v1877 = vpack.c.b16 %v1850, %v1847
    %v1878 = vpack.c.b16 %v1854, %v1851
    %v1879 = vpack.c.b16 %v1855, %v1852
    %v1880 = vpack.c.b16 %v1856, %v1853
    %1905 = vmatprep.subr.bf16.mxu0 %v1879
    %1906 = vmatpush1.bf16.msra.mxu0 %v1878
    %1907 = vmatprep.subr.bf16.mxu0 %v1876
    %1908 = vmatpush1.bf16.msra.mxu0 %v1875
    %1909 = vmatprep.subr.bf16.mxu0 %v1873
    %1910 = vmatpush1.bf16.msra.mxu0 %v1872
    %1911 = vmatprep.subr.bf16.mxu0 %v1870
    %1912 = vmatpush1.bf16.msra.mxu0 %v1869
    %1913 = vmatprep.subr.bf16.mxu0 %v1867
    %1914 = vmatpush1.bf16.msra.mxu0 %v1866
    %1915 = vmatprep.subr.bf16.mxu0 %v1864
    %1916 = vmatpush1.bf16.msra.mxu0 %v1863
    %1917 = vmatprep.subr.bf16.mxu0 %v1861
    %1918 = vmatpush1.bf16.msra.mxu0 %v1860
    %1919 = vmatprep.subr.bf16.mxu0 %v1858
    %1920 = vmatpush1.bf16.msra.mxu0 %v1857
    %1921 = vmatprep.subr.bf16.mxu0 0
    %1922 = vmatpush2.bf16.msra.mxu0 0
    %1923 = vmatprep.subr.bf16.mxu0 0
    %1924 = vmatpush2.bf16.msra.mxu0 0
    %1925 = vmatprep.subr.bf16.mxu0 0
    %1926 = vmatpush2.bf16.msra.mxu0 0
    %1927 = vmatprep.subr.bf16.mxu0 0
    %1928 = vmatpush2.bf16.msra.mxu0 0
    %1929 = vmatprep.subr.bf16.mxu0 0
    %1930 = vmatpush2.bf16.msra.mxu0 0
    %1931 = vmatprep.subr.bf16.mxu0 0
    %1932 = vmatpush2.bf16.msra.mxu0 0
    %1933 = vmatprep.subr.bf16.mxu0 0
    %1934 = vmatpush2.bf16.msra.mxu0 0
    %1935 = vmatprep.subr.bf16.mxu0 0
    %1936 = vmatpush2.bf16.msra.mxu0 0
    %1937 = vmatprep.mubr.bf16.mxu0 0
    %1938 = vmatmul.mubr.bf16.gmra.mxu0 0
    %v1939 = vpop.f32.mrf.mxu0
    %v1940 = vadd.f32 0.0, %v1939
    %v1941 = vpop.f32.mrf.mxu0
    %v1942 = vadd.f32 0.0, %v1941
    %v1943 = vpop.f32.mrf.mxu0
    %v1944 = vpop.f32.mrf.mxu0
    %1945 = vdwg.mxu0
    %1946 = vmatprep.subr.bf16.mxu0 0
    %1947 = vmatpush1.bf16.msra.mxu0 %v1880
    %1948 = vmatprep.subr.bf16.mxu0 0
    %1949 = vmatpush1.bf16.msra.mxu0 %v1877
    %1950 = vmatprep.subr.bf16.mxu0 0
    %1951 = vmatpush1.bf16.msra.mxu0 %v1874
    %1952 = vmatprep.subr.bf16.mxu0 0
    %1953 = vmatpush1.bf16.msra.mxu0 %v1871
    %1954 = vmatprep.subr.bf16.mxu0 0
    %1955 = vmatpush1.bf16.msra.mxu0 %v1868
    %1956 = vmatprep.subr.bf16.mxu0 0
    %1957 = vmatpush1.bf16.msra.mxu0 %v1865
    %1958 = vmatprep.subr.bf16.mxu0 0
    %1959 = vmatpush1.bf16.msra.mxu0 %v1862
    %1960 = vmatprep.subr.bf16.mxu0 0
    %1961 = vmatpush1.bf16.msra.mxu0 %v1859
    %1962 = vmatprep.subr.bf16.mxu0 0
    %1963 = vmatpush2.bf16.msra.mxu0 0
    %1964 = vmatprep.subr.bf16.mxu0 0
    %1965 = vmatpush2.bf16.msra.mxu0 0
    %1966 = vmatprep.subr.bf16.mxu0 0
    %1967 = vmatpush2.bf16.msra.mxu0 0
    %1968 = vmatprep.subr.bf16.mxu0 0
    %1969 = vmatpush2.bf16.msra.mxu0 0
    %1970 = vmatprep.subr.bf16.mxu0 0
    %1971 = vmatpush2.bf16.msra.mxu0 0
    %1972 = vmatprep.subr.bf16.mxu0 0
    %1973 = vmatpush2.bf16.msra.mxu0 0
    %1974 = vmatprep.subr.bf16.mxu0 0
    %1975 = vmatpush2.bf16.msra.mxu0 0
    %1976 = vmatprep.subr.bf16.mxu0 0
    %1977 = vmatpush2.bf16.msra.mxu0 0
    %1978 = vmatprep.mubr.bf16.mxu0 0
    %1979 = vmatmul.mubr.bf16.gmra.mxu0 0
    %v1980 = vpop.f32.mrf.mxu0
    %v1981 = vadd.f32 0.0, %v1980
    %v1982 = vpop.f32.mrf.mxu0
    %v1983 = vpop.f32.mrf.mxu0
    %v1984 = vpop.f32.mrf.mxu0
    %1985 = vdwg.mxu0
    %v1986 = vadd.f32 %v1674, %v1940
    %v1987 = vadd.f32 %v1676, %v1942
    %v1988 = vxor.u32 %v1986, 2147483648
    %v1989 = vxor.u32 %v1987, 2147483648
    %v1990 = vmul.f32 %v1988, 1.442695
    %v1991 = vpow.pop %v1990
    %v1992 = vmul.f32 %v1989, 1.442695
    %v1993 = vpow.pop %v1992
    %v1994 = vadd.f32 %v1991, 1.0
    %v1995 = vadd.f32 %v1993, 1.0
    %v1996 = vrcp.pop %v1994
    %v1997 = vmul.f32 1.0, %v1996
    %v1998 = vrcp.pop %v1995
    %v1999 = vmul.f32 1.0, %v1998
    %v2000 = vadd.f32 %v1981, %v529
    %v2001 = vmul.f32 %v1997, %v2000
    %v2002 = vadd.f32 %v1747, %v2001
    %v2003 = vtanh.pop %v2002
    %v2004 = vsub.f32 1.0, %v1999
    %v2005 = vmul.f32 %v2004, %v2003
    %v2006 = vmul.f32 %v1999, 0.0
    %v2007 = vadd.f32 %v2005, %v2006
    %v2008 = vpack.c.bf16 %v2007, %v2007
    %2009 = vmatprep.subr.bf16.mxu0 %v1879
    %2010 = vmatpush1.bf16.msra.mxu0 %v1878
    %2011 = vmatprep.subr.bf16.mxu0 %v1876
    %2012 = vmatpush1.bf16.msra.mxu0 %v1875
    %2013 = vmatprep.subr.bf16.mxu0 %v1873
    %2014 = vmatpush1.bf16.msra.mxu0 %v1872
    %2015 = vmatprep.subr.bf16.mxu0 %v1870
    %2016 = vmatpush1.bf16.msra.mxu0 %v1869
    %2017 = vmatprep.subr.bf16.mxu0 %v1867
    %2018 = vmatpush1.bf16.msra.mxu0 %v1866
    %2019 = vmatprep.subr.bf16.mxu0 %v1864
    %2020 = vmatpush1.bf16.msra.mxu0 %v1863
    %2021 = vmatprep.subr.bf16.mxu0 %v1861
    %2022 = vmatpush1.bf16.msra.mxu0 %v1860
    %2023 = vmatprep.subr.bf16.mxu0 %v1858
    %2024 = vmatpush1.bf16.msra.mxu0 %v1857
    %2025 = vmatprep.subr.bf16.mxu0 0
    %2026 = vmatpush2.bf16.msra.mxu0 0
    %2027 = vmatprep.subr.bf16.mxu0 0
    %2028 = vmatpush2.bf16.msra.mxu0 0
    %2029 = vmatprep.subr.bf16.mxu0 0
    %2030 = vmatpush2.bf16.msra.mxu0 0
    %2031 = vmatprep.subr.bf16.mxu0 0
    %2032 = vmatpush2.bf16.msra.mxu0 0
    %2033 = vmatprep.subr.bf16.mxu0 0
    %2034 = vmatpush2.bf16.msra.mxu0 0
    %2035 = vmatprep.subr.bf16.mxu0 0
    %2036 = vmatpush2.bf16.msra.mxu0 0
    %2037 = vmatprep.subr.bf16.mxu0 0
    %2038 = vmatpush2.bf16.msra.mxu0 0
    %2039 = vmatprep.subr.bf16.mxu0 0
    %2040 = vmatpush2.bf16.msra.mxu0 0
    %2041 = vmatprep.mubr.bf16.mxu0 0
    %2042 = vmatmul.mubr.bf16.gmra.mxu0 %v2008
    %v2043 = vpop.f32.mrf.mxu0
    %v2044 = vadd.f32 0.0, %v2043
    %v2045 = vpop.f32.mrf.mxu0
    %v2046 = vadd.f32 0.0, %v2045
    %v2047 = vpop.f32.mrf.mxu0
    %v2048 = vpop.f32.mrf.mxu0
    %2049 = vdwg.mxu0
    %2050 = vmatprep.subr.bf16.mxu0 0
    %2051 = vmatpush1.bf16.msra.mxu0 %v1880
    %2052 = vmatprep.subr.bf16.mxu0 0
    %2053 = vmatpush1.bf16.msra.mxu0 %v1877
    %2054 = vmatprep.subr.bf16.mxu0 0
    %2055 = vmatpush1.bf16.msra.mxu0 %v1874
    %2056 = vmatprep.subr.bf16.mxu0 0
    %2057 = vmatpush1.bf16.msra.mxu0 %v1871
    %2058 = vmatprep.subr.bf16.mxu0 0
    %2059 = vmatpush1.bf16.msra.mxu0 %v1868
    %2060 = vmatprep.subr.bf16.mxu0 0
    %2061 = vmatpush1.bf16.msra.mxu0 %v1865
    %2062 = vmatprep.subr.bf16.mxu0 0
    %2063 = vmatpush1.bf16.msra.mxu0 %v1862
    %2064 = vmatprep.subr.bf16.mxu0 0
    %2065 = vmatpush1.bf16.msra.mxu0 %v1859
    %2066 = vmatprep.subr.bf16.mxu0 0
    %2067 = vmatpush2.bf16.msra.mxu0 0
    %2068 = vmatprep.subr.bf16.mxu0 0
    %2069 = vmatpush2.bf16.msra.mxu0 0
    %2070 = vmatprep.subr.bf16.mxu0 0
    %2071 = vmatpush2.bf16.msra.mxu0 0
    %2072 = vmatprep.subr.bf16.mxu0 0
    %2073 = vmatpush2.bf16.msra.mxu0 0
    %2074 = vmatprep.subr.bf16.mxu0 0
    %2075 = vmatpush2.bf16.msra.mxu0 0
    %2076 = vmatprep.subr.bf16.mxu0 0
    %2077 = vmatpush2.bf16.msra.mxu0 0
    %2078 = vmatprep.subr.bf16.mxu0 0
    %2079 = vmatpush2.bf16.msra.mxu0 0
    %2080 = vmatprep.subr.bf16.mxu0 0
    %2081 = vmatpush2.bf16.msra.mxu0 0
    %2082 = vmatprep.mubr.bf16.mxu0 0
    %2083 = vmatmul.mubr.bf16.gmra.mxu0 %v2008
    %v2084 = vpop.f32.mrf.mxu0
    %v2085 = vadd.f32 0.0, %v2084
    %v2086 = vpop.f32.mrf.mxu0
    %v2087 = vpop.f32.mrf.mxu0
    %v2088 = vpop.f32.mrf.mxu0
    %2089 = vdwg.mxu0
    %v2090 = vadd.f32 %v1678, %v2044
    %v2091 = vadd.f32 %v1680, %v2046
    %v2092 = vxor.u32 %v2090, 2147483648
    %v2093 = vxor.u32 %v2091, 2147483648
    %v2094 = vmul.f32 %v2092, 1.442695
    %v2095 = vpow.pop %v2094
    %v2096 = vmul.f32 %v2093, 1.442695
    %v2097 = vpow.pop %v2096
    %v2098 = vadd.f32 %v2095, 1.0
    %v2099 = vadd.f32 %v2097, 1.0
    %v2100 = vrcp.pop %v2098
    %v2101 = vmul.f32 1.0, %v2100
    %v2102 = vrcp.pop %v2099
    %v2103 = vmul.f32 1.0, %v2102
    %v2104 = vadd.f32 %v2085, %v529
    %v2105 = vmul.f32 %v2101, %v2104
    %v2106 = vadd.f32 %v1750, %v2105
    %v2107 = vtanh.pop %v2106
    %v2108 = vsub.f32 1.0, %v2103
    %v2109 = vmul.f32 %v2108, %v2107
    %v2110 = vmul.f32 %v2103, %v2007
    %v2111 = vadd.f32 %v2109, %v2110
    %v2112 = vpack.c.bf16 %v2111, %v2111
    %2113 = vmatprep.subr.bf16.mxu0 %v1879
    %2114 = vmatpush1.bf16.msra.mxu0 %v1878
    %2115 = vmatprep.subr.bf16.mxu0 %v1876
    %2116 = vmatpush1.bf16.msra.mxu0 %v1875
    %2117 = vmatprep.subr.bf16.mxu0 %v1873
    %2118 = vmatpush1.bf16.msra.mxu0 %v1872
    %2119 = vmatprep.subr.bf16.mxu0 %v1870
    %2120 = vmatpush1.bf16.msra.mxu0 %v1869
    %2121 = vmatprep.subr.bf16.mxu0 %v1867
    %2122 = vmatpush1.bf16.msra.mxu0 %v1866
    %2123 = vmatprep.subr.bf16.mxu0 %v1864
    %2124 = vmatpush1.bf16.msra.mxu0 %v1863
    %2125 = vmatprep.subr.bf16.mxu0 %v1861
    %2126 = vmatpush1.bf16.msra.mxu0 %v1860
    %2127 = vmatprep.subr.bf16.mxu0 %v1858
    %2128 = vmatpush1.bf16.msra.mxu0 %v1857
    %2129 = vmatprep.subr.bf16.mxu0 0
    %2130 = vmatpush2.bf16.msra.mxu0 0
    %2131 = vmatprep.subr.bf16.mxu0 0
    %2132 = vmatpush2.bf16.msra.mxu0 0
    %2133 = vmatprep.subr.bf16.mxu0 0
    %2134 = vmatpush2.bf16.msra.mxu0 0
    %2135 = vmatprep.subr.bf16.mxu0 0
    %2136 = vmatpush2.bf16.msra.mxu0 0
    %2137 = vmatprep.subr.bf16.mxu0 0
    %2138 = vmatpush2.bf16.msra.mxu0 0
    %2139 = vmatprep.subr.bf16.mxu0 0
    %2140 = vmatpush2.bf16.msra.mxu0 0
    %2141 = vmatprep.subr.bf16.mxu0 0
    %2142 = vmatpush2.bf16.msra.mxu0 0
    %2143 = vmatprep.subr.bf16.mxu0 0
    %2144 = vmatpush2.bf16.msra.mxu0 0
    %2145 = vmatprep.mubr.bf16.mxu0 0
    %2146 = vmatmul.mubr.bf16.gmra.mxu0 %v2112
    %v2147 = vpop.f32.mrf.mxu0
    %v2148 = vadd.f32 0.0, %v2147
    %v2149 = vpop.f32.mrf.mxu0
    %v2150 = vadd.f32 0.0, %v2149
    %v2151 = vpop.f32.mrf.mxu0
    %v2152 = vpop.f32.mrf.mxu0
    %2153 = vdwg.mxu0
    %2154 = vmatprep.subr.bf16.mxu0 0
    %2155 = vmatpush1.bf16.msra.mxu0 %v1880
    %2156 = vmatprep.subr.bf16.mxu0 0
    %2157 = vmatpush1.bf16.msra.mxu0 %v1877
    %2158 = vmatprep.subr.bf16.mxu0 0
    %2159 = vmatpush1.bf16.msra.mxu0 %v1874
    %2160 = vmatprep.subr.bf16.mxu0 0
    %2161 = vmatpush1.bf16.msra.mxu0 %v1871
    %2162 = vmatprep.subr.bf16.mxu0 0
    %2163 = vmatpush1.bf16.msra.mxu0 %v1868
    %2164 = vmatprep.subr.bf16.mxu0 0
    %2165 = vmatpush1.bf16.msra.mxu0 %v1865
    %2166 = vmatprep.subr.bf16.mxu0 0
    %2167 = vmatpush1.bf16.msra.mxu0 %v1862
    %2168 = vmatprep.subr.bf16.mxu0 0
    %2169 = vmatpush1.bf16.msra.mxu0 %v1859
    %2170 = vmatprep.subr.bf16.mxu0 0
    %2171 = vmatpush2.bf16.msra.mxu0 0
    %2172 = vmatprep.subr.bf16.mxu0 0
    %2173 = vmatpush2.bf16.msra.mxu0 0
    %2174 = vmatprep.subr.bf16.mxu0 0
    %2175 = vmatpush2.bf16.msra.mxu0 0
    %2176 = vmatprep.subr.bf16.mxu0 0
    %2177 = vmatpush2.bf16.msra.mxu0 0
    %2178 = vmatprep.subr.bf16.mxu0 0
    %2179 = vmatpush2.bf16.msra.mxu0 0
    %2180 = vmatprep.subr.bf16.mxu0 0
    %2181 = vmatpush2.bf16.msra.mxu0 0
    %2182 = vmatprep.subr.bf16.mxu0 0
    %2183 = vmatpush2.bf16.msra.mxu0 0
    %2184 = vmatprep.subr.bf16.mxu0 0
    %2185 = vmatpush2.bf16.msra.mxu0 0
    %2186 = vmatprep.mubr.bf16.mxu0 0
    %2187 = vmatmul.mubr.bf16.gmra.mxu0 %v2112
    %v2188 = vpop.f32.mrf.mxu0
    %v2189 = vadd.f32 0.0, %v2188
    %v2190 = vpop.f32.mrf.mxu0
    %v2191 = vpop.f32.mrf.mxu0
    %v2192 = vpop.f32.mrf.mxu0
    %2193 = vdwg.mxu0
    %v2194 = vadd.f32 %v1684, %v2148
    %v2195 = vadd.f32 %v1686, %v2150
    %v2196 = vxor.u32 %v2194, 2147483648
    %v2197 = vxor.u32 %v2195, 2147483648
    %v2198 = vmul.f32 %v2196, 1.442695
    %v2199 = vpow.pop %v2198
    %v2200 = vmul.f32 %v2197, 1.442695
    %v2201 = vpow.pop %v2200
    %v2202 = vadd.f32 %v2199, 1.0
    %v2203 = vadd.f32 %v2201, 1.0
    %v2204 = vrcp.pop %v2202
    %v2205 = vmul.f32 1.0, %v2204
    %v2206 = vrcp.pop %v2203
    %v2207 = vmul.f32 1.0, %v2206
    %v2208 = vadd.f32 %v2189, %v529
    %v2209 = vmul.f32 %v2205, %v2208
    %v2210 = vadd.f32 %v1755, %v2209
    %v2211 = vtanh.pop %v2210
    %v2212 = vsub.f32 1.0, %v2207
    %v2213 = vmul.f32 %v2212, %v2211
    %v2214 = vmul.f32 %v2207, %v2111
    %v2215 = vadd.f32 %v2213, %v2214
    %v2216 = vpack.c.bf16 %v2215, %v2215
    %2217 = vmatprep.subr.bf16.mxu0 %v1879
    %2218 = vmatpush1.bf16.msra.mxu0 %v1878
    %2219 = vmatprep.subr.bf16.mxu0 %v1876
    %2220 = vmatpush1.bf16.msra.mxu0 %v1875
    %2221 = vmatprep.subr.bf16.mxu0 %v1873
    %2222 = vmatpush1.bf16.msra.mxu0 %v1872
    %2223 = vmatprep.subr.bf16.mxu0 %v1870
    %2224 = vmatpush1.bf16.msra.mxu0 %v1869
    %2225 = vmatprep.subr.bf16.mxu0 %v1867
    %2226 = vmatpush1.bf16.msra.mxu0 %v1866
    %2227 = vmatprep.subr.bf16.mxu0 %v1864
    %2228 = vmatpush1.bf16.msra.mxu0 %v1863
    %2229 = vmatprep.subr.bf16.mxu0 %v1861
    %2230 = vmatpush1.bf16.msra.mxu0 %v1860
    %2231 = vmatprep.subr.bf16.mxu0 %v1858
    %2232 = vmatpush1.bf16.msra.mxu0 %v1857
    %2233 = vmatprep.subr.bf16.mxu0 0
    %2234 = vmatpush2.bf16.msra.mxu0 0
    %2235 = vmatprep.subr.bf16.mxu0 0
    %2236 = vmatpush2.bf16.msra.mxu0 0
    %2237 = vmatprep.subr.bf16.mxu0 0
    %2238 = vmatpush2.bf16.msra.mxu0 0
    %2239 = vmatprep.subr.bf16.mxu0 0
    %2240 = vmatpush2.bf16.msra.mxu0 0
    %2241 = vmatprep.subr.bf16.mxu0 0
    %2242 = vmatpush2.bf16.msra.mxu0 0
    %2243 = vmatprep.subr.bf16.mxu0 0
    %2244 = vmatpush2.bf16.msra.mxu0 0
    %2245 = vmatprep.subr.bf16.mxu0 0
    %2246 = vmatpush2.bf16.msra.mxu0 0
    %2247 = vmatprep.subr.bf16.mxu0 0
    %2248 = vmatpush2.bf16.msra.mxu0 0
    %2249 = vmatprep.mubr.bf16.mxu0 0
    %2250 = vmatmul.mubr.bf16.gmra.mxu0 %v2216
    %v2251 = vpop.f32.mrf.mxu0
    %v2252 = vadd.f32 0.0, %v2251
    %v2253 = vpop.f32.mrf.mxu0
    %v2254 = vadd.f32 0.0, %v2253
    %v2255 = vpop.f32.mrf.mxu0
    %v2256 = vpop.f32.mrf.mxu0
    %2257 = vdwg.mxu0
    %2258 = vmatprep.subr.bf16.mxu0 0
    %2259 = vmatpush1.bf16.msra.mxu0 %v1880
    %2260 = vmatprep.subr.bf16.mxu0 0
    %2261 = vmatpush1.bf16.msra.mxu0 %v1877
    %2262 = vmatprep.subr.bf16.mxu0 0
    %2263 = vmatpush1.bf16.msra.mxu0 %v1874
    %2264 = vmatprep.subr.bf16.mxu0 0
    %2265 = vmatpush1.bf16.msra.mxu0 %v1871
    %2266 = vmatprep.subr.bf16.mxu0 0
    %2267 = vmatpush1.bf16.msra.mxu0 %v1868
    %2268 = vmatprep.subr.bf16.mxu0 0
    %2269 = vmatpush1.bf16.msra.mxu0 %v1865
    %2270 = vmatprep.subr.bf16.mxu0 0
    %2271 = vmatpush1.bf16.msra.mxu0 %v1862
    %2272 = vmatprep.subr.bf16.mxu0 0
    %2273 = vmatpush1.bf16.msra.mxu0 %v1859
    %2274 = vmatprep.subr.bf16.mxu0 0
    %2275 = vmatpush2.bf16.msra.mxu0 0
    %2276 = vmatprep.subr.bf16.mxu0 0
    %2277 = vmatpush2.bf16.msra.mxu0 0
    %2278 = vmatprep.subr.bf16.mxu0 0
    %2279 = vmatpush2.bf16.msra.mxu0 0
    %2280 = vmatprep.subr.bf16.mxu0 0
    %2281 = vmatpush2.bf16.msra.mxu0 0
    %2282 = vmatprep.subr.bf16.mxu0 0
    %2283 = vmatpush2.bf16.msra.mxu0 0
    %2284 = vmatprep.subr.bf16.mxu0 0
    %2285 = vmatpush2.bf16.msra.mxu0 0
    %2286 = vmatprep.subr.bf16.mxu0 0
    %2287 = vmatpush2.bf16.msra.mxu0 0
    %2288 = vmatprep.subr.bf16.mxu0 0
    %2289 = vmatpush2.bf16.msra.mxu0 0
    %2290 = vmatprep.mubr.bf16.mxu0 0
    %2291 = vmatmul.mubr.bf16.gmra.mxu0 %v2216
    %v2292 = vpop.f32.mrf.mxu0
    %v2293 = vadd.f32 0.0, %v2292
    %v2294 = vpop.f32.mrf.mxu0
    %v2295 = vpop.f32.mrf.mxu0
    %v2296 = vpop.f32.mrf.mxu0
    %2297 = vdwg.mxu0
    %v2298 = vadd.f32 %v1688, %v2252
    %v2299 = vadd.f32 %v1690, %v2254
    %v2300 = vxor.u32 %v2298, 2147483648
    %v2301 = vxor.u32 %v2299, 2147483648
    %v2302 = vmul.f32 %v2300, 1.442695
    %v2303 = vpow.pop %v2302
    %v2304 = vmul.f32 %v2301, 1.442695
    %v2305 = vpow.pop %v2304
    %v2306 = vadd.f32 %v2303, 1.0
    %v2307 = vadd.f32 %v2305, 1.0
    %v2308 = vrcp.pop %v2306
    %v2309 = vmul.f32 1.0, %v2308
    %v2310 = vrcp.pop %v2307
    %v2311 = vmul.f32 1.0, %v2310
    %v2312 = vadd.f32 %v2293, %v529
    %v2313 = vmul.f32 %v2309, %v2312
    %v2314 = vadd.f32 %v1758, %v2313
    %v2315 = vtanh.pop %v2314
    %v2316 = vsub.f32 1.0, %v2311
    %v2317 = vmul.f32 %v2316, %v2315
    %v2318 = vmul.f32 %v2311, %v2215
    %v2319 = vadd.f32 %v2317, %v2318
    %v2320 = vpack.c.bf16 %v2319, %v2319
    %2321 = vmatprep.subr.bf16.mxu0 %v1879
    %2322 = vmatpush1.bf16.msra.mxu0 %v1878
    %2323 = vmatprep.subr.bf16.mxu0 %v1876
    %2324 = vmatpush1.bf16.msra.mxu0 %v1875
    %2325 = vmatprep.subr.bf16.mxu0 %v1873
    %2326 = vmatpush1.bf16.msra.mxu0 %v1872
    %2327 = vmatprep.subr.bf16.mxu0 %v1870
    %2328 = vmatpush1.bf16.msra.mxu0 %v1869
    %2329 = vmatprep.subr.bf16.mxu0 %v1867
    %2330 = vmatpush1.bf16.msra.mxu0 %v1866
    %2331 = vmatprep.subr.bf16.mxu0 %v1864
    %2332 = vmatpush1.bf16.msra.mxu0 %v1863
    %2333 = vmatprep.subr.bf16.mxu0 %v1861
    %2334 = vmatpush1.bf16.msra.mxu0 %v1860
    %2335 = vmatprep.subr.bf16.mxu0 %v1858
    %2336 = vmatpush1.bf16.msra.mxu0 %v1857
    %2337 = vmatprep.subr.bf16.mxu0 0
    %2338 = vmatpush2.bf16.msra.mxu0 0
    %2339 = vmatprep.subr.bf16.mxu0 0
    %2340 = vmatpush2.bf16.msra.mxu0 0
    %2341 = vmatprep.subr.bf16.mxu0 0
    %2342 = vmatpush2.bf16.msra.mxu0 0
    %2343 = vmatprep.subr.bf16.mxu0 0
    %2344 = vmatpush2.bf16.msra.mxu0 0
    %2345 = vmatprep.subr.bf16.mxu0 0
    %2346 = vmatpush2.bf16.msra.mxu0 0
    %2347 = vmatprep.subr.bf16.mxu0 0
    %2348 = vmatpush2.bf16.msra.mxu0 0
    %2349 = vmatprep.subr.bf16.mxu0 0
    %2350 = vmatpush2.bf16.msra.mxu0 0
    %2351 = vmatprep.subr.bf16.mxu0 0
    %2352 = vmatpush2.bf16.msra.mxu0 0
    %2353 = vmatprep.mubr.bf16.mxu0 0
    %2354 = vmatmul.mubr.bf16.gmra.mxu0 %v2320
    %v2355 = vpop.f32.mrf.mxu0
    %v2356 = vadd.f32 0.0, %v2355
    %v2357 = vpop.f32.mrf.mxu0
    %v2358 = vadd.f32 0.0, %v2357
    %v2359 = vpop.f32.mrf.mxu0
    %v2360 = vpop.f32.mrf.mxu0
    %2361 = vdwg.mxu0
    %2362 = vmatprep.subr.bf16.mxu0 0
    %2363 = vmatpush1.bf16.msra.mxu0 %v1880
    %2364 = vmatprep.subr.bf16.mxu0 0
    %2365 = vmatpush1.bf16.msra.mxu0 %v1877
    %2366 = vmatprep.subr.bf16.mxu0 0
    %2367 = vmatpush1.bf16.msra.mxu0 %v1874
    %2368 = vmatprep.subr.bf16.mxu0 0
    %2369 = vmatpush1.bf16.msra.mxu0 %v1871
    %2370 = vmatprep.subr.bf16.mxu0 0
    %2371 = vmatpush1.bf16.msra.mxu0 %v1868
    %2372 = vmatprep.subr.bf16.mxu0 0
    %2373 = vmatpush1.bf16.msra.mxu0 %v1865
    %2374 = vmatprep.subr.bf16.mxu0 0
    %2375 = vmatpush1.bf16.msra.mxu0 %v1862
    %2376 = vmatprep.subr.bf16.mxu0 0
    %2377 = vmatpush1.bf16.msra.mxu0 %v1859
    %2378 = vmatprep.subr.bf16.mxu0 0
    %2379 = vmatpush2.bf16.msra.mxu0 0
    %2380 = vmatprep.subr.bf16.mxu0 0
    %2381 = vmatpush2.bf16.msra.mxu0 0
    %2382 = vmatprep.subr.bf16.mxu0 0
    %2383 = vmatpush2.bf16.msra.mxu0 0
    %2384 = vmatprep.subr.bf16.mxu0 0
    %2385 = vmatpush2.bf16.msra.mxu0 0
    %2386 = vmatprep.subr.bf16.mxu0 0
    %2387 = vmatpush2.bf16.msra.mxu0 0
    %2388 = vmatprep.subr.bf16.mxu0 0
    %2389 = vmatpush2.bf16.msra.mxu0 0
    %2390 = vmatprep.subr.bf16.mxu0 0
    %2391 = vmatpush2.bf16.msra.mxu0 0
    %2392 = vmatprep.subr.bf16.mxu0 0
    %2393 = vmatpush2.bf16.msra.mxu0 0
    %2394 = vmatprep.mubr.bf16.mxu0 0
    %2395 = vmatmul.mubr.bf16.gmra.mxu0 %v2320
    %v2396 = vpop.f32.mrf.mxu0
    %v2397 = vadd.f32 0.0, %v2396
    %v2398 = vpop.f32.mrf.mxu0
    %v2399 = vpop.f32.mrf.mxu0
    %v2400 = vpop.f32.mrf.mxu0
    %2401 = vdwg.mxu0
    %v2402 = vadd.f32 %v1694, %v2356
    %v2403 = vadd.f32 %v1696, %v2358
    %v2404 = vxor.u32 %v2402, 2147483648
    %v2405 = vxor.u32 %v2403, 2147483648
    %v2406 = vmul.f32 %v2404, 1.442695
    %v2407 = vpow.pop %v2406
    %v2408 = vmul.f32 %v2405, 1.442695
    %v2409 = vpow.pop %v2408
    %v2410 = vadd.f32 %v2407, 1.0
    %v2411 = vadd.f32 %v2409, 1.0
    %v2412 = vrcp.pop %v2410
    %v2413 = vmul.f32 1.0, %v2412
    %v2414 = vrcp.pop %v2411
    %v2415 = vmul.f32 1.0, %v2414
    %v2416 = vadd.f32 %v2397, %v529
    %v2417 = vmul.f32 %v2413, %v2416
    %v2418 = vadd.f32 %v1763, %v2417
    %v2419 = vtanh.pop %v2418
    %v2420 = vsub.f32 1.0, %v2415
    %v2421 = vmul.f32 %v2420, %v2419
    %v2422 = vmul.f32 %v2415, %v2319
    %v2423 = vadd.f32 %v2421, %v2422
    %v2424 = vpack.c.bf16 %v2423, %v2423
    %2425 = vmatprep.subr.bf16.mxu0 %v1879
    %2426 = vmatpush1.bf16.msra.mxu0 %v1878
    %2427 = vmatprep.subr.bf16.mxu0 %v1876
    %2428 = vmatpush1.bf16.msra.mxu0 %v1875
    %2429 = vmatprep.subr.bf16.mxu0 %v1873
    %2430 = vmatpush1.bf16.msra.mxu0 %v1872
    %2431 = vmatprep.subr.bf16.mxu0 %v1870
    %2432 = vmatpush1.bf16.msra.mxu0 %v1869
    %2433 = vmatprep.subr.bf16.mxu0 %v1867
    %2434 = vmatpush1.bf16.msra.mxu0 %v1866
    %2435 = vmatprep.subr.bf16.mxu0 %v1864
    %2436 = vmatpush1.bf16.msra.mxu0 %v1863
    %2437 = vmatprep.subr.bf16.mxu0 %v1861
    %2438 = vmatpush1.bf16.msra.mxu0 %v1860
    %2439 = vmatprep.subr.bf16.mxu0 %v1858
    %2440 = vmatpush1.bf16.msra.mxu0 %v1857
    %2441 = vmatprep.subr.bf16.mxu0 0
    %2442 = vmatpush2.bf16.msra.mxu0 0
    %2443 = vmatprep.subr.bf16.mxu0 0
    %2444 = vmatpush2.bf16.msra.mxu0 0
    %2445 = vmatprep.subr.bf16.mxu0 0
    %2446 = vmatpush2.bf16.msra.mxu0 0
    %2447 = vmatprep.subr.bf16.mxu0 0
    %2448 = vmatpush2.bf16.msra.mxu0 0
    %2449 = vmatprep.subr.bf16.mxu0 0
    %2450 = vmatpush2.bf16.msra.mxu0 0
    %2451 = vmatprep.subr.bf16.mxu0 0
    %2452 = vmatpush2.bf16.msra.mxu0 0
    %2453 = vmatprep.subr.bf16.mxu0 0
    %2454 = vmatpush2.bf16.msra.mxu0 0
    %2455 = vmatprep.subr.bf16.mxu0 0
    %2456 = vmatpush2.bf16.msra.mxu0 0
    %2457 = vmatprep.mubr.bf16.mxu0 0
    %2458 = vmatmul.mubr.bf16.gmra.mxu0 %v2424
    %v2459 = vpop.f32.mrf.mxu0
    %v2460 = vadd.f32 0.0, %v2459
    %v2461 = vpop.f32.mrf.mxu0
    %v2462 = vadd.f32 0.0, %v2461
    %v2463 = vpop.f32.mrf.mxu0
    %v2464 = vpop.f32.mrf.mxu0
    %2465 = vdwg.mxu0
    %2466 = vmatprep.subr.bf16.mxu0 0
    %2467 = vmatpush1.bf16.msra.mxu0 %v1880
    %2468 = vmatprep.subr.bf16.mxu0 0
    %2469 = vmatpush1.bf16.msra.mxu0 %v1877
    %2470 = vmatprep.subr.bf16.mxu0 0
    %2471 = vmatpush1.bf16.msra.mxu0 %v1874
    %2472 = vmatprep.subr.bf16.mxu0 0
    %2473 = vmatpush1.bf16.msra.mxu0 %v1871
    %2474 = vmatprep.subr.bf16.mxu0 0
    %2475 = vmatpush1.bf16.msra.mxu0 %v1868
    %2476 = vmatprep.subr.bf16.mxu0 0
    %2477 = vmatpush1.bf16.msra.mxu0 %v1865
    %2478 = vmatprep.subr.bf16.mxu0 0
    %2479 = vmatpush1.bf16.msra.mxu0 %v1862
    %2480 = vmatprep.subr.bf16.mxu0 0
    %2481 = vmatpush1.bf16.msra.mxu0 %v1859
    %2482 = vmatprep.subr.bf16.mxu0 0
    %2483 = vmatpush2.bf16.msra.mxu0 0
    %2484 = vmatprep.subr.bf16.mxu0 0
    %2485 = vmatpush2.bf16.msra.mxu0 0
    %2486 = vmatprep.subr.bf16.mxu0 0
    %2487 = vmatpush2.bf16.msra.mxu0 0
    %2488 = vmatprep.subr.bf16.mxu0 0
    %2489 = vmatpush2.bf16.msra.mxu0 0
    %2490 = vmatprep.subr.bf16.mxu0 0
    %2491 = vmatpush2.bf16.msra.mxu0 0
    %2492 = vmatprep.subr.bf16.mxu0 0
    %2493 = vmatpush2.bf16.msra.mxu0 0
    %2494 = vmatprep.subr.bf16.mxu0 0
    %2495 = vmatpush2.bf16.msra.mxu0 0
    %2496 = vmatprep.subr.bf16.mxu0 0
    %2497 = vmatpush2.bf16.msra.mxu0 0
    %2498 = vmatprep.mubr.bf16.mxu0 0
    %2499 = vmatmul.mubr.bf16.gmra.mxu0 %v2424
    %v2500 = vpop.f32.mrf.mxu0
    %v2501 = vadd.f32 0.0, %v2500
    %v2502 = vpop.f32.mrf.mxu0
    %v2503 = vpop.f32.mrf.mxu0
    %v2504 = vpop.f32.mrf.mxu0
    %2505 = vdwg.mxu0
    %v2506 = vadd.f32 %v1698, %v2460
    %v2507 = vadd.f32 %v1700, %v2462
    %v2508 = vxor.u32 %v2506, 2147483648
    %v2509 = vxor.u32 %v2507, 2147483648
    %v2510 = vmul.f32 %v2508, 1.442695
    %v2511 = vpow.pop %v2510
    %v2512 = vmul.f32 %v2509, 1.442695
    %v2513 = vpow.pop %v2512
    %v2514 = vadd.f32 %v2511, 1.0
    %v2515 = vadd.f32 %v2513, 1.0
    %v2516 = vrcp.pop %v2514
    %v2517 = vmul.f32 1.0, %v2516
    %v2518 = vrcp.pop %v2515
    %v2519 = vmul.f32 1.0, %v2518
    %v2520 = vadd.f32 %v2501, %v529
    %v2521 = vmul.f32 %v2517, %v2520
    %v2522 = vadd.f32 %v1766, %v2521
    %v2523 = vtanh.pop %v2522
    %v2524 = vsub.f32 1.0, %v2519
    %v2525 = vmul.f32 %v2524, %v2523
    %v2526 = vmul.f32 %v2519, %v2423
    %v2527 = vadd.f32 %v2525, %v2526
    %v2528 = vpack.c.bf16 %v2527, %v2527
    %2529 = vmatprep.subr.bf16.mxu0 %v1879
    %2530 = vmatpush1.bf16.msra.mxu0 %v1878
    %2531 = vmatprep.subr.bf16.mxu0 %v1876
    %2532 = vmatpush1.bf16.msra.mxu0 %v1875
    %2533 = vmatprep.subr.bf16.mxu0 %v1873
    %2534 = vmatpush1.bf16.msra.mxu0 %v1872
    %2535 = vmatprep.subr.bf16.mxu0 %v1870
    %2536 = vmatpush1.bf16.msra.mxu0 %v1869
    %2537 = vmatprep.subr.bf16.mxu0 %v1867
    %2538 = vmatpush1.bf16.msra.mxu0 %v1866
    %2539 = vmatprep.subr.bf16.mxu0 %v1864
    %2540 = vmatpush1.bf16.msra.mxu0 %v1863
    %2541 = vmatprep.subr.bf16.mxu0 %v1861
    %2542 = vmatpush1.bf16.msra.mxu0 %v1860
    %2543 = vmatprep.subr.bf16.mxu0 %v1858
    %2544 = vmatpush1.bf16.msra.mxu0 %v1857
    %2545 = vmatprep.subr.bf16.mxu0 0
    %2546 = vmatpush2.bf16.msra.mxu0 0
    %2547 = vmatprep.subr.bf16.mxu0 0
    %2548 = vmatpush2.bf16.msra.mxu0 0
    %2549 = vmatprep.subr.bf16.mxu0 0
    %2550 = vmatpush2.bf16.msra.mxu0 0
    %2551 = vmatprep.subr.bf16.mxu0 0
    %2552 = vmatpush2.bf16.msra.mxu0 0
    %2553 = vmatprep.subr.bf16.mxu0 0
    %2554 = vmatpush2.bf16.msra.mxu0 0
    %2555 = vmatprep.subr.bf16.mxu0 0
    %2556 = vmatpush2.bf16.msra.mxu0 0
    %2557 = vmatprep.subr.bf16.mxu0 0
    %2558 = vmatpush2.bf16.msra.mxu0 0
    %2559 = vmatprep.subr.bf16.mxu0 0
    %2560 = vmatpush2.bf16.msra.mxu0 0
    %2561 = vmatprep.mubr.bf16.mxu0 0
    %2562 = vmatmul.mubr.bf16.gmra.mxu0 %v2528
    %v2563 = vpop.f32.mrf.mxu0
    %v2564 = vadd.f32 0.0, %v2563
    %v2565 = vpop.f32.mrf.mxu0
    %v2566 = vadd.f32 0.0, %v2565
    %v2567 = vpop.f32.mrf.mxu0
    %v2568 = vpop.f32.mrf.mxu0
    %2569 = vdwg.mxu0
    %2570 = vmatprep.subr.bf16.mxu0 0
    %2571 = vmatpush1.bf16.msra.mxu0 %v1880
    %2572 = vmatprep.subr.bf16.mxu0 0
    %2573 = vmatpush1.bf16.msra.mxu0 %v1877
    %2574 = vmatprep.subr.bf16.mxu0 0
    %2575 = vmatpush1.bf16.msra.mxu0 %v1874
    %2576 = vmatprep.subr.bf16.mxu0 0
    %2577 = vmatpush1.bf16.msra.mxu0 %v1871
    %2578 = vmatprep.subr.bf16.mxu0 0
    %2579 = vmatpush1.bf16.msra.mxu0 %v1868
    %2580 = vmatprep.subr.bf16.mxu0 0
    %2581 = vmatpush1.bf16.msra.mxu0 %v1865
    %2582 = vmatprep.subr.bf16.mxu0 0
    %2583 = vmatpush1.bf16.msra.mxu0 %v1862
    %2584 = vmatprep.subr.bf16.mxu0 0
    %2585 = vmatpush1.bf16.msra.mxu0 %v1859
    %2586 = vmatprep.subr.bf16.mxu0 0
    %2587 = vmatpush2.bf16.msra.mxu0 0
    %2588 = vmatprep.subr.bf16.mxu0 0
    %2589 = vmatpush2.bf16.msra.mxu0 0
    %2590 = vmatprep.subr.bf16.mxu0 0
    %2591 = vmatpush2.bf16.msra.mxu0 0
    %2592 = vmatprep.subr.bf16.mxu0 0
    %2593 = vmatpush2.bf16.msra.mxu0 0
    %2594 = vmatprep.subr.bf16.mxu0 0
    %2595 = vmatpush2.bf16.msra.mxu0 0
    %2596 = vmatprep.subr.bf16.mxu0 0
    %2597 = vmatpush2.bf16.msra.mxu0 0
    %2598 = vmatprep.subr.bf16.mxu0 0
    %2599 = vmatpush2.bf16.msra.mxu0 0
    %2600 = vmatprep.subr.bf16.mxu0 0
    %2601 = vmatpush2.bf16.msra.mxu0 0
    %2602 = vmatprep.mubr.bf16.mxu0 0
    %2603 = vmatmul.mubr.bf16.gmra.mxu0 %v2528
    %v2604 = vpop.f32.mrf.mxu0
    %v2605 = vadd.f32 0.0, %v2604
    %v2606 = vpop.f32.mrf.mxu0
    %v2607 = vpop.f32.mrf.mxu0
    %v2608 = vpop.f32.mrf.mxu0
    %2609 = vdwg.mxu0
    %v2610 = vadd.f32 %v1704, %v2564
    %v2611 = vadd.f32 %v1706, %v2566
    %v2612 = vxor.u32 %v2610, 2147483648
    %v2613 = vxor.u32 %v2611, 2147483648
    %v2614 = vmul.f32 %v2612, 1.442695
    %v2615 = vpow.pop %v2614
    %v2616 = vmul.f32 %v2613, 1.442695
    %v2617 = vpow.pop %v2616
    %v2618 = vadd.f32 %v2615, 1.0
    %v2619 = vadd.f32 %v2617, 1.0
    %v2620 = vrcp.pop %v2618
    %v2621 = vmul.f32 1.0, %v2620
    %v2622 = vrcp.pop %v2619
    %v2623 = vmul.f32 1.0, %v2622
    %v2624 = vadd.f32 %v2605, %v529
    %v2625 = vmul.f32 %v2621, %v2624
    %v2626 = vadd.f32 %v1771, %v2625
    %v2627 = vtanh.pop %v2626
    %v2628 = vsub.f32 1.0, %v2623
    %v2629 = vmul.f32 %v2628, %v2627
    %v2630 = vmul.f32 %v2623, %v2527
    %v2631 = vadd.f32 %v2629, %v2630
    %v2632 = vpack.c.bf16 %v2631, %v2631
    %2633 = vmatprep.subr.bf16.mxu0 %v1879
    %2634 = vmatpush1.bf16.msra.mxu0 %v1878
    %2635 = vmatprep.subr.bf16.mxu0 %v1876
    %2636 = vmatpush1.bf16.msra.mxu0 %v1875
    %2637 = vmatprep.subr.bf16.mxu0 %v1873
    %2638 = vmatpush1.bf16.msra.mxu0 %v1872
    %2639 = vmatprep.subr.bf16.mxu0 %v1870
    %2640 = vmatpush1.bf16.msra.mxu0 %v1869
    %2641 = vmatprep.subr.bf16.mxu0 %v1867
    %2642 = vmatpush1.bf16.msra.mxu0 %v1866
    %2643 = vmatprep.subr.bf16.mxu0 %v1864
    %2644 = vmatpush1.bf16.msra.mxu0 %v1863
    %2645 = vmatprep.subr.bf16.mxu0 %v1861
    %2646 = vmatpush1.bf16.msra.mxu0 %v1860
    %2647 = vmatprep.subr.bf16.mxu0 %v1858
    %2648 = vmatpush1.bf16.msra.mxu0 %v1857
    %2649 = vmatprep.subr.bf16.mxu0 0
    %2650 = vmatpush2.bf16.msra.mxu0 0
    %2651 = vmatprep.subr.bf16.mxu0 0
    %2652 = vmatpush2.bf16.msra.mxu0 0
    %2653 = vmatprep.subr.bf16.mxu0 0
    %2654 = vmatpush2.bf16.msra.mxu0 0
    %2655 = vmatprep.subr.bf16.mxu0 0
    %2656 = vmatpush2.bf16.msra.mxu0 0
    %2657 = vmatprep.subr.bf16.mxu0 0
    %2658 = vmatpush2.bf16.msra.mxu0 0
    %2659 = vmatprep.subr.bf16.mxu0 0
    %2660 = vmatpush2.bf16.msra.mxu0 0
    %2661 = vmatprep.subr.bf16.mxu0 0
    %2662 = vmatpush2.bf16.msra.mxu0 0
    %2663 = vmatprep.subr.bf16.mxu0 0
    %2664 = vmatpush2.bf16.msra.mxu0 0
    %2665 = vmatprep.mubr.bf16.mxu0 0
    %2666 = vmatmul.mubr.bf16.gmra.mxu0 %v2632
    %v2667 = vpop.f32.mrf.mxu0
    %v2668 = vadd.f32 0.0, %v2667
    %v2669 = vpop.f32.mrf.mxu0
    %v2670 = vadd.f32 0.0, %v2669
    %v2671 = vpop.f32.mrf.mxu0
    %v2672 = vpop.f32.mrf.mxu0
    %2673 = vdwg.mxu0
    %2674 = vmatprep.subr.bf16.mxu0 0
    %2675 = vmatpush1.bf16.msra.mxu0 %v1880
    %2676 = vmatprep.subr.bf16.mxu0 0
    %2677 = vmatpush1.bf16.msra.mxu0 %v1877
    %2678 = vmatprep.subr.bf16.mxu0 0
    %2679 = vmatpush1.bf16.msra.mxu0 %v1874
    %2680 = vmatprep.subr.bf16.mxu0 0
    %2681 = vmatpush1.bf16.msra.mxu0 %v1871
    %2682 = vmatprep.subr.bf16.mxu0 0
    %2683 = vmatpush1.bf16.msra.mxu0 %v1868
    %2684 = vmatprep.subr.bf16.mxu0 0
    %2685 = vmatpush1.bf16.msra.mxu0 %v1865
    %2686 = vmatprep.subr.bf16.mxu0 0
    %2687 = vmatpush1.bf16.msra.mxu0 %v1862
    %2688 = vmatprep.subr.bf16.mxu0 0
    %2689 = vmatpush1.bf16.msra.mxu0 %v1859
    %2690 = vmatprep.subr.bf16.mxu0 0
    %2691 = vmatpush2.bf16.msra.mxu0 0
    %2692 = vmatprep.subr.bf16.mxu0 0
    %2693 = vmatpush2.bf16.msra.mxu0 0
    %2694 = vmatprep.subr.bf16.mxu0 0
    %2695 = vmatpush2.bf16.msra.mxu0 0
    %2696 = vmatprep.subr.bf16.mxu0 0
    %2697 = vmatpush2.bf16.msra.mxu0 0
    %2698 = vmatprep.subr.bf16.mxu0 0
    %2699 = vmatpush2.bf16.msra.mxu0 0
    %2700 = vmatprep.subr.bf16.mxu0 0
    %2701 = vmatpush2.bf16.msra.mxu0 0
    %2702 = vmatprep.subr.bf16.mxu0 0
    %2703 = vmatpush2.bf16.msra.mxu0 0
    %2704 = vmatprep.subr.bf16.mxu0 0
    %2705 = vmatpush2.bf16.msra.mxu0 0
    %2706 = vmatprep.mubr.bf16.mxu0 0
    %2707 = vmatmul.mubr.bf16.gmra.mxu0 %v2632
    %v2708 = vpop.f32.mrf.mxu0
    %v2709 = vadd.f32 0.0, %v2708
    %v2710 = vpop.f32.mrf.mxu0
    %v2711 = vpop.f32.mrf.mxu0
    %v2712 = vpop.f32.mrf.mxu0
    %2713 = vdwg.mxu0
    %v2714 = vadd.f32 %v1708, %v2668
    %v2715 = vadd.f32 %v1710, %v2670
    %v2716 = vxor.u32 %v2714, 2147483648
    %v2717 = vxor.u32 %v2715, 2147483648
    %v2718 = vmul.f32 %v2716, 1.442695
    %v2719 = vpow.pop %v2718
    %v2720 = vmul.f32 %v2717, 1.442695
    %v2721 = vpow.pop %v2720
    %v2722 = vadd.f32 %v2719, 1.0
    %v2723 = vadd.f32 %v2721, 1.0
    %v2724 = vrcp.pop %v2722
    %v2725 = vmul.f32 1.0, %v2724
    %v2726 = vrcp.pop %v2723
    %v2727 = vmul.f32 1.0, %v2726
    %v2728 = vadd.f32 %v2709, %v529
    %v2729 = vmul.f32 %v2725, %v2728
    %v2730 = vadd.f32 %v1774, %v2729
    %v2731 = vtanh.pop %v2730
    %v2732 = vsub.f32 1.0, %v2727
    %v2733 = vmul.f32 %v2732, %v2731
    %v2734 = vmul.f32 %v2727, %v2631
    %v2735 = vadd.f32 %v2733, %v2734
    %v2736 = vpack.c.bf16 %v2735, %v2735
    %v2737 = vld [vmem:[%s9] sm:$0xf]
    %v2738 = vld [vmem:[%s9 + $0x4] sm:$0xf]
    %v2739 = vld [vmem:[%s9 + $0x8] sm:$0xf]
    %v2740 = vld [vmem:[%s9 + $0xc] sm:$0xf]
    %v2741 = vld [vmem:[%s9 + $0x10] sm:$0xf]
    %v2742 = vld [vmem:[%s9 + $0x14] sm:$0xf]
    %v2743 = vld [vmem:[%s9 + $0x18] sm:$0xf]
    %v2744 = vld [vmem:[%s9 + $0x1c] sm:$0xf]
    %v2745 = vld [vmem:[%s9 + $0x20] sm:$0xf]
    %v2746 = vld [vmem:[%s9 + $0x24] sm:$0xf]
    %v2747 = vld [vmem:[%s9 + $0x28] sm:$0xf]
    %v2748 = vld [vmem:[%s9 + $0x2c] sm:$0xf]
    %v2749 = vld [vmem:[%s9 + $0x30] sm:$0xf]
    %v2750 = vld [vmem:[%s9 + $0x34] sm:$0xf]
    %v2751 = vld [vmem:[%s9 + $0x38] sm:$0xf]
    %v2752 = vld [vmem:[%s9 + $0x3c] sm:$0xf]
    %v2753 = vld [vmem:[%s10] sm:$0x1]
    %v2755 = vlaneseq
    %v2756 = vshrl.u32 %v2755, 7
    %v2757 = vsub.s32 0, %v2756
    %v2758 = vrot.slane %v2753, %v2757
    %v2776 = vunpack.c.l.b16 %v2737
    %v2777 = vunpack.c.l.b16 %v2738
    %v2778 = vunpack.c.l.b16 %v2739
    %v2779 = vunpack.c.l.b16 %v2740
    %v2780 = vunpack.c.l.b16 %v2741
    %v2781 = vunpack.c.l.b16 %v2742
    %v2782 = vunpack.c.l.b16 %v2743
    %v2783 = vunpack.c.l.b16 %v2744
    %v2784 = vunpack.c.l.b16 %v2745
    %v2785 = vunpack.c.l.b16 %v2746
    %v2786 = vunpack.c.l.b16 %v2747
    %v2787 = vunpack.c.l.b16 %v2748
    %v2788 = vunpack.c.l.b16 %v2749
    %v2789 = vunpack.c.l.b16 %v2750
    %v2790 = vunpack.c.l.b16 %v2751
    %v2791 = vunpack.c.l.b16 %v2752
    %v2792 = vpack.c.b16 %v2777, %v2776
    %v2793 = vpack.c.b16 %v2779, %v2778
    %v2794 = vpack.c.b16 %v2781, %v2780
    %v2795 = vpack.c.b16 %v2783, %v2782
    %v2796 = vpack.c.b16 %v2785, %v2784
    %v2797 = vpack.c.b16 %v2787, %v2786
    %v2798 = vpack.c.b16 %v2789, %v2788
    %v2799 = vpack.c.b16 %v2791, %v2790
    %2808 = vmatprep.subr.bf16.mxu0 0
    %2809 = vmatpush1.bf16.msra.mxu0 %v2799
    %2810 = vmatprep.subr.bf16.mxu0 0
    %2811 = vmatpush1.bf16.msra.mxu0 %v2798
    %2812 = vmatprep.subr.bf16.mxu0 0
    %2813 = vmatpush1.bf16.msra.mxu0 %v2797
    %2814 = vmatprep.subr.bf16.mxu0 0
    %2815 = vmatpush1.bf16.msra.mxu0 %v2796
    %2816 = vmatprep.subr.bf16.mxu0 0
    %2817 = vmatpush1.bf16.msra.mxu0 %v2795
    %2818 = vmatprep.subr.bf16.mxu0 0
    %2819 = vmatpush1.bf16.msra.mxu0 %v2794
    %2820 = vmatprep.subr.bf16.mxu0 0
    %2821 = vmatpush1.bf16.msra.mxu0 %v2793
    %2822 = vmatprep.subr.bf16.mxu0 0
    %2823 = vmatpush1.bf16.msra.mxu0 %v2792
    %2824 = vmatprep.subr.bf16.mxu0 0
    %2825 = vmatpush2.bf16.msra.mxu0 0
    %2826 = vmatprep.subr.bf16.mxu0 0
    %2827 = vmatpush2.bf16.msra.mxu0 0
    %2828 = vmatprep.subr.bf16.mxu0 0
    %2829 = vmatpush2.bf16.msra.mxu0 0
    %2830 = vmatprep.subr.bf16.mxu0 0
    %2831 = vmatpush2.bf16.msra.mxu0 0
    %2832 = vmatprep.subr.bf16.mxu0 0
    %2833 = vmatpush2.bf16.msra.mxu0 0
    %2834 = vmatprep.subr.bf16.mxu0 0
    %2835 = vmatpush2.bf16.msra.mxu0 0
    %2836 = vmatprep.subr.bf16.mxu0 0
    %2837 = vmatpush2.bf16.msra.mxu0 0
    %2838 = vmatprep.subr.bf16.mxu0 0
    %2839 = vmatpush2.bf16.msra.mxu0 0
    %2840 = vmatprep.mubr.bf16.mxu0 0
    %2841 = vmatmul.mubr.bf16.gmra.mxu0 %v2736
    %v2842 = vpop.f32.mrf.mxu0
    %v2843 = vadd.f32 %v2758, %v2842
    %v2844 = vpop.f32.mrf.mxu0
    %v2845 = vpop.f32.mrf.mxu0
    %v2846 = vpop.f32.mrf.mxu0
    %2847 = vdwg.mxu0
    %2848 = vst [vmem:[%s11] sm:$0xff] %v2843
    // Predicated region
    $region62: #{gru_forward.1} parent=1 // pred_check
      _
    $region63: #{gru_forward.1} parent=1 // pred_check_branch
      %2850 = sbr.rel (0) target = $region65
    $region64: #{gru_forward.1} parent=1 // pred_region
      _
    $region65: #{gru_forward.1} parent=1 // pred_fallthru
      _
    // Predicated region
    $region66: #{gru_forward.1} parent=1 // pred_check
      _
    $region67: #{gru_forward.1} parent=1 // pred_check_branch
      %2852 = sbr.rel (0) target = $region69
    $region68: #{gru_forward.1} parent=1 // pred_region
      _
    $region69: #{gru_forward.1} parent=1 // pred_fallthru
      _
    %2853 = vsyncpa [#allocation3], 1
    %2854 = vsyncpa [#allocation5], 1
    %2855 = vsyncpa [#allocation8], 1

</llo_original>
